<compile_context>
chip_gen: v7x
topology: tpu7x:2x2x1
jax: 0.10.0
libtpu: 0.0.40
codegen_flags: <defaults>
</compile_context>

<pallas_src>
import math
import functools

import jax
import jax.numpy as jnp
from jax.experimental import pallas as pl
from jax.experimental.pallas import tpu as pltpu

EPS = 1e-6


def _layernorm(v, alpha, bias):
    # Matches PyTorch NormLayer: alpha * (x - mean) / (std + eps) + bias,
    # where std is the *unbiased* standard deviation (ddof = 1).
    d = v.shape[-1]
    mu = jnp.mean(v, axis=-1, keepdims=True)
    var = jnp.sum((v - mu) ** 2, axis=-1, keepdims=True) * (1.0 / (d - 1))
    inv = pl.reciprocal(jnp.sqrt(var) + EPS, approx=True)
    return alpha * (v - mu) * inv + bias


def encoder_stack_kernel(x_ref, mask_ref,
                         n1a_ref, n1b_ref,
                         wqkv_ref, bqkv_ref,
                         woh_ref, bo_ref,
                         n2a_ref, n2b_ref,
                         w1_ref, b1_ref, w2_ref, b2_ref,
                         nfa_ref, nfb_ref,
                         o_ref,
                         x_vmem,
                         *, heads, batch, seq):
    """Grid axis 0 = encoder layer index. Activations stay resident in VMEM."""
    layer = pl.program_id(0)

    # Layer 0: pull the (B*S, D) activations into the resident buffer once.
    @pl.when(layer == 0)
    def _():
        x_vmem[...] = x_ref[...]

    x = x_vmem[...]                      # (B*S, D)
    D = x.shape[-1]
    d_k = D // heads
    scale = 1.0 / math.sqrt(d_k)

    # Hoisted additive mask: (B, 1, S); 0 where visible, -1e9 where masked.
    mask_add = jnp.where(mask_ref[...] == 0.0, -1e9, 0.0)

    # ---- sub-layer 1: pre-norm + fused-QKV multi-head attention + residual ----
    x2 = _layernorm(x, n1a_ref[...], n1b_ref[...])
    qkv = jnp.dot(x2, wqkv_ref[...],
                  preferred_element_type=jnp.float32) + bqkv_ref[...]   # (B*S, 3D)

    attn_rows = []
    for b in range(batch):               # static unroll; batch is small
        qkv_b = qkv[b * seq:(b + 1) * seq]                              # (S, 3D)
        q = jnp.stack([qkv_b[:, h * d_k:(h + 1) * d_k]
                       for h in range(heads)], axis=0)                  # (H, S, dk)
        k = jnp.stack([qkv_b[:, D + h * d_k:D + (h + 1) * d_k]
                       for h in range(heads)], axis=0)
        v = jnp.stack([qkv_b[:, 2 * D + h * d_k:2 * D + (h + 1) * d_k]
                       for h in range(heads)], axis=0)

        scores = jnp.einsum('hqd,hkd->hqk', q, k,
                            preferred_element_type=jnp.float32) * scale  # (H, S, S)
        scores = scores + mask_add[b]            # (1, S) broadcasts over heads & queries
        scores = scores - jnp.max(scores, axis=-1, keepdims=True)
        p = jnp.exp(scores)
        p = p * pl.reciprocal(jnp.sum(p, axis=-1, keepdims=True), approx=True)

        out_h = jnp.einsum('hqk,hkd->hqd', p, v,
                           preferred_element_type=jnp.float32)           # (H, S, dk)
        # concat(heads) @ Wo  ==  sum_h out_h[h] @ Wo[h*dk:(h+1)*dk, :]
        ab = jnp.einsum('hqd,hdn->hqn', out_h, woh_ref[...],
                        preferred_element_type=jnp.float32).sum(axis=0)  # (S, D)
        attn_rows.append(ab)

    attn = jnp.concatenate(attn_rows, axis=0) + bo_ref[...]              # (B*S, D)
    x = x + attn                                   # dropout_1 == identity (eval mode)

    # ---- sub-layer 2: pre-norm + feed-forward + residual ----
    x2 = _layernorm(x, n2a_ref[...], n2b_ref[...])
    h1 = jnp.maximum(
        jnp.dot(x2, w1_ref[...], preferred_element_type=jnp.float32) + b1_ref[...],
        0.0)
    # TODO(synk): reference FeedForward.forward has no `return` (returns None);
    # implemented the intended linear2(dropout(relu(linear1(x)))) semantics.
    ff = jnp.dot(h1, w2_ref[...], preferred_element_type=jnp.float32) + b2_ref[...]
    x = x + ff                                     # dropout_2 == identity (eval mode)

    x_vmem[...] = x

    # Last layer: fused final NormLayer, single store of the result.
    @pl.when(layer == pl.num_programs(0) - 1)
    def _():
        o_ref[...] = _layernorm(x, nfa_ref[...], nfb_ref[...])


def _const_spec(shape):
    """Full-array block with a grid-invariant index map (DMA'd once)."""
    if len(shape) == 2:
        return pl.BlockSpec(shape, lambda l: (0, 0))
    return pl.BlockSpec(shape, lambda l: (0, 0, 0))


def encoder_stack(x, mask, p, n_layers, heads):
    """x: (B, S, D) f32, mask: (B, 1, S) f32. Runs all N layers + final norm."""
    B, S, D = x.shape
    d_ff = 4 * D
    x2d = x.reshape(B * S, D)

    out2d = pl.pallas_call(
        functools.partial(encoder_stack_kernel, heads=heads, batch=B, seq=S),
        out_shape=jax.ShapeDtypeStruct((B * S, D), jnp.float32),
        grid=(n_layers,),
        in_specs=[
            _const_spec((B * S, D)),                        # x
            _const_spec((B, 1, S)),                         # mask
            _const_spec((1, D)), _const_spec((1, D)),       # norm_1 alpha, bias
            _const_spec((D, 3 * D)), _const_spec((1, 3 * D)),  # fused Wqkv, bqkv
            _const_spec((heads, D // heads, D)),            # Wo split per head
            _const_spec((1, D)),                            # bo
            _const_spec((1, D)), _const_spec((1, D)),       # norm_2 alpha, bias
            _const_spec((D, d_ff)), _const_spec((1, d_ff)),  # W1, b1
            _const_spec((d_ff, D)), _const_spec((1, D)),    # W2, b2
            _const_spec((1, D)), _const_spec((1, D)),       # final norm alpha, bias
        ],
        out_specs=_const_spec((B * S, D)),
        scratch_shapes=[pltpu.VMEM((B * S, D), jnp.float32)],
        compiler_params=pltpu.CompilerParams(
            dimension_semantics=("arbitrary",)),
    )(x2d, mask,
      p["n1_alpha"], p["n1_bias"],
      p["wqkv"], p["bqkv"],
      p["wo_heads"], p["bo"],
      p["n2_alpha"], p["n2_bias"],
      p["w1"], p["b1"], p["w2"], p["b2"],
      p["nf_alpha"], p["nf_bias"])
    return out2d.reshape(B, S, D)


def make_positional_encoding(max_seq_len, d_model):
    # Reproduces the (idiosyncratic) reference formula exactly:
    #   pe[pos, i]   = sin(pos / 10000 ** (2*i / d_model))
    #   pe[pos, i+1] = cos(pos / 10000 ** (2*i / d_model))   for even i
    pos = jnp.arange(max_seq_len, dtype=jnp.float32)[:, None]        # (L, 1)
    i_even = jnp.arange(0, d_model, 2, dtype=jnp.float32)[None, :]   # (1, D/2)
    div = jnp.power(10000.0, 2.0 * i_even / d_model)
    pe = jnp.zeros((max_seq_len, d_model), dtype=jnp.float32)
    pe = pe.at[:, 0::2].set(jnp.sin(pos / div))
    pe = pe.at[:, 1::2].set(jnp.cos(pos / div))
    return pe


def init_params(key, vocab_size, d_model, heads):
    d_ff = 4 * d_model
    keys = jax.random.split(key, 16)
    s = 0.05
    embed = jax.random.normal(keys[0], (vocab_size, d_model), jnp.float32)
    embed = embed.at[0].set(0.0)  # padding_idx=0 row is zero-initialized
    wq = s * jax.random.normal(keys[1], (d_model, d_model), jnp.float32)
    bq = s * jax.random.normal(keys[2], (1, d_model), jnp.float32)
    wk = s * jax.random.normal(keys[3], (d_model, d_model), jnp.float32)
    bk = s * jax.random.normal(keys[4], (1, d_model), jnp.float32)
    wv = s * jax.random.normal(keys[5], (d_model, d_model), jnp.float32)
    bv = s * jax.random.normal(keys[6], (1, d_model), jnp.float32)
    wo = s * jax.random.normal(keys[7], (d_model, d_model), jnp.float32)
    p = {
        "embed": embed,
        # Single shared EncoderLayer (get_clones shares the module instance).
        "n1_alpha": jnp.ones((1, d_model), jnp.float32),
        "n1_bias": jnp.zeros((1, d_model), jnp.float32),
        # Fused QKV projection (built once at init).
        "wqkv": jnp.concatenate([wq, wk, wv], axis=1),          # (D, 3D)
        "bqkv": jnp.concatenate([bq, bk, bv], axis=1),          # (1, 3D)
        # Output projection split per head: (heads, d_k, D).
        "wo_heads": wo.reshape(heads, d_model // heads, d_model),
        "bo": s * jax.random.normal(keys[8], (1, d_model), jnp.float32),
        "n2_alpha": jnp.ones((1, d_model), jnp.float32),
        "n2_bias": jnp.zeros((1, d_model), jnp.float32),
        "w1": s * jax.random.normal(keys[9], (d_model, d_ff), jnp.float32),
        "b1": s * jax.random.normal(keys[10], (1, d_ff), jnp.float32),
        "w2": s * jax.random.normal(keys[11], (d_ff, d_model), jnp.float32),
        "b2": s * jax.random.normal(keys[12], (1, d_model), jnp.float32),
        # final NormLayer
        "nf_alpha": jnp.ones((1, d_model), jnp.float32),
        "nf_bias": jnp.zeros((1, d_model), jnp.float32),
    }
    return p


def encoder_forward(src, mask, params, pe_table, d_model, n_layers, heads):
    # Glue in plain JAX: embedding gather, sqrt(d_model) scale, PE add.
    # TODO(synk): reference PositionalEncoder.forward calls a nonexistent
    # self.embedding and wraps pe in torch.tensor(...); implemented the
    # intended x*sqrt(d_model) + pe[:seq_len] semantics.
    x = jnp.take(params["embed"], src, axis=0)                 # (B, S, D)
    seq_len = x.shape[1]
    x = x * math.sqrt(d_model) + pe_table[None, :seq_len, :]
    # All N layers (shared weights) + final norm run in a single fused kernel.
    return encoder_stack(x, mask, params, n_layers, heads)


if __name__ == "__main__":
    vocab_size = 16
    d_model = 32
    n_layers = 2
    heads = 4
    batch = 2
    seq_len = 8

    key = jax.random.PRNGKey(0)
    k_param, k_src = jax.random.split(key)
    params = init_params(k_param, vocab_size, d_model, heads)
    pe_table = make_positional_encoding(80, d_model)

    src = jax.random.randint(k_src, (batch, seq_len), 0, vocab_size,
                             dtype=jnp.int32)
    # mask: (B, 1, S); mask out the last two positions of batch element 1.
    mask = jnp.ones((batch, 1, seq_len), jnp.float32)
    mask = mask.at[1, 0, -2:].set(0.0)

    out = encoder_forward(src, mask, params, pe_table,
                          d_model, n_layers, heads)
    out = jax.block_until_ready(out)
    assert out.shape == (batch, seq_len, d_model)
    assert bool(jnp.all(jnp.isfinite(out)))
    print("KERNEL_OK")
</pallas_src>

<mosaic_0001>
module attributes {stable_mosaic.version = 11 : i64} {
  func.func @encoder_stack_kernel(%arg0: i32, %arg1: memref<16x32xf32, #tpu.memory_space<vmem>>, %arg2: memref<2x1x8xf32, #tpu.memory_space<vmem>>, %arg3: memref<1x32xf32, #tpu.memory_space<vmem>>, %arg4: memref<1x32xf32, #tpu.memory_space<vmem>>, %arg5: memref<32x96xf32, #tpu.memory_space<vmem>>, %arg6: memref<1x96xf32, #tpu.memory_space<vmem>>, %arg7: memref<4x8x32xf32, #tpu.memory_space<vmem>>, %arg8: memref<1x32xf32, #tpu.memory_space<vmem>>, %arg9: memref<1x32xf32, #tpu.memory_space<vmem>>, %arg10: memref<1x32xf32, #tpu.memory_space<vmem>>, %arg11: memref<32x128xf32, #tpu.memory_space<vmem>>, %arg12: memref<1x128xf32, #tpu.memory_space<vmem>>, %arg13: memref<128x32xf32, #tpu.memory_space<vmem>>, %arg14: memref<1x32xf32, #tpu.memory_space<vmem>>, %arg15: memref<1x32xf32, #tpu.memory_space<vmem>>, %arg16: memref<1x32xf32, #tpu.memory_space<vmem>>, %arg17: memref<16x32xf32, #tpu.memory_space<vmem>>, %arg18: memref<16x32xf32, #tpu.memory_space<vmem>>) attributes {dimension_semantics = [#tpu.dimension_semantics<arbitrary>], iteration_bounds = array<i64: 2>, scalar_prefetch = 0 : i64, scratch_operands = 1 : i64, tpu.core_type = #tpu.core_type<tc>, window_params = [{pipeline_mode = #tpu.pipeline_mode<synchronous>, transform_indices = @transform_0, window_bounds = array<i64: 16, 32>}, {pipeline_mode = #tpu.pipeline_mode<synchronous>, transform_indices = @transform_1, window_bounds = array<i64: 2, 1, 8>}, {pipeline_mode = #tpu.pipeline_mode<synchronous>, transform_indices = @transform_2, window_bounds = array<i64: 1, 32>}, {pipeline_mode = #tpu.pipeline_mode<synchronous>, transform_indices = @transform_3, window_bounds = array<i64: 1, 32>}, {pipeline_mode = #tpu.pipeline_mode<synchronous>, transform_indices = @transform_4, window_bounds = array<i64: 32, 96>}, {pipeline_mode = #tpu.pipeline_mode<synchronous>, transform_indices = @transform_5, window_bounds = array<i64: 1, 96>}, {pipeline_mode = #tpu.pipeline_mode<synchronous>, transform_indices = @transform_6, window_bounds = array<i64: 4, 8, 32>}, {pipeline_mode = #tpu.pipeline_mode<synchronous>, transform_indices = @transform_7, window_bounds = array<i64: 1, 32>}, {pipeline_mode = #tpu.pipeline_mode<synchronous>, transform_indices = @transform_8, window_bounds = array<i64: 1, 32>}, {pipeline_mode = #tpu.pipeline_mode<synchronous>, transform_indices = @transform_9, window_bounds = array<i64: 1, 32>}, {pipeline_mode = #tpu.pipeline_mode<synchronous>, transform_indices = @transform_10, window_bounds = array<i64: 32, 128>}, {pipeline_mode = #tpu.pipeline_mode<synchronous>, transform_indices = @transform_11, window_bounds = array<i64: 1, 128>}, {pipeline_mode = #tpu.pipeline_mode<synchronous>, transform_indices = @transform_12, window_bounds = array<i64: 128, 32>}, {pipeline_mode = #tpu.pipeline_mode<synchronous>, transform_indices = @transform_13, window_bounds = array<i64: 1, 32>}, {pipeline_mode = #tpu.pipeline_mode<synchronous>, transform_indices = @transform_14, window_bounds = array<i64: 1, 32>}, {pipeline_mode = #tpu.pipeline_mode<synchronous>, transform_indices = @transform_15, window_bounds = array<i64: 1, 32>}, {pipeline_mode = #tpu.pipeline_mode<synchronous>, transform_indices = @transform_16, window_bounds = array<i64: 16, 32>}]} {
    %c0_i32 = arith.constant 0 : i32
    %0 = arith.cmpi eq, %arg0, %c0_i32 : i32
    %1 = arith.extui %0 : i1 to i32
    %c0_i32_0 = arith.constant 0 : i32
    %2 = arith.cmpi ne, %1, %c0_i32_0 : i32
    scf.if %2 {
      %c0_66 = arith.constant 0 : index
      %c0_67 = arith.constant 0 : index
      %187 = vector.load %arg1[%c0_66, %c0_67] : memref<16x32xf32, #tpu.memory_space<vmem>>, vector<16x32xf32>
      %c0_68 = arith.constant 0 : index
      %c0_69 = arith.constant 0 : index
      %188 = vector.load %arg18[%c0_68, %c0_69] : memref<16x32xf32, #tpu.memory_space<vmem>>, vector<16x32xf32>
      tpu.vector_store %arg18[%c0_68, %c0_69], %187 {strides = array<i32>} : memref<16x32xf32, #tpu.memory_space<vmem>>, vector<16x32xf32>,
    } else {
    }
    %c0 = arith.constant 0 : index
    %c0_1 = arith.constant 0 : index
    %3 = vector.load %arg18[%c0, %c0_1] : memref<16x32xf32, #tpu.memory_space<vmem>>, vector<16x32xf32>
    %c0_2 = arith.constant 0 : index
    %c0_3 = arith.constant 0 : index
    %c0_4 = arith.constant 0 : index
    %4 = vector.load %arg2[%c0_2, %c0_3, %c0_4] : memref<2x1x8xf32, #tpu.memory_space<vmem>>, vector<2x1x8xf32>
    %cst = arith.constant 0.000000e+00 : f32
    %5 = vector.broadcast %cst : f32 to vector<2x1x8xf32>
    %6 = arith.cmpf oeq, %4, %5 : vector<2x1x8xf32>
    %cst_5 = arith.constant -1.000000e+09 : f32
    %cst_6 = arith.constant 0.000000e+00 : f32
    %7 = vector.broadcast %cst_5 : f32 to vector<2x1x8xf32>
    %8 = vector.broadcast %cst_6 : f32 to vector<2x1x8xf32>
    %9 = arith.select %6, %7, %8 : vector<2x1x8xi1>, vector<2x1x8xf32>
    %c0_7 = arith.constant 0 : index
    %c0_8 = arith.constant 0 : index
    %10 = vector.load %arg3[%c0_7, %c0_8] : memref<1x32xf32, #tpu.memory_space<vmem>>, vector<1x32xf32>
    %c0_9 = arith.constant 0 : index
    %c0_10 = arith.constant 0 : index
    %11 = vector.load %arg4[%c0_9, %c0_10] : memref<1x32xf32, #tpu.memory_space<vmem>>, vector<1x32xf32>
    %cst_11 = arith.constant dense<0.000000e+00> : vector<16xf32>
    %12 = vector.multi_reduction <add>, %3, %cst_11 [1] : vector<16x32xf32> to vector<16xf32>
    %13 = vector.shape_cast %12 : vector<16xf32> to vector<16x1xf32>
    %cst_12 = arith.constant 3.200000e+01 : f32
    %14 = vector.broadcast %cst_12 : f32 to vector<16x1xf32>
    %15 = arith.divf %13, %14 : vector<16x1xf32>
    %16 = vector.broadcast %15 : vector<16x1xf32> to vector<16x32xf32>
    %17 = arith.subf %3, %16 : vector<16x32xf32>
    %18 = arith.mulf %17, %17 : vector<16x32xf32>
    %cst_13 = arith.constant dense<0.000000e+00> : vector<16xf32>
    %19 = vector.multi_reduction <add>, %18, %cst_13 [1] : vector<16x32xf32> to vector<16xf32>
    %20 = vector.shape_cast %19 : vector<16xf32> to vector<16x1xf32>
    %cst_14 = arith.constant 0.0322580636 : f32
    %21 = vector.broadcast %cst_14 : f32 to vector<16x1xf32>
    %22 = arith.mulf %20, %21 : vector<16x1xf32>
    %23 = math.sqrt %22 : vector<16x1xf32>
    %cst_15 = arith.constant 9.99999997E-7 : f32
    %24 = vector.broadcast %cst_15 : f32 to vector<16x1xf32>
    %25 = arith.addf %23, %24 : vector<16x1xf32>
    %26 = tpu.reciprocal %25 {approx = true} : vector<16x1xf32> -> vector<16x1xf32>
    %27 = vector.broadcast %15 : vector<16x1xf32> to vector<16x32xf32>
    %28 = arith.subf %3, %27 : vector<16x32xf32>
    %29 = vector.broadcast %10 : vector<1x32xf32> to vector<16x32xf32>
    %30 = arith.mulf %29, %28 : vector<16x32xf32>
    %31 = vector.broadcast %26 : vector<16x1xf32> to vector<16x32xf32>
    %32 = arith.mulf %30, %31 : vector<16x32xf32>
    %33 = vector.broadcast %11 : vector<1x32xf32> to vector<16x32xf32>
    %34 = arith.addf %32, %33 : vector<16x32xf32>
    %c0_16 = arith.constant 0 : index
    %c0_17 = arith.constant 0 : index
    %35 = vector.load %arg5[%c0_16, %c0_17] : memref<32x96xf32, #tpu.memory_space<vmem>>, vector<32x96xf32>
    %cst_18 = arith.constant dense<0.000000e+00> : vector<16x96xf32>
    %36 = tpu.matmul %34, %35, %cst_18 {dimension_numbers = #tpu.dot_dimension_numbers<[1], [0], [0], [1], [0, 0, 1, 1], [], []>} : vector<16x32xf32>, vector<32x96xf32>, vector<16x96xf32> -> vector<16x96xf32>
    %c0_19 = arith.constant 0 : index
    %c0_20 = arith.constant 0 : index
    %37 = vector.load %arg6[%c0_19, %c0_20] : memref<1x96xf32, #tpu.memory_space<vmem>>, vector<1x96xf32>
    %38 = vector.broadcast %37 : vector<1x96xf32> to vector<16x96xf32>
    %39 = arith.addf %36, %38 : vector<16x96xf32>
    %40 = vector.extract_strided_slice %39 {offsets = [0, 0], sizes = [8, 96], strides = [1, 1]} : vector<16x96xf32> to vector<8x96xf32>
    %41 = vector.extract_strided_slice %40 {offsets = [0, 0], sizes = [8, 8], strides = [1, 1]} : vector<8x96xf32> to vector<8x8xf32>
    %42 = vector.extract_strided_slice %40 {offsets = [0, 8], sizes = [8, 8], strides = [1, 1]} : vector<8x96xf32> to vector<8x8xf32>
    %43 = vector.extract_strided_slice %40 {offsets = [0, 16], sizes = [8, 8], strides = [1, 1]} : vector<8x96xf32> to vector<8x8xf32>
    %44 = vector.extract_strided_slice %40 {offsets = [0, 24], sizes = [8, 8], strides = [1, 1]} : vector<8x96xf32> to vector<8x8xf32>
    %45 = vector.shape_cast %41 : vector<8x8xf32> to vector<1x8x8xf32>
    %46 = vector.shape_cast %42 : vector<8x8xf32> to vector<1x8x8xf32>
    %47 = vector.shape_cast %43 : vector<8x8xf32> to vector<1x8x8xf32>
    %48 = vector.shape_cast %44 : vector<8x8xf32> to vector<1x8x8xf32>
    %49 = tpu.concatenate %45, %46, %47, %48 in 0 : vector<1x8x8xf32>, vector<1x8x8xf32>, vector<1x8x8xf32>, vector<1x8x8xf32> -> vector<4x8x8xf32>
    %50 = vector.extract_strided_slice %40 {offsets = [0, 32], sizes = [8, 8], strides = [1, 1]} : vector<8x96xf32> to vector<8x8xf32>
    %51 = vector.extract_strided_slice %40 {offsets = [0, 40], sizes = [8, 8], strides = [1, 1]} : vector<8x96xf32> to vector<8x8xf32>
    %52 = vector.extract_strided_slice %40 {offsets = [0, 48], sizes = [8, 8], strides = [1, 1]} : vector<8x96xf32> to vector<8x8xf32>
    %53 = vector.extract_strided_slice %40 {offsets = [0, 56], sizes = [8, 8], strides = [1, 1]} : vector<8x96xf32> to vector<8x8xf32>
    %54 = vector.shape_cast %50 : vector<8x8xf32> to vector<1x8x8xf32>
    %55 = vector.shape_cast %51 : vector<8x8xf32> to vector<1x8x8xf32>
    %56 = vector.shape_cast %52 : vector<8x8xf32> to vector<1x8x8xf32>
    %57 = vector.shape_cast %53 : vector<8x8xf32> to vector<1x8x8xf32>
    %58 = tpu.concatenate %54, %55, %56, %57 in 0 : vector<1x8x8xf32>, vector<1x8x8xf32>, vector<1x8x8xf32>, vector<1x8x8xf32> -> vector<4x8x8xf32>
    %59 = vector.extract_strided_slice %40 {offsets = [0, 64], sizes = [8, 8], strides = [1, 1]} : vector<8x96xf32> to vector<8x8xf32>
    %60 = vector.extract_strided_slice %40 {offsets = [0, 72], sizes = [8, 8], strides = [1, 1]} : vector<8x96xf32> to vector<8x8xf32>
    %61 = vector.extract_strided_slice %40 {offsets = [0, 80], sizes = [8, 8], strides = [1, 1]} : vector<8x96xf32> to vector<8x8xf32>
    %62 = vector.extract_strided_slice %40 {offsets = [0, 88], sizes = [8, 8], strides = [1, 1]} : vector<8x96xf32> to vector<8x8xf32>
    %63 = vector.shape_cast %59 : vector<8x8xf32> to vector<1x8x8xf32>
    %64 = vector.shape_cast %60 : vector<8x8xf32> to vector<1x8x8xf32>
    %65 = vector.shape_cast %61 : vector<8x8xf32> to vector<1x8x8xf32>
    %66 = vector.shape_cast %62 : vector<8x8xf32> to vector<1x8x8xf32>
    %67 = tpu.concatenate %63, %64, %65, %66 in 0 : vector<1x8x8xf32>, vector<1x8x8xf32>, vector<1x8x8xf32>, vector<1x8x8xf32> -> vector<4x8x8xf32>
    "tpu.trace_start"() <{level = 10 : i32, message = "hqd,hkd->hqk"}> : () -> ()
    %cst_21 = arith.constant dense<0.000000e+00> : vector<4x8x8xf32>
    %68 = tpu.matmul %49, %58, %cst_21 {dimension_numbers = #tpu.dot_dimension_numbers<[2], [2], [1], [1], [0, 0, 0, 1, 1, 1], [0], [0]>} : vector<4x8x8xf32>, vector<4x8x8xf32>, vector<4x8x8xf32> -> vector<4x8x8xf32>
    "tpu.trace_stop"() : () -> ()
    %cst_22 = arith.constant 0.353553385 : f32
    %69 = vector.broadcast %cst_22 : f32 to vector<4x8x8xf32>
    %70 = arith.mulf %68, %69 : vector<4x8x8xf32>
    %71 = vector.extract_strided_slice %9 {offsets = [0, 0, 0], sizes = [1, 1, 8], strides = [1, 1, 1]} : vector<2x1x8xf32> to vector<1x1x8xf32>
    %72 = vector.shape_cast %71 : vector<1x1x8xf32> to vector<1x8xf32>
    %73 = vector.shape_cast %72 : vector<1x8xf32> to vector<1x1x8xf32>
    %74 = vector.broadcast %73 : vector<1x1x8xf32> to vector<4x8x8xf32>
    %75 = arith.addf %70, %74 : vector<4x8x8xf32>
    %cst_23 = arith.constant dense<0xFF800000> : vector<4x8xf32>
    %76 = vector.multi_reduction <maximumf>, %75, %cst_23 [2] : vector<4x8x8xf32> to vector<4x8xf32>
    %77 = vector.shape_cast %76 : vector<4x8xf32> to vector<4x8x1xf32>
    %78 = vector.broadcast %77 : vector<4x8x1xf32> to vector<4x8x8xf32>
    %79 = arith.subf %75, %78 : vector<4x8x8xf32>
    %80 = math.exp %79 : vector<4x8x8xf32>
    %cst_24 = arith.constant dense<0.000000e+00> : vector<4x8xf32>
    %81 = vector.multi_reduction <add>, %80, %cst_24 [2] : vector<4x8x8xf32> to vector<4x8xf32>
    %82 = vector.shape_cast %81 : vector<4x8xf32> to vector<4x8x1xf32>
    %83 = tpu.reciprocal %82 {approx = true} : vector<4x8x1xf32> -> vector<4x8x1xf32>
    %84 = vector.broadcast %83 : vector<4x8x1xf32> to vector<4x8x8xf32>
    %85 = arith.mulf %80, %84 : vector<4x8x8xf32>
    "tpu.trace_start"() <{level = 10 : i32, message = "hqk,hkd->hqd"}> : () -> ()
    %cst_25 = arith.constant dense<0.000000e+00> : vector<4x8x8xf32>
    %86 = tpu.matmul %85, %67, %cst_25 {dimension_numbers = #tpu.dot_dimension_numbers<[2], [1], [1], [2], [0, 0, 0, 1, 1, 2], [0], [0]>} : vector<4x8x8xf32>, vector<4x8x8xf32>, vector<4x8x8xf32> -> vector<4x8x8xf32>
    "tpu.trace_stop"() : () -> ()
    %c0_26 = arith.constant 0 : index
    %c0_27 = arith.constant 0 : index
    %c0_28 = arith.constant 0 : index
    %87 = vector.load %arg7[%c0_26, %c0_27, %c0_28] : memref<4x8x32xf32, #tpu.memory_space<vmem>>, vector<4x8x32xf32>
    "tpu.trace_start"() <{level = 10 : i32, message = "hqd,hdn->hqn"}> : () -> ()
    %cst_29 = arith.constant dense<0.000000e+00> : vector<4x8x32xf32>
    %88 = tpu.matmul %86, %87, %cst_29 {dimension_numbers = #tpu.dot_dimension_numbers<[2], [1], [1], [2], [0, 0, 0, 1, 1, 2], [0], [0]>} : vector<4x8x8xf32>, vector<4x8x32xf32>, vector<4x8x32xf32> -> vector<4x8x32xf32>
    "tpu.trace_stop"() : () -> ()
    %cst_30 = arith.constant dense<0.000000e+00> : vector<8x32xf32>
    %89 = vector.multi_reduction <add>, %88, %cst_30 [0] : vector<4x8x32xf32> to vector<8x32xf32>
    %90 = vector.extract_strided_slice %39 {offsets = [8, 0], sizes = [8, 96], strides = [1, 1]} : vector<16x96xf32> to vector<8x96xf32>
    %91 = vector.extract_strided_slice %90 {offsets = [0, 0], sizes = [8, 8], strides = [1, 1]} : vector<8x96xf32> to vector<8x8xf32>
    %92 = vector.extract_strided_slice %90 {offsets = [0, 8], sizes = [8, 8], strides = [1, 1]} : vector<8x96xf32> to vector<8x8xf32>
    %93 = vector.extract_strided_slice %90 {offsets = [0, 16], sizes = [8, 8], strides = [1, 1]} : vector<8x96xf32> to vector<8x8xf32>
    %94 = vector.extract_strided_slice %90 {offsets = [0, 24], sizes = [8, 8], strides = [1, 1]} : vector<8x96xf32> to vector<8x8xf32>
    %95 = vector.shape_cast %91 : vector<8x8xf32> to vector<1x8x8xf32>
    %96 = vector.shape_cast %92 : vector<8x8xf32> to vector<1x8x8xf32>
    %97 = vector.shape_cast %93 : vector<8x8xf32> to vector<1x8x8xf32>
    %98 = vector.shape_cast %94 : vector<8x8xf32> to vector<1x8x8xf32>
    %99 = tpu.concatenate %95, %96, %97, %98 in 0 : vector<1x8x8xf32>, vector<1x8x8xf32>, vector<1x8x8xf32>, vector<1x8x8xf32> -> vector<4x8x8xf32>
    %100 = vector.extract_strided_slice %90 {offsets = [0, 32], sizes = [8, 8], strides = [1, 1]} : vector<8x96xf32> to vector<8x8xf32>
    %101 = vector.extract_strided_slice %90 {offsets = [0, 40], sizes = [8, 8], strides = [1, 1]} : vector<8x96xf32> to vector<8x8xf32>
    %102 = vector.extract_strided_slice %90 {offsets = [0, 48], sizes = [8, 8], strides = [1, 1]} : vector<8x96xf32> to vector<8x8xf32>
    %103 = vector.extract_strided_slice %90 {offsets = [0, 56], sizes = [8, 8], strides = [1, 1]} : vector<8x96xf32> to vector<8x8xf32>
    %104 = vector.shape_cast %100 : vector<8x8xf32> to vector<1x8x8xf32>
    %105 = vector.shape_cast %101 : vector<8x8xf32> to vector<1x8x8xf32>
    %106 = vector.shape_cast %102 : vector<8x8xf32> to vector<1x8x8xf32>
    %107 = vector.shape_cast %103 : vector<8x8xf32> to vector<1x8x8xf32>
    %108 = tpu.concatenate %104, %105, %106, %107 in 0 : vector<1x8x8xf32>, vector<1x8x8xf32>, vector<1x8x8xf32>, vector<1x8x8xf32> -> vector<4x8x8xf32>
    %109 = vector.extract_strided_slice %90 {offsets = [0, 64], sizes = [8, 8], strides = [1, 1]} : vector<8x96xf32> to vector<8x8xf32>
    %110 = vector.extract_strided_slice %90 {offsets = [0, 72], sizes = [8, 8], strides = [1, 1]} : vector<8x96xf32> to vector<8x8xf32>
    %111 = vector.extract_strided_slice %90 {offsets = [0, 80], sizes = [8, 8], strides = [1, 1]} : vector<8x96xf32> to vector<8x8xf32>
    %112 = vector.extract_strided_slice %90 {offsets = [0, 88], sizes = [8, 8], strides = [1, 1]} : vector<8x96xf32> to vector<8x8xf32>
    %113 = vector.shape_cast %109 : vector<8x8xf32> to vector<1x8x8xf32>
    %114 = vector.shape_cast %110 : vector<8x8xf32> to vector<1x8x8xf32>
    %115 = vector.shape_cast %111 : vector<8x8xf32> to vector<1x8x8xf32>
    %116 = vector.shape_cast %112 : vector<8x8xf32> to vector<1x8x8xf32>
    %117 = tpu.concatenate %113, %114, %115, %116 in 0 : vector<1x8x8xf32>, vector<1x8x8xf32>, vector<1x8x8xf32>, vector<1x8x8xf32> -> vector<4x8x8xf32>
    "tpu.trace_start"() <{level = 10 : i32, message = "hqd,hkd->hqk"}> : () -> ()
    %cst_31 = arith.constant dense<0.000000e+00> : vector<4x8x8xf32>
    %118 = tpu.matmul %99, %108, %cst_31 {dimension_numbers = #tpu.dot_dimension_numbers<[2], [2], [1], [1], [0, 0, 0, 1, 1, 1], [0], [0]>} : vector<4x8x8xf32>, vector<4x8x8xf32>, vector<4x8x8xf32> -> vector<4x8x8xf32>
    "tpu.trace_stop"() : () -> ()
    %cst_32 = arith.constant 0.353553385 : f32
    %119 = vector.broadcast %cst_32 : f32 to vector<4x8x8xf32>
    %120 = arith.mulf %118, %119 : vector<4x8x8xf32>
    %121 = vector.extract_strided_slice %9 {offsets = [1, 0, 0], sizes = [1, 1, 8], strides = [1, 1, 1]} : vector<2x1x8xf32> to vector<1x1x8xf32>
    %122 = vector.shape_cast %121 : vector<1x1x8xf32> to vector<1x8xf32>
    %123 = vector.shape_cast %122 : vector<1x8xf32> to vector<1x1x8xf32>
    %124 = vector.broadcast %123 : vector<1x1x8xf32> to vector<4x8x8xf32>
    %125 = arith.addf %120, %124 : vector<4x8x8xf32>
    %cst_33 = arith.constant dense<0xFF800000> : vector<4x8xf32>
    %126 = vector.multi_reduction <maximumf>, %125, %cst_33 [2] : vector<4x8x8xf32> to vector<4x8xf32>
    %127 = vector.shape_cast %126 : vector<4x8xf32> to vector<4x8x1xf32>
    %128 = vector.broadcast %127 : vector<4x8x1xf32> to vector<4x8x8xf32>
    %129 = arith.subf %125, %128 : vector<4x8x8xf32>
    %130 = math.exp %129 : vector<4x8x8xf32>
    %cst_34 = arith.constant dense<0.000000e+00> : vector<4x8xf32>
    %131 = vector.multi_reduction <add>, %130, %cst_34 [2] : vector<4x8x8xf32> to vector<4x8xf32>
    %132 = vector.shape_cast %131 : vector<4x8xf32> to vector<4x8x1xf32>
    %133 = tpu.reciprocal %132 {approx = true} : vector<4x8x1xf32> -> vector<4x8x1xf32>
    %134 = vector.broadcast %133 : vector<4x8x1xf32> to vector<4x8x8xf32>
    %135 = arith.mulf %130, %134 : vector<4x8x8xf32>
    "tpu.trace_start"() <{level = 10 : i32, message = "hqk,hkd->hqd"}> : () -> ()
    %cst_35 = arith.constant dense<0.000000e+00> : vector<4x8x8xf32>
    %136 = tpu.matmul %135, %117, %cst_35 {dimension_numbers = #tpu.dot_dimension_numbers<[2], [1], [1], [2], [0, 0, 0, 1, 1, 2], [0], [0]>} : vector<4x8x8xf32>, vector<4x8x8xf32>, vector<4x8x8xf32> -> vector<4x8x8xf32>
    "tpu.trace_stop"() : () -> ()
    %c0_36 = arith.constant 0 : index
    %c0_37 = arith.constant 0 : index
    %c0_38 = arith.constant 0 : index
    %137 = vector.load %arg7[%c0_36, %c0_37, %c0_38] : memref<4x8x32xf32, #tpu.memory_space<vmem>>, vector<4x8x32xf32>
    "tpu.trace_start"() <{level = 10 : i32, message = "hqd,hdn->hqn"}> : () -> ()
    %cst_39 = arith.constant dense<0.000000e+00> : vector<4x8x32xf32>
    %138 = tpu.matmul %136, %137, %cst_39 {dimension_numbers = #tpu.dot_dimension_numbers<[2], [1], [1], [2], [0, 0, 0, 1, 1, 2], [0], [0]>} : vector<4x8x8xf32>, vector<4x8x32xf32>, vector<4x8x32xf32> -> vector<4x8x32xf32>
    "tpu.trace_stop"() : () -> ()
    %cst_40 = arith.constant dense<0.000000e+00> : vector<8x32xf32>
    %139 = vector.multi_reduction <add>, %138, %cst_40 [0] : vector<4x8x32xf32> to vector<8x32xf32>
    %140 = tpu.concatenate %89, %139 in 0 : vector<8x32xf32>, vector<8x32xf32> -> vector<16x32xf32>
    %c0_41 = arith.constant 0 : index
    %c0_42 = arith.constant 0 : index
    %141 = vector.load %arg8[%c0_41, %c0_42] : memref<1x32xf32, #tpu.memory_space<vmem>>, vector<1x32xf32>
    %142 = vector.broadcast %141 : vector<1x32xf32> to vector<16x32xf32>
    %143 = arith.addf %140, %142 : vector<16x32xf32>
    %144 = arith.addf %3, %143 : vector<16x32xf32>
    %c0_43 = arith.constant 0 : index
    %c0_44 = arith.constant 0 : index
    %145 = vector.load %arg9[%c0_43, %c0_44] : memref<1x32xf32, #tpu.memory_space<vmem>>, vector<1x32xf32>
    %c0_45 = arith.constant 0 : index
    %c0_46 = arith.constant 0 : index
    %146 = vector.load %arg10[%c0_45, %c0_46] : memref<1x32xf32, #tpu.memory_space<vmem>>, vector<1x32xf32>
    %cst_47 = arith.constant dense<0.000000e+00> : vector<16xf32>
    %147 = vector.multi_reduction <add>, %144, %cst_47 [1] : vector<16x32xf32> to vector<16xf32>
    %148 = vector.shape_cast %147 : vector<16xf32> to vector<16x1xf32>
    %cst_48 = arith.constant 3.200000e+01 : f32
    %149 = vector.broadcast %cst_48 : f32 to vector<16x1xf32>
    %150 = arith.divf %148, %149 : vector<16x1xf32>
    %151 = vector.broadcast %150 : vector<16x1xf32> to vector<16x32xf32>
    %152 = arith.subf %144, %151 : vector<16x32xf32>
    %153 = arith.mulf %152, %152 : vector<16x32xf32>
    %cst_49 = arith.constant dense<0.000000e+00> : vector<16xf32>
    %154 = vector.multi_reduction <add>, %153, %cst_49 [1] : vector<16x32xf32> to vector<16xf32>
    %155 = vector.shape_cast %154 : vector<16xf32> to vector<16x1xf32>
    %cst_50 = arith.constant 0.0322580636 : f32
    %156 = vector.broadcast %cst_50 : f32 to vector<16x1xf32>
    %157 = arith.mulf %155, %156 : vector<16x1xf32>
    %158 = math.sqrt %157 : vector<16x1xf32>
    %cst_51 = arith.constant 9.99999997E-7 : f32
    %159 = vector.broadcast %cst_51 : f32 to vector<16x1xf32>
    %160 = arith.addf %158, %159 : vector<16x1xf32>
    %161 = tpu.reciprocal %160 {approx = true} : vector<16x1xf32> -> vector<16x1xf32>
    %162 = vector.broadcast %150 : vector<16x1xf32> to vector<16x32xf32>
    %163 = arith.subf %144, %162 : vector<16x32xf32>
    %164 = vector.broadcast %145 : vector<1x32xf32> to vector<16x32xf32>
    %165 = arith.mulf %164, %163 : vector<16x32xf32>
    %166 = vector.broadcast %161 : vector<16x1xf32> to vector<16x32xf32>
    %167 = arith.mulf %165, %166 : vector<16x32xf32>
    %168 = vector.broadcast %146 : vector<1x32xf32> to vector<16x32xf32>
    %169 = arith.addf %167, %168 : vector<16x32xf32>
    %c0_52 = arith.constant 0 : index
    %c0_53 = arith.constant 0 : index
    %170 = vector.load %arg11[%c0_52, %c0_53] : memref<32x128xf32, #tpu.memory_space<vmem>>, vector<32x128xf32>
    %cst_54 = arith.constant dense<0.000000e+00> : vector<16x128xf32>
    %171 = tpu.matmul %169, %170, %cst_54 {dimension_numbers = #tpu.dot_dimension_numbers<[1], [0], [0], [1], [0, 0, 1, 1], [], []>} : vector<16x32xf32>, vector<32x128xf32>, vector<16x128xf32> -> vector<16x128xf32>
    %c0_55 = arith.constant 0 : index
    %c0_56 = arith.constant 0 : index
    %172 = vector.load %arg12[%c0_55, %c0_56] : memref<1x128xf32, #tpu.memory_space<vmem>>, vector<1x128xf32>
    %173 = vector.broadcast %172 : vector<1x128xf32> to vector<16x128xf32>
    %174 = arith.addf %171, %173 : vector<16x128xf32>
    %cst_57 = arith.constant 0.000000e+00 : f32
    %175 = vector.broadcast %cst_57 : f32 to vector<16x128xf32>
    %176 = arith.maximumf %174, %175 : vector<16x128xf32>
    %c0_58 = arith.constant 0 : index
    %c0_59 = arith.constant 0 : index
    %177 = vector.load %arg13[%c0_58, %c0_59] : memref<128x32xf32, #tpu.memory_space<vmem>>, vector<128x32xf32>
    %cst_60 = arith.constant dense<0.000000e+00> : vector<16x32xf32>
    %178 = tpu.matmul %176, %177, %cst_60 {dimension_numbers = #tpu.dot_dimension_numbers<[1], [0], [0], [1], [0, 0, 1, 1], [], []>} : vector<16x128xf32>, vector<128x32xf32>, vector<16x32xf32> -> vector<16x32xf32>
    %c0_61 = arith.constant 0 : index
    %c0_62 = arith.constant 0 : index
    %179 = vector.load %arg14[%c0_61, %c0_62] : memref<1x32xf32, #tpu.memory_space<vmem>>, vector<1x32xf32>
    %180 = vector.broadcast %179 : vector<1x32xf32> to vector<16x32xf32>
    %181 = arith.addf %178, %180 : vector<16x32xf32>
    %182 = arith.addf %144, %181 : vector<16x32xf32>
    %c0_63 = arith.constant 0 : index
    %c0_64 = arith.constant 0 : index
    %183 = vector.load %arg18[%c0_63, %c0_64] : memref<16x32xf32, #tpu.memory_space<vmem>>, vector<16x32xf32>
    tpu.vector_store %arg18[%c0_63, %c0_64], %182 {strides = array<i32>} : memref<16x32xf32, #tpu.memory_space<vmem>>, vector<16x32xf32>,
    %c1_i32 = arith.constant 1 : i32
    %184 = arith.cmpi eq, %arg0, %c1_i32 : i32
    %185 = arith.extui %184 : i1 to i32
    %c0_i32_65 = arith.constant 0 : i32
    %186 = arith.cmpi ne, %185, %c0_i32_65 : i32
    scf.if %186 {
      %c0_66 = arith.constant 0 : index
      %c0_67 = arith.constant 0 : index
      %187 = vector.load %arg15[%c0_66, %c0_67] : memref<1x32xf32, #tpu.memory_space<vmem>>, vector<1x32xf32>
      %c0_68 = arith.constant 0 : index
      %c0_69 = arith.constant 0 : index
      %188 = vector.load %arg16[%c0_68, %c0_69] : memref<1x32xf32, #tpu.memory_space<vmem>>, vector<1x32xf32>
      %cst_70 = arith.constant dense<0.000000e+00> : vector<16xf32>
      %189 = vector.multi_reduction <add>, %182, %cst_70 [1] : vector<16x32xf32> to vector<16xf32>
      %190 = vector.shape_cast %189 : vector<16xf32> to vector<16x1xf32>
      %cst_71 = arith.constant 3.200000e+01 : f32
      %191 = vector.broadcast %cst_71 : f32 to vector<16x1xf32>
      %192 = arith.divf %190, %191 : vector<16x1xf32>
      %193 = vector.broadcast %192 : vector<16x1xf32> to vector<16x32xf32>
      %194 = arith.subf %182, %193 : vector<16x32xf32>
      %195 = arith.mulf %194, %194 : vector<16x32xf32>
      %cst_72 = arith.constant dense<0.000000e+00> : vector<16xf32>
      %196 = vector.multi_reduction <add>, %195, %cst_72 [1] : vector<16x32xf32> to vector<16xf32>
      %197 = vector.shape_cast %196 : vector<16xf32> to vector<16x1xf32>
      %cst_73 = arith.constant 0.0322580636 : f32
      %198 = vector.broadcast %cst_73 : f32 to vector<16x1xf32>
      %199 = arith.mulf %197, %198 : vector<16x1xf32>
      %200 = math.sqrt %199 : vector<16x1xf32>
      %cst_74 = arith.constant 9.99999997E-7 : f32
      %201 = vector.broadcast %cst_74 : f32 to vector<16x1xf32>
      %202 = arith.addf %200, %201 : vector<16x1xf32>
      %203 = tpu.reciprocal %202 {approx = true} : vector<16x1xf32> -> vector<16x1xf32>
      %204 = vector.broadcast %192 : vector<16x1xf32> to vector<16x32xf32>
      %205 = arith.subf %182, %204 : vector<16x32xf32>
      %206 = vector.broadcast %187 : vector<1x32xf32> to vector<16x32xf32>
      %207 = arith.mulf %206, %205 : vector<16x32xf32>
      %208 = vector.broadcast %203 : vector<16x1xf32> to vector<16x32xf32>
      %209 = arith.mulf %207, %208 : vector<16x32xf32>
      %210 = vector.broadcast %188 : vector<1x32xf32> to vector<16x32xf32>
      %211 = arith.addf %209, %210 : vector<16x32xf32>
      %c0_75 = arith.constant 0 : index
      %c0_76 = arith.constant 0 : index
      %212 = vector.load %arg17[%c0_75, %c0_76] : memref<16x32xf32, #tpu.memory_space<vmem>>, vector<16x32xf32>
      tpu.vector_store %arg17[%c0_75, %c0_76], %211 {strides = array<i32>} : memref<16x32xf32, #tpu.memory_space<vmem>>, vector<16x32xf32>,
    } else {
    }
    return
  }
  func.func @transform_0(%arg0: i32) -> (i32, i32) {
    %c0_i32 = arith.constant 0 : i32
    %c0_i32_0 = arith.constant 0 : i32
    %c0_i32_1 = arith.constant 0 : i32
    return %c0_i32, %c0_i32_0 : i32, i32
  }
  func.func @transform_1(%arg0: i32) -> (i32, i32, i32) {
    %c0_i32 = arith.constant 0 : i32
    %c0_i32_0 = arith.constant 0 : i32
    %c0_i32_1 = arith.constant 0 : i32
    %c0_i32_2 = arith.constant 0 : i32
    return %c0_i32, %c0_i32_0, %c0_i32_1 : i32, i32, i32
  }
  func.func @transform_2(%arg0: i32) -> (i32, i32) {
    %c0_i32 = arith.constant 0 : i32
    %c0_i32_0 = arith.constant 0 : i32
    %c0_i32_1 = arith.constant 0 : i32
    return %c0_i32, %c0_i32_0 : i32, i32
  }
  func.func @transform_3(%arg0: i32) -> (i32, i32) {
    %c0_i32 = arith.constant 0 : i32
    %c0_i32_0 = arith.constant 0 : i32
    %c0_i32_1 = arith.constant 0 : i32
    return %c0_i32, %c0_i32_0 : i32, i32
  }
  func.func @transform_4(%arg0: i32) -> (i32, i32) {
    %c0_i32 = arith.constant 0 : i32
    %c0_i32_0 = arith.constant 0 : i32
    %c0_i32_1 = arith.constant 0 : i32
    return %c0_i32, %c0_i32_0 : i32, i32
  }
  func.func @transform_5(%arg0: i32) -> (i32, i32) {
    %c0_i32 = arith.constant 0 : i32
    %c0_i32_0 = arith.constant 0 : i32
    %c0_i32_1 = arith.constant 0 : i32
    return %c0_i32, %c0_i32_0 : i32, i32
  }
  func.func @transform_6(%arg0: i32) -> (i32, i32, i32) {
    %c0_i32 = arith.constant 0 : i32
    %c0_i32_0 = arith.constant 0 : i32
    %c0_i32_1 = arith.constant 0 : i32
    %c0_i32_2 = arith.constant 0 : i32
    return %c0_i32, %c0_i32_0, %c0_i32_1 : i32, i32, i32
  }
  func.func @transform_7(%arg0: i32) -> (i32, i32) {
    %c0_i32 = arith.constant 0 : i32
    %c0_i32_0 = arith.constant 0 : i32
    %c0_i32_1 = arith.constant 0 : i32
    return %c0_i32, %c0_i32_0 : i32, i32
  }
  func.func @transform_8(%arg0: i32) -> (i32, i32) {
    %c0_i32 = arith.constant 0 : i32
    %c0_i32_0 = arith.constant 0 : i32
    %c0_i32_1 = arith.constant 0 : i32
    return %c0_i32, %c0_i32_0 : i32, i32
  }
  func.func @transform_9(%arg0: i32) -> (i32, i32) {
    %c0_i32 = arith.constant 0 : i32
    %c0_i32_0 = arith.constant 0 : i32
    %c0_i32_1 = arith.constant 0 : i32
    return %c0_i32, %c0_i32_0 : i32, i32
  }
  func.func @transform_10(%arg0: i32) -> (i32, i32) {
    %c0_i32 = arith.constant 0 : i32
    %c0_i32_0 = arith.constant 0 : i32
    %c0_i32_1 = arith.constant 0 : i32
    return %c0_i32, %c0_i32_0 : i32, i32
  }
  func.func @transform_11(%arg0: i32) -> (i32, i32) {
    %c0_i32 = arith.constant 0 : i32
    %c0_i32_0 = arith.constant 0 : i32
    %c0_i32_1 = arith.constant 0 : i32
    return %c0_i32, %c0_i32_0 : i32, i32
  }
  func.func @transform_12(%arg0: i32) -> (i32, i32) {
    %c0_i32 = arith.constant 0 : i32
    %c0_i32_0 = arith.constant 0 : i32
    %c0_i32_1 = arith.constant 0 : i32
    return %c0_i32, %c0_i32_0 : i32, i32
  }
  func.func @transform_13(%arg0: i32) -> (i32, i32) {
    %c0_i32 = arith.constant 0 : i32
    %c0_i32_0 = arith.constant 0 : i32
    %c0_i32_1 = arith.constant 0 : i32
    return %c0_i32, %c0_i32_0 : i32, i32
  }
  func.func @transform_14(%arg0: i32) -> (i32, i32) {
    %c0_i32 = arith.constant 0 : i32
    %c0_i32_0 = arith.constant 0 : i32
    %c0_i32_1 = arith.constant 0 : i32
    return %c0_i32, %c0_i32_0 : i32, i32
  }
  func.func @transform_15(%arg0: i32) -> (i32, i32) {
    %c0_i32 = arith.constant 0 : i32
    %c0_i32_0 = arith.constant 0 : i32
    %c0_i32_1 = arith.constant 0 : i32
    return %c0_i32, %c0_i32_0 : i32, i32
  }
  func.func @transform_16(%arg0: i32) -> (i32, i32) {
    %c0_i32 = arith.constant 0 : i32
    %c0_i32_0 = arith.constant 0 : i32
    %c0_i32_1 = arith.constant 0 : i32
    return %c0_i32, %c0_i32_0 : i32, i32
  }
}

</mosaic_0001>

<llo_original>
// kernel: tpu_custom_call.1
$region0: #{tpu_custom_call.1}
  #allocation0 [shape = 'u32[]', space=smem, size = 0x4, offset = 0x4, fixed_abs, tag = 'smem constant byte address 0x4 - core index']
  #allocation1 [shape = 'u32[144,128]{1,0:T(1,128)}', space=vmem, size = 0x12000, scoped, tag = 'internal scratch']
  #allocation2 [shape = 'f32[16,32]{1,0:T(8,128)}', space=vmem, size = 0x2000, scoped, tag = 'scratch operand']
  %s0 = inlined_call_operand.vmem [shape: f32[16,32], index: 0, kind: input, shape index: {}]
  %s1 = inlined_call_operand.vmem [shape: f32[2,1,8], index: 1, kind: input, shape index: {}]
  %s2 = inlined_call_operand.vmem [shape: f32[1,32], index: 2, kind: input, shape index: {}]
  %s3 = inlined_call_operand.vmem [shape: f32[1,32], index: 3, kind: input, shape index: {}]
  %s4 = inlined_call_operand.vmem [shape: f32[32,96], index: 4, kind: input, shape index: {}]
  %s5 = inlined_call_operand.vmem [shape: f32[1,96], index: 5, kind: input, shape index: {}]
  %s6 = inlined_call_operand.vmem [shape: f32[4,8,32], index: 6, kind: input, shape index: {}]
  %s7 = inlined_call_operand.vmem [shape: f32[1,32], index: 7, kind: input, shape index: {}]
  %s8 = inlined_call_operand.vmem [shape: f32[1,32], index: 8, kind: input, shape index: {}]
  %s9 = inlined_call_operand.vmem [shape: f32[1,32], index: 9, kind: input, shape index: {}]
  %s10 = inlined_call_operand.vmem [shape: f32[32,128], index: 10, kind: input, shape index: {}]
  %s11 = inlined_call_operand.vmem [shape: f32[1,128], index: 11, kind: input, shape index: {}]
  %s12 = inlined_call_operand.vmem [shape: f32[128,32], index: 12, kind: input, shape index: {}]
  %s13 = inlined_call_operand.vmem [shape: f32[1,32], index: 13, kind: input, shape index: {}]
  %s14 = inlined_call_operand.vmem [shape: f32[1,32], index: 14, kind: input, shape index: {}]
  %s15 = inlined_call_operand.vmem [shape: f32[1,32], index: 15, kind: input, shape index: {}]
  %s16 = inlined_call_operand.hbm [shape: f32[16,32], index: 16, kind: output, shape index: {}]
  %s17 = sld [smem:[#allocation0]]
  $region105: #{tpu_custom_call.1} parent=0
    _
  %s19 = ssub.s32 1, %s17
  %s20 = scalar_select 0, %s19, %s17
  $region1: #{tpu_custom_call.1} parent=0
    #allocation3 [shape = 'u8[8192]{0}', space=vmem, size = 0x2000, scoped, tag = 'output window, operand 0, single buffered']
    #allocation4 [shape = 's32[2]{0}', space=sflag, size = 0x8, scoped, tag = 'scoped memory for tpu_custom_call.1']
    %21 = vsyncpa [#allocation4], 0
    loop: start=0, step=1, limit=4
    $region2: #{tpu_custom_call.1} parent=1 // loop_pre_header
      _
    $region3: #{tpu_custom_call.1} parent=1 // loop_header
      %s23 = sphi 0, %s27
      %p24 = scmp.ge.s32.totalorder %s23, 4
      %s31 = sphi 0, %s31
      %s33 = sphi 0, %s31
      %s34 = sphi 0, %s33
      %s48 = sphi 0, %s34
      %s52 = sphi 0, %s52
      %s54 = sphi 0, %s52
      %s55 = sphi 0, %s54
      %s69 = sphi 0, %s55
      %s73 = sphi 0, %s73
      %s75 = sphi 0, %s73
      %s76 = sphi 0, %s75
      %s90 = sphi 0, %s76
      %s94 = sphi 0, %s94
      %s96 = sphi 0, %s94
      %s97 = sphi 0, %s96
      %s111 = sphi 0, %s97
      %s115 = sphi 0, %s115
      %s117 = sphi 0, %s115
      %s118 = sphi 0, %s117
      %s132 = sphi 0, %s118
      %s136 = sphi 0, %s136
      %s138 = sphi 0, %s136
      %s139 = sphi 0, %s138
      %s153 = sphi 0, %s139
      %s157 = sphi 0, %s157
      %s159 = sphi 0, %s157
      %s160 = sphi 0, %s159
      %s174 = sphi 0, %s160
      %s178 = sphi 0, %s178
      %s180 = sphi 0, %s178
      %s181 = sphi 0, %s180
      %s195 = sphi 0, %s181
      %s199 = sphi 0, %s199
      %s201 = sphi 0, %s199
      %s202 = sphi 0, %s201
      %s216 = sphi 0, %s202
      %s220 = sphi 0, %s220
      %s222 = sphi 0, %s220
      %s223 = sphi 0, %s222
      %s237 = sphi 0, %s223
      %s241 = sphi 0, %s241
      %s243 = sphi 0, %s241
      %s244 = sphi 0, %s243
      %s258 = sphi 0, %s244
      %s262 = sphi 0, %s262
      %s264 = sphi 0, %s262
      %s265 = sphi 0, %s264
      %s279 = sphi 0, %s265
      %s283 = sphi 0, %s283
      %s285 = sphi 0, %s283
      %s286 = sphi 0, %s285
      %s300 = sphi 0, %s286
      %s304 = sphi 0, %s304
      %s306 = sphi 0, %s304
      %s307 = sphi 0, %s306
      %s321 = sphi 0, %s307
      %s325 = sphi 0, %s325
      %s327 = sphi 0, %s325
      %s328 = sphi 0, %s327
      %s342 = sphi 0, %s328
      %s346 = sphi 0, %s346
      %s348 = sphi 0, %s346
      %s349 = sphi 0, %s348
      %s363 = sphi 0, %s349
      %s367 = sphi 0, %s367
      %s369 = sphi 0, %s367
      %s370 = sphi 0, %s369
      %s384 = sphi 0, %s370
    $region4: #{tpu_custom_call.1} parent=1 // loop_header_branch
      %26 = sbr.rel (%p24) target = $region8
    $region5: #{tpu_custom_call.1} parent=1 // loop_body
      %s28 = ssub.s32 %s23, 1
      %s29 = ssub.s32 %s23, 2
      %s30 = sadd.s32 %s23, 1
      %s32 = sadd.s32 %s31, 1
      %p35 = scmp.eq.s32.totalorder %s23, 1
      %p36 = scmp.ne.s32.totalorder %s31, %s33
      %p37 = scmp.eq.s32.totalorder %s23, 0
      %p38 = por %p36, %p37
      %p39 = scmp.ne.s32.totalorder %s31, %s33
      %p40 = scmp.eq.s32.totalorder %s28, 1
      %p41 = por %p39, %p40
      %p42 = scmp.ne.s32.totalorder %s33, %s34
      %p43 = scmp.eq.s32.totalorder %s28, 0
      %p44 = por %p42, %p43
      %p45 = scmp.ne.s32.totalorder %s33, %s34
      %p46 = scmp.eq.s32.totalorder %s29, 1
      %p47 = por %p45, %p46
      %p49 = scmp.ne.s32.totalorder %s34, %s48
      %p50 = scmp.eq.s32.totalorder %s29, 0
      %p51 = por %p49, %p50
      %s53 = sadd.s32 %s52, 1
      %p56 = scmp.eq.s32.totalorder %s23, 1
      %p57 = scmp.ne.s32.totalorder %s52, %s54
      %p58 = scmp.eq.s32.totalorder %s23, 0
      %p59 = por %p57, %p58
      %p60 = scmp.ne.s32.totalorder %s52, %s54
      %p61 = scmp.eq.s32.totalorder %s28, 1
      %p62 = por %p60, %p61
      %p63 = scmp.ne.s32.totalorder %s54, %s55
      %p64 = scmp.eq.s32.totalorder %s28, 0
      %p65 = por %p63, %p64
      %p66 = scmp.ne.s32.totalorder %s54, %s55
      %p67 = scmp.eq.s32.totalorder %s29, 1
      %p68 = por %p66, %p67
      %p70 = scmp.ne.s32.totalorder %s55, %s69
      %p71 = scmp.eq.s32.totalorder %s29, 0
      %p72 = por %p70, %p71
      %s74 = sadd.s32 %s73, 1
      %p77 = scmp.eq.s32.totalorder %s23, 1
      %p78 = scmp.ne.s32.totalorder %s73, %s75
      %p79 = scmp.eq.s32.totalorder %s23, 0
      %p80 = por %p78, %p79
      %p81 = scmp.ne.s32.totalorder %s73, %s75
      %p82 = scmp.eq.s32.totalorder %s28, 1
      %p83 = por %p81, %p82
      %p84 = scmp.ne.s32.totalorder %s75, %s76
      %p85 = scmp.eq.s32.totalorder %s28, 0
      %p86 = por %p84, %p85
      %p87 = scmp.ne.s32.totalorder %s75, %s76
      %p88 = scmp.eq.s32.totalorder %s29, 1
      %p89 = por %p87, %p88
      %p91 = scmp.ne.s32.totalorder %s76, %s90
      %p92 = scmp.eq.s32.totalorder %s29, 0
      %p93 = por %p91, %p92
      %s95 = sadd.s32 %s94, 1
      %p98 = scmp.eq.s32.totalorder %s23, 1
      %p99 = scmp.ne.s32.totalorder %s94, %s96
      %p100 = scmp.eq.s32.totalorder %s23, 0
      %p101 = por %p99, %p100
      %p102 = scmp.ne.s32.totalorder %s94, %s96
      %p103 = scmp.eq.s32.totalorder %s28, 1
      %p104 = por %p102, %p103
      %p105 = scmp.ne.s32.totalorder %s96, %s97
      %p106 = scmp.eq.s32.totalorder %s28, 0
      %p107 = por %p105, %p106
      %p108 = scmp.ne.s32.totalorder %s96, %s97
      %p109 = scmp.eq.s32.totalorder %s29, 1
      %p110 = por %p108, %p109
      %p112 = scmp.ne.s32.totalorder %s97, %s111
      %p113 = scmp.eq.s32.totalorder %s29, 0
      %p114 = por %p112, %p113
      %s116 = sadd.s32 %s115, 1
      %p119 = scmp.eq.s32.totalorder %s23, 1
      %p120 = scmp.ne.s32.totalorder %s115, %s117
      %p121 = scmp.eq.s32.totalorder %s23, 0
      %p122 = por %p120, %p121
      %p123 = scmp.ne.s32.totalorder %s115, %s117
      %p124 = scmp.eq.s32.totalorder %s28, 1
      %p125 = por %p123, %p124
      %p126 = scmp.ne.s32.totalorder %s117, %s118
      %p127 = scmp.eq.s32.totalorder %s28, 0
      %p128 = por %p126, %p127
      %p129 = scmp.ne.s32.totalorder %s117, %s118
      %p130 = scmp.eq.s32.totalorder %s29, 1
      %p131 = por %p129, %p130
      %p133 = scmp.ne.s32.totalorder %s118, %s132
      %p134 = scmp.eq.s32.totalorder %s29, 0
      %p135 = por %p133, %p134
      %s137 = sadd.s32 %s136, 1
      %p140 = scmp.eq.s32.totalorder %s23, 1
      %p141 = scmp.ne.s32.totalorder %s136, %s138
      %p142 = scmp.eq.s32.totalorder %s23, 0
      %p143 = por %p141, %p142
      %p144 = scmp.ne.s32.totalorder %s136, %s138
      %p145 = scmp.eq.s32.totalorder %s28, 1
      %p146 = por %p144, %p145
      %p147 = scmp.ne.s32.totalorder %s138, %s139
      %p148 = scmp.eq.s32.totalorder %s28, 0
      %p149 = por %p147, %p148
      %p150 = scmp.ne.s32.totalorder %s138, %s139
      %p151 = scmp.eq.s32.totalorder %s29, 1
      %p152 = por %p150, %p151
      %p154 = scmp.ne.s32.totalorder %s139, %s153
      %p155 = scmp.eq.s32.totalorder %s29, 0
      %p156 = por %p154, %p155
      %s158 = sadd.s32 %s157, 1
      %p161 = scmp.eq.s32.totalorder %s23, 1
      %p162 = scmp.ne.s32.totalorder %s157, %s159
      %p163 = scmp.eq.s32.totalorder %s23, 0
      %p164 = por %p162, %p163
      %p165 = scmp.ne.s32.totalorder %s157, %s159
      %p166 = scmp.eq.s32.totalorder %s28, 1
      %p167 = por %p165, %p166
      %p168 = scmp.ne.s32.totalorder %s159, %s160
      %p169 = scmp.eq.s32.totalorder %s28, 0
      %p170 = por %p168, %p169
      %p171 = scmp.ne.s32.totalorder %s159, %s160
      %p172 = scmp.eq.s32.totalorder %s29, 1
      %p173 = por %p171, %p172
      %p175 = scmp.ne.s32.totalorder %s160, %s174
      %p176 = scmp.eq.s32.totalorder %s29, 0
      %p177 = por %p175, %p176
      %s179 = sadd.s32 %s178, 1
      %p182 = scmp.eq.s32.totalorder %s23, 1
      %p183 = scmp.ne.s32.totalorder %s178, %s180
      %p184 = scmp.eq.s32.totalorder %s23, 0
      %p185 = por %p183, %p184
      %p186 = scmp.ne.s32.totalorder %s178, %s180
      %p187 = scmp.eq.s32.totalorder %s28, 1
      %p188 = por %p186, %p187
      %p189 = scmp.ne.s32.totalorder %s180, %s181
      %p190 = scmp.eq.s32.totalorder %s28, 0
      %p191 = por %p189, %p190
      %p192 = scmp.ne.s32.totalorder %s180, %s181
      %p193 = scmp.eq.s32.totalorder %s29, 1
      %p194 = por %p192, %p193
      %p196 = scmp.ne.s32.totalorder %s181, %s195
      %p197 = scmp.eq.s32.totalorder %s29, 0
      %p198 = por %p196, %p197
      %s200 = sadd.s32 %s199, 1
      %p203 = scmp.eq.s32.totalorder %s23, 1
      %p204 = scmp.ne.s32.totalorder %s199, %s201
      %p205 = scmp.eq.s32.totalorder %s23, 0
      %p206 = por %p204, %p205
      %p207 = scmp.ne.s32.totalorder %s199, %s201
      %p208 = scmp.eq.s32.totalorder %s28, 1
      %p209 = por %p207, %p208
      %p210 = scmp.ne.s32.totalorder %s201, %s202
      %p211 = scmp.eq.s32.totalorder %s28, 0
      %p212 = por %p210, %p211
      %p213 = scmp.ne.s32.totalorder %s201, %s202
      %p214 = scmp.eq.s32.totalorder %s29, 1
      %p215 = por %p213, %p214
      %p217 = scmp.ne.s32.totalorder %s202, %s216
      %p218 = scmp.eq.s32.totalorder %s29, 0
      %p219 = por %p217, %p218
      %s221 = sadd.s32 %s220, 1
      %p224 = scmp.eq.s32.totalorder %s23, 1
      %p225 = scmp.ne.s32.totalorder %s220, %s222
      %p226 = scmp.eq.s32.totalorder %s23, 0
      %p227 = por %p225, %p226
      %p228 = scmp.ne.s32.totalorder %s220, %s222
      %p229 = scmp.eq.s32.totalorder %s28, 1
      %p230 = por %p228, %p229
      %p231 = scmp.ne.s32.totalorder %s222, %s223
      %p232 = scmp.eq.s32.totalorder %s28, 0
      %p233 = por %p231, %p232
      %p234 = scmp.ne.s32.totalorder %s222, %s223
      %p235 = scmp.eq.s32.totalorder %s29, 1
      %p236 = por %p234, %p235
      %p238 = scmp.ne.s32.totalorder %s223, %s237
      %p239 = scmp.eq.s32.totalorder %s29, 0
      %p240 = por %p238, %p239
      %s242 = sadd.s32 %s241, 1
      %p245 = scmp.eq.s32.totalorder %s23, 1
      %p246 = scmp.ne.s32.totalorder %s241, %s243
      %p247 = scmp.eq.s32.totalorder %s23, 0
      %p248 = por %p246, %p247
      %p249 = scmp.ne.s32.totalorder %s241, %s243
      %p250 = scmp.eq.s32.totalorder %s28, 1
      %p251 = por %p249, %p250
      %p252 = scmp.ne.s32.totalorder %s243, %s244
      %p253 = scmp.eq.s32.totalorder %s28, 0
      %p254 = por %p252, %p253
      %p255 = scmp.ne.s32.totalorder %s243, %s244
      %p256 = scmp.eq.s32.totalorder %s29, 1
      %p257 = por %p255, %p256
      %p259 = scmp.ne.s32.totalorder %s244, %s258
      %p260 = scmp.eq.s32.totalorder %s29, 0
      %p261 = por %p259, %p260
      %s263 = sadd.s32 %s262, 1
      %p266 = scmp.eq.s32.totalorder %s23, 1
      %p267 = scmp.ne.s32.totalorder %s262, %s264
      %p268 = scmp.eq.s32.totalorder %s23, 0
      %p269 = por %p267, %p268
      %p270 = scmp.ne.s32.totalorder %s262, %s264
      %p271 = scmp.eq.s32.totalorder %s28, 1
      %p272 = por %p270, %p271
      %p273 = scmp.ne.s32.totalorder %s264, %s265
      %p274 = scmp.eq.s32.totalorder %s28, 0
      %p275 = por %p273, %p274
      %p276 = scmp.ne.s32.totalorder %s264, %s265
      %p277 = scmp.eq.s32.totalorder %s29, 1
      %p278 = por %p276, %p277
      %p280 = scmp.ne.s32.totalorder %s265, %s279
      %p281 = scmp.eq.s32.totalorder %s29, 0
      %p282 = por %p280, %p281
      %s284 = sadd.s32 %s283, 1
      %p287 = scmp.eq.s32.totalorder %s23, 1
      %p288 = scmp.ne.s32.totalorder %s283, %s285
      %p289 = scmp.eq.s32.totalorder %s23, 0
      %p290 = por %p288, %p289
      %p291 = scmp.ne.s32.totalorder %s283, %s285
      %p292 = scmp.eq.s32.totalorder %s28, 1
      %p293 = por %p291, %p292
      %p294 = scmp.ne.s32.totalorder %s285, %s286
      %p295 = scmp.eq.s32.totalorder %s28, 0
      %p296 = por %p294, %p295
      %p297 = scmp.ne.s32.totalorder %s285, %s286
      %p298 = scmp.eq.s32.totalorder %s29, 1
      %p299 = por %p297, %p298
      %p301 = scmp.ne.s32.totalorder %s286, %s300
      %p302 = scmp.eq.s32.totalorder %s29, 0
      %p303 = por %p301, %p302
      %s305 = sadd.s32 %s304, 1
      %p308 = scmp.eq.s32.totalorder %s23, 1
      %p309 = scmp.ne.s32.totalorder %s304, %s306
      %p310 = scmp.eq.s32.totalorder %s23, 0
      %p311 = por %p309, %p310
      %p312 = scmp.ne.s32.totalorder %s304, %s306
      %p313 = scmp.eq.s32.totalorder %s28, 1
      %p314 = por %p312, %p313
      %p315 = scmp.ne.s32.totalorder %s306, %s307
      %p316 = scmp.eq.s32.totalorder %s28, 0
      %p317 = por %p315, %p316
      %p318 = scmp.ne.s32.totalorder %s306, %s307
      %p319 = scmp.eq.s32.totalorder %s29, 1
      %p320 = por %p318, %p319
      %p322 = scmp.ne.s32.totalorder %s307, %s321
      %p323 = scmp.eq.s32.totalorder %s29, 0
      %p324 = por %p322, %p323
      %s326 = sadd.s32 %s325, 1
      %p329 = scmp.eq.s32.totalorder %s23, 1
      %p330 = scmp.ne.s32.totalorder %s325, %s327
      %p331 = scmp.eq.s32.totalorder %s23, 0
      %p332 = por %p330, %p331
      %p333 = scmp.ne.s32.totalorder %s325, %s327
      %p334 = scmp.eq.s32.totalorder %s28, 1
      %p335 = por %p333, %p334
      %p336 = scmp.ne.s32.totalorder %s327, %s328
      %p337 = scmp.eq.s32.totalorder %s28, 0
      %p338 = por %p336, %p337
      %p339 = scmp.ne.s32.totalorder %s327, %s328
      %p340 = scmp.eq.s32.totalorder %s29, 1
      %p341 = por %p339, %p340
      %p343 = scmp.ne.s32.totalorder %s328, %s342
      %p344 = scmp.eq.s32.totalorder %s29, 0
      %p345 = por %p343, %p344
      %s347 = sadd.s32 %s346, 1
      %p350 = scmp.eq.s32.totalorder %s23, 1
      %p351 = scmp.ne.s32.totalorder %s346, %s348
      %p352 = scmp.eq.s32.totalorder %s23, 0
      %p353 = por %p351, %p352
      %p354 = scmp.ne.s32.totalorder %s346, %s348
      %p355 = scmp.eq.s32.totalorder %s28, 1
      %p356 = por %p354, %p355
      %p357 = scmp.ne.s32.totalorder %s348, %s349
      %p358 = scmp.eq.s32.totalorder %s28, 0
      %p359 = por %p357, %p358
      %p360 = scmp.ne.s32.totalorder %s348, %s349
      %p361 = scmp.eq.s32.totalorder %s29, 1
      %p362 = por %p360, %p361
      %p364 = scmp.ne.s32.totalorder %s349, %s363
      %p365 = scmp.eq.s32.totalorder %s29, 0
      %p366 = por %p364, %p365
      %s368 = sadd.s32 %s367, 1
      %p371 = scmp.eq.s32.totalorder %s23, 1
      %p372 = scmp.ne.s32.totalorder %s367, %s369
      %p373 = scmp.eq.s32.totalorder %s23, 0
      %p374 = por %p372, %p373
      %p375 = scmp.ne.s32.totalorder %s367, %s369
      %p376 = scmp.eq.s32.totalorder %s28, 1
      %p377 = por %p375, %p376
      %p378 = scmp.ne.s32.totalorder %s369, %s370
      %p379 = scmp.eq.s32.totalorder %s28, 0
      %p380 = por %p378, %p379
      %p381 = scmp.ne.s32.totalorder %s369, %s370
      %p382 = scmp.eq.s32.totalorder %s29, 1
      %p383 = por %p381, %p382
      %p385 = scmp.ne.s32.totalorder %s370, %s384
      %p386 = scmp.eq.s32.totalorder %s29, 0
      %p387 = por %p385, %p386
      %p388 = scmp.le.s32.totalorder 1, %s23
      %p389 = scmp.lt.s32.totalorder %s23, 3
      %p390 = pnand %p388, %p389
      %p391 = pneg %p390
      // Predicated region
      $region9: #{tpu_custom_call.1} parent=5 // pred_check
        _
      $region10: #{tpu_custom_call.1} parent=5 // pred_check_branch
        %393 = sbr.rel (%p390) target = $region12
      $region11: #{tpu_custom_call.1} parent=5 // pred_region
        %s394 = ssub.s32 %s23, 1
        // Predicated region
        $region13: #{tpu_custom_call.1} parent=11 // pred_check
          %p395 = pneg %p44
        $region14: #{tpu_custom_call.1} parent=11 // pred_check_branch
          %397 = sbr.rel (%p395) target = $region16
        $region15: #{tpu_custom_call.1} parent=11 // pred_region
          _
        $region16: #{tpu_custom_call.1} parent=11 // pred_fallthru
          _
        // Predicated region
        $region17: #{tpu_custom_call.1} parent=11 // pred_check
          %p398 = pneg %p65
        $region18: #{tpu_custom_call.1} parent=11 // pred_check_branch
          %400 = sbr.rel (%p398) target = $region20
        $region19: #{tpu_custom_call.1} parent=11 // pred_region
          _
        $region20: #{tpu_custom_call.1} parent=11 // pred_fallthru
          _
        // Predicated region
        $region21: #{tpu_custom_call.1} parent=11 // pred_check
          %p401 = pneg %p86
        $region22: #{tpu_custom_call.1} parent=11 // pred_check_branch
          %403 = sbr.rel (%p401) target = $region24
        $region23: #{tpu_custom_call.1} parent=11 // pred_region
          _
        $region24: #{tpu_custom_call.1} parent=11 // pred_fallthru
          _
        // Predicated region
        $region25: #{tpu_custom_call.1} parent=11 // pred_check
          %p404 = pneg %p107
        $region26: #{tpu_custom_call.1} parent=11 // pred_check_branch
          %406 = sbr.rel (%p404) target = $region28
        $region27: #{tpu_custom_call.1} parent=11 // pred_region
          _
        $region28: #{tpu_custom_call.1} parent=11 // pred_fallthru
          _
        // Predicated region
        $region29: #{tpu_custom_call.1} parent=11 // pred_check
          %p407 = pneg %p128
        $region30: #{tpu_custom_call.1} parent=11 // pred_check_branch
          %409 = sbr.rel (%p407) target = $region32
        $region31: #{tpu_custom_call.1} parent=11 // pred_region
          _
        $region32: #{tpu_custom_call.1} parent=11 // pred_fallthru
          _
        // Predicated region
        $region33: #{tpu_custom_call.1} parent=11 // pred_check
          %p410 = pneg %p149
        $region34: #{tpu_custom_call.1} parent=11 // pred_check_branch
          %412 = sbr.rel (%p410) target = $region36
        $region35: #{tpu_custom_call.1} parent=11 // pred_region
          _
        $region36: #{tpu_custom_call.1} parent=11 // pred_fallthru
          _
        // Predicated region
        $region37: #{tpu_custom_call.1} parent=11 // pred_check
          %p413 = pneg %p170
        $region38: #{tpu_custom_call.1} parent=11 // pred_check_branch
          %415 = sbr.rel (%p413) target = $region40
        $region39: #{tpu_custom_call.1} parent=11 // pred_region
          _
        $region40: #{tpu_custom_call.1} parent=11 // pred_fallthru
          _
        // Predicated region
        $region41: #{tpu_custom_call.1} parent=11 // pred_check
          %p416 = pneg %p191
        $region42: #{tpu_custom_call.1} parent=11 // pred_check_branch
          %418 = sbr.rel (%p416) target = $region44
        $region43: #{tpu_custom_call.1} parent=11 // pred_region
          _
        $region44: #{tpu_custom_call.1} parent=11 // pred_fallthru
          _
        // Predicated region
        $region45: #{tpu_custom_call.1} parent=11 // pred_check
          %p419 = pneg %p212
        $region46: #{tpu_custom_call.1} parent=11 // pred_check_branch
          %421 = sbr.rel (%p419) target = $region48
        $region47: #{tpu_custom_call.1} parent=11 // pred_region
          _
        $region48: #{tpu_custom_call.1} parent=11 // pred_fallthru
          _
        // Predicated region
        $region49: #{tpu_custom_call.1} parent=11 // pred_check
          %p422 = pneg %p233
        $region50: #{tpu_custom_call.1} parent=11 // pred_check_branch
          %424 = sbr.rel (%p422) target = $region52
        $region51: #{tpu_custom_call.1} parent=11 // pred_region
          _
        $region52: #{tpu_custom_call.1} parent=11 // pred_fallthru
          _
        // Predicated region
        $region53: #{tpu_custom_call.1} parent=11 // pred_check
          %p425 = pneg %p254
        $region54: #{tpu_custom_call.1} parent=11 // pred_check_branch
          %427 = sbr.rel (%p425) target = $region56
        $region55: #{tpu_custom_call.1} parent=11 // pred_region
          _
        $region56: #{tpu_custom_call.1} parent=11 // pred_fallthru
          _
        // Predicated region
        $region57: #{tpu_custom_call.1} parent=11 // pred_check
          %p428 = pneg %p275
        $region58: #{tpu_custom_call.1} parent=11 // pred_check_branch
          %430 = sbr.rel (%p428) target = $region60
        $region59: #{tpu_custom_call.1} parent=11 // pred_region
          _
        $region60: #{tpu_custom_call.1} parent=11 // pred_fallthru
          _
        // Predicated region
        $region61: #{tpu_custom_call.1} parent=11 // pred_check
          %p431 = pneg %p296
        $region62: #{tpu_custom_call.1} parent=11 // pred_check_branch
          %433 = sbr.rel (%p431) target = $region64
        $region63: #{tpu_custom_call.1} parent=11 // pred_region
          _
        $region64: #{tpu_custom_call.1} parent=11 // pred_fallthru
          _
        // Predicated region
        $region65: #{tpu_custom_call.1} parent=11 // pred_check
          %p434 = pneg %p317
        $region66: #{tpu_custom_call.1} parent=11 // pred_check_branch
          %436 = sbr.rel (%p434) target = $region68
        $region67: #{tpu_custom_call.1} parent=11 // pred_region
          _
        $region68: #{tpu_custom_call.1} parent=11 // pred_fallthru
          _
        // Predicated region
        $region69: #{tpu_custom_call.1} parent=11 // pred_check
          %p437 = pneg %p338
        $region70: #{tpu_custom_call.1} parent=11 // pred_check_branch
          %439 = sbr.rel (%p437) target = $region72
        $region71: #{tpu_custom_call.1} parent=11 // pred_region
          _
        $region72: #{tpu_custom_call.1} parent=11 // pred_fallthru
          _
        // Predicated region
        $region73: #{tpu_custom_call.1} parent=11 // pred_check
          %p440 = pneg %p359
        $region74: #{tpu_custom_call.1} parent=11 // pred_check_branch
          %442 = sbr.rel (%p440) target = $region76
        $region75: #{tpu_custom_call.1} parent=11 // pred_region
          _
        $region76: #{tpu_custom_call.1} parent=11 // pred_fallthru
          _
      $region12: #{tpu_custom_call.1} parent=5 // pred_fallthru
        _
      %p443 = scmp.lt.s32.totalorder %s23, 2
      // Predicated region
      $region77: #{tpu_custom_call.1} parent=5 // pred_check
        %p444 = pneg %p443
      $region78: #{tpu_custom_call.1} parent=5 // pred_check_branch
        %446 = sbr.rel (%p444) target = $region80
      $region79: #{tpu_custom_call.1} parent=5 // pred_region
        _
      $region80: #{tpu_custom_call.1} parent=5 // pred_fallthru
        _
      %p447 = scmp.le.s32.totalorder 1, %s23
      %p448 = scmp.lt.s32.totalorder %s23, 3
      %p449 = pnand %p447, %p448
      %p450 = pneg %p449
      // Predicated region
      $region81: #{tpu_custom_call.1} parent=5 // pred_check
        _
      $region82: #{tpu_custom_call.1} parent=5 // pred_check_branch
        %452 = sbr.rel (%p449) target = $region84
      $region83: #{tpu_custom_call.1} parent=5 // pred_region
        %s453 = ssub.s32 %s23, 1
        %p454 = pneg %p44
        %p455 = pneg %p41
        %p456 = pneg %p65
        %p457 = pneg %p62
        %p458 = pneg %p86
        %p459 = pneg %p83
        %p460 = pneg %p107
        %p461 = pneg %p104
        %p462 = pneg %p128
        %p463 = pneg %p125
        %p464 = pneg %p149
        %p465 = pneg %p146
        %p466 = pneg %p170
        %p467 = pneg %p167
        %p468 = pneg %p191
        %p469 = pneg %p188
        %p470 = pneg %p212
        %p471 = pneg %p209
        %p472 = pneg %p233
        %p473 = pneg %p230
        %p474 = pneg %p254
        %p475 = pneg %p251
        %p476 = pneg %p275
        %p477 = pneg %p272
        %p478 = pneg %p296
        %p479 = pneg %p293
        %p480 = pneg %p317
        %p481 = pneg %p314
        %p482 = pneg %p338
        %p483 = pneg %p335
        %p484 = pneg %p359
        %p485 = pneg %p356
        %p486 = pneg %p380
        %p487 = pneg %p377
        %p488 = scmp.eq.s32.totalorder %s28, 0
        // Predicated region
        $region85: #{tpu_custom_call.1} parent=83 // pred_check
          %p489 = pneg %p488
        $region86: #{tpu_custom_call.1} parent=83 // pred_check_branch
          %491 = sbr.rel (%p489) target = $region88
        $region87: #{tpu_custom_call.1} parent=83 // pred_region
          %v492 = vld [vmem:[%s0] sm:$0xff]
          %v493 = vld [vmem:[%s0 + $0x8] sm:$0xff]
          %vm494 = vcmask 261120
          %495 = vst.msk [vmem:[#allocation2] sm:$0xff] %vm494, %v492
          %496 = vst.msk [vmem:[#allocation2 + $0x8] sm:$0xff] %vm494, %v493
        $region88: #{tpu_custom_call.1} parent=83 // pred_fallthru
          _
        %v497 = vld [vmem:[#allocation2] sm:$0xff]
        %v498 = vld [vmem:[#allocation2 + $0x8] sm:$0xff]
        %v499 = vld [vmem:[%s1] sm:$0x1]
        %v500 = vld [vmem:[%s1 + $0x1] sm:$0x1]
        %vm501 = vcmp.eq.f32.partialorder %v499, 0.0
        %vm502 = vcmp.eq.f32.partialorder %v500, 0.0
        %v503 = vsel %vm501, -1e+09, 0.0
        %v504 = vsel %vm502, -1e+09, 0.0
        %v505 = vld [vmem:[%s2] sm:$0x1]
        %v506 = vld [vmem:[%s3] sm:$0x1]
        %vm507 = vcmask 261120
        %v508 = vsel %vm507, %v497, 0.0
        %509 = vadd.xlane.f32.xlu0 %v508
        %v510 = vpop.xlane.xlu0 %509
        %v511 = vsel %vm507, %v498, 0.0
        %512 = vadd.xlane.f32.xlu0 %v511
        %v513 = vpop.xlane.xlu0 %512
        %v514 = vrcp.pop 32.0
        %v515 = vmul.f32 %v510, %v514
        %v516 = vmul.f32 %v513, %v514
        %v517 = vsub.f32 %v497, %v515
        %v518 = vsub.f32 %v498, %v516
        %v519 = vmul.f32 %v517, %v517
        %v520 = vmul.f32 %v518, %v518
        %v521 = vsel %vm507, %v519, 0.0
        %522 = vadd.xlane.f32.xlu0 %v521
        %v523 = vpop.xlane.xlu0 %522
        %v524 = vsel %vm507, %v520, 0.0
        %525 = vadd.xlane.f32.xlu0 %v524
        %v526 = vpop.xlane.xlu0 %525
        %v527 = vmul.f32 %v523, 0.032258064
        %v528 = vmul.f32 %v526, 0.032258064
        %v529 = vrsqrt.pop %v527
        %v530 = vmul.f32 %v527, %v529
        %vm531 = vcmp.eq.f32.partialorder %v527, inf
        %v532 = vsel %vm531, %v527, %v530
        %vm533 = vcmp.eq.f32.partialorder %v527, 0.0
        %v534 = vand.u32 %v527, 2147483648
        %v535 = vsel %vm533, %v534, %v532
        %v536 = vrsqrt.pop %v528
        %v537 = vmul.f32 %v528, %v536
        %vm538 = vcmp.eq.f32.partialorder %v528, inf
        %v539 = vsel %vm538, %v528, %v537
        %vm540 = vcmp.eq.f32.partialorder %v528, 0.0
        %v541 = vand.u32 %v528, 2147483648
        %v542 = vsel %vm540, %v541, %v539
        %v543 = vadd.f32 %v535, 1e-06
        %v544 = vadd.f32 %v542, 1e-06
        %v545 = vrcp.pop %v543
        %v546 = vrcp.pop %v544
        %v548 = vlaneseq
        %v549 = vshrl.u32 %v548, 7
        %v550 = vsub.s32 0, %v549
        %v551 = vrot.slane %v505, %v550
        %v553 = vmul.f32 %v551, %v517
        %v554 = vmul.f32 %v551, %v518
        %v555 = vmul.f32 %v553, %v545
        %v556 = vmul.f32 %v554, %v546
        %v558 = vlaneseq
        %v559 = vshrl.u32 %v558, 7
        %v560 = vsub.s32 0, %v559
        %v561 = vrot.slane %v506, %v560
        %v563 = vadd.f32 %v555, %v561
        %v564 = vadd.f32 %v556, %v561
        %v565 = vld [vmem:[%s4] sm:$0xff]
        %v566 = vld [vmem:[%s4 + $0x8] sm:$0xff]
        %v567 = vld [vmem:[%s4 + $0x10] sm:$0xff]
        %v568 = vld [vmem:[%s4 + $0x18] sm:$0xff]
        %v569 = vld [vmem:[%s5] sm:$0x1]
        %v571 = vlaneseq
        %v572 = vshrl.u32 %v571, 7
        %v573 = vsub.s32 0, %v572
        %v574 = vrot.slane %v569, %v573
        %v577 = vsel %vm507, %v563, 0
        %v580 = vsel %vm507, %v564, 0
        %582 = vmatprep.subr.mxu0 0.0
        %583 = vmatpush1.msra.mxu0 %v565
        %584 = vmatprep.subr.mxu0 0.0
        %585 = vmatpush1.msra.mxu0 %v566
        %586 = vmatprep.subr.mxu0 0.0
        %587 = vmatpush1.msra.mxu0 %v567
        %588 = vmatprep.subr.mxu0 0.0
        %589 = vmatpush1.msra.mxu0 %v568
        %590 = vmatprep.subr.mxu0 0.0
        %591 = vmatpush1.msra.mxu0 0.0
        %592 = vmatprep.subr.mxu0 0.0
        %593 = vmatpush1.msra.mxu0 0.0
        %594 = vmatprep.subr.mxu0 0.0
        %595 = vmatpush1.msra.mxu0 0.0
        %596 = vmatprep.subr.mxu0 0.0
        %597 = vmatpush1.msra.mxu0 0.0
        %598 = vmatprep.subr.mxu0 0.0
        %599 = vmatpush1.msra.mxu0 0.0
        %600 = vmatprep.subr.mxu0 0.0
        %601 = vmatpush1.msra.mxu0 0.0
        %602 = vmatprep.subr.mxu0 0.0
        %603 = vmatpush1.msra.mxu0 0.0
        %604 = vmatprep.subr.mxu0 0.0
        %605 = vmatpush1.msra.mxu0 0.0
        %606 = vmatprep.subr.mxu0 0.0
        %607 = vmatpush1.msra.mxu0 0.0
        %608 = vmatprep.subr.mxu0 0.0
        %609 = vmatpush1.msra.mxu0 0.0
        %610 = vmatprep.subr.mxu0 0.0
        %611 = vmatpush1.msra.mxu0 0.0
        %612 = vmatprep.subr.mxu0 0.0
        %613 = vmatpush1.msra.mxu0 0.0
        %614 = vmatprep.subr.mxu0 0.0
        %615 = vmatpush1.msra.mxu0 0.0
        %616 = vmatprep.subr.mxu0 0.0
        %617 = vmatpush1.msra.mxu0 0.0
        %618 = vmatprep.subr.mxu0 0.0
        %619 = vmatpush1.msra.mxu0 0.0
        %620 = vmatprep.subr.mxu0 0.0
        %621 = vmatpush1.msra.mxu0 0.0
        %622 = vmatprep.subr.mxu0 0.0
        %623 = vmatpush1.msra.mxu0 0.0
        %624 = vmatprep.subr.mxu0 0.0
        %625 = vmatpush1.msra.mxu0 0.0
        %626 = vmatprep.subr.mxu0 0.0
        %627 = vmatpush1.msra.mxu0 0.0
        %628 = vmatprep.subr.mxu0 0.0
        %629 = vmatpush1.msra.mxu0 0.0
        %630 = vmatprep.subr.mxu0 0.0
        %631 = vmatpush1.msra.mxu0 0.0
        %632 = vmatprep.subr.mxu0 0.0
        %633 = vmatpush1.msra.mxu0 0.0
        %634 = vmatprep.subr.mxu0 0.0
        %635 = vmatpush1.msra.mxu0 0.0
        %636 = vmatprep.subr.mxu0 0.0
        %637 = vmatpush1.msra.mxu0 0.0
        %638 = vmatprep.subr.mxu0 0.0
        %639 = vmatpush1.msra.mxu0 0.0
        %640 = vmatprep.subr.mxu0 0.0
        %641 = vmatpush1.msra.mxu0 0.0
        %642 = vmatprep.subr.mxu0 0.0
        %643 = vmatpush1.msra.mxu0 0.0
        %644 = vmatprep.subr.mxu0 0.0
        %645 = vmatpush1.msra.mxu0 0.0
        %646 = vmatprep.mubr.f32.mxu0 0.0
        %647 = vmatmul.mubr.f32.gmra.mrb[0].mxu0 %v577
        %v648 = vpop.f32.mrb[0].mxu0
        %v649 = vadd.f32 %v574, %v648
        %v650 = vpop.f32.mrb[0].mxu0
        %651 = vmatprep.mubr.f32.mxu0 0.0
        %652 = vmatmul.mubr.f32.gmra.mrb[0].mxu0 %v580
        %v653 = vpop.f32.mrb[0].mxu0
        %v654 = vadd.f32 %v574, %v653
        %v655 = vpop.f32.mrb[0].mxu0
        %656 = vdwg.mxu0
        %658 = vrot.lane.b32.xlu0 %v649, 120
        %v659 = vpop.permute.xlu0 %658
        %660 = vrot.lane.b32.xlu0 %v649, 112
        %v661 = vpop.permute.xlu0 %660
        %662 = vrot.lane.b32.xlu0 %v649, 104
        %v663 = vpop.permute.xlu0 %662
        %664 = vrot.lane.b32.xlu0 %v649, 96
        %v665 = vpop.permute.xlu0 %664
        %vm666 = vcmask 64512
        %v667 = vsel %vm666, %v649, 0
        %v669 = vsel %vm666, %v665, 0
        %671 = vmatprep.subr.mxu0 0.0
        %672 = vmatpush1.xpose.msra.mxu0 %v669
        %673 = vmatprep.subr.mxu0 0.0
        %674 = vmatpush1.xpose.msra.mxu0 0.0
        %675 = vmatprep.subr.mxu0 0.0
        %676 = vmatpush1.xpose.msra.mxu0 0.0
        %677 = vmatprep.subr.mxu0 0.0
        %678 = vmatpush1.xpose.msra.mxu0 0.0
        %679 = vmatprep.subr.mxu0 0.0
        %680 = vmatpush1.xpose.msra.mxu0 0.0
        %681 = vmatprep.subr.mxu0 0.0
        %682 = vmatpush1.xpose.msra.mxu0 0.0
        %683 = vmatprep.subr.mxu0 0.0
        %684 = vmatpush1.xpose.msra.mxu0 0.0
        %685 = vmatprep.subr.mxu0 0.0
        %686 = vmatpush1.xpose.msra.mxu0 0.0
        %687 = vmatprep.subr.mxu0 0.0
        %688 = vmatpush1.xpose.msra.mxu0 0.0
        %689 = vmatprep.subr.mxu0 0.0
        %690 = vmatpush1.xpose.msra.mxu0 0.0
        %691 = vmatprep.subr.mxu0 0.0
        %692 = vmatpush1.xpose.msra.mxu0 0.0
        %693 = vmatprep.subr.mxu0 0.0
        %694 = vmatpush1.xpose.msra.mxu0 0.0
        %695 = vmatprep.subr.mxu0 0.0
        %696 = vmatpush1.xpose.msra.mxu0 0.0
        %697 = vmatprep.subr.mxu0 0.0
        %698 = vmatpush1.xpose.msra.mxu0 0.0
        %699 = vmatprep.subr.mxu0 0.0
        %700 = vmatpush1.xpose.msra.mxu0 0.0
        %701 = vmatprep.subr.mxu0 0.0
        %702 = vmatpush1.xpose.msra.mxu0 0.0
        %703 = vmatprep.subr.mxu0 0.0
        %704 = vmatpush1.xpose.msra.mxu0 0.0
        %705 = vmatprep.subr.mxu0 0.0
        %706 = vmatpush1.xpose.msra.mxu0 0.0
        %707 = vmatprep.subr.mxu0 0.0
        %708 = vmatpush1.xpose.msra.mxu0 0.0
        %709 = vmatprep.subr.mxu0 0.0
        %710 = vmatpush1.xpose.msra.mxu0 0.0
        %711 = vmatprep.subr.mxu0 0.0
        %712 = vmatpush1.xpose.msra.mxu0 0.0
        %713 = vmatprep.subr.mxu0 0.0
        %714 = vmatpush1.xpose.msra.mxu0 0.0
        %715 = vmatprep.subr.mxu0 0.0
        %716 = vmatpush1.xpose.msra.mxu0 0.0
        %717 = vmatprep.subr.mxu0 0.0
        %718 = vmatpush1.xpose.msra.mxu0 0.0
        %719 = vmatprep.subr.mxu0 0.0
        %720 = vmatpush1.xpose.msra.mxu0 0.0
        %721 = vmatprep.subr.mxu0 0.0
        %722 = vmatpush1.xpose.msra.mxu0 0.0
        %723 = vmatprep.subr.mxu0 0.0
        %724 = vmatpush1.xpose.msra.mxu0 0.0
        %725 = vmatprep.subr.mxu0 0.0
        %726 = vmatpush1.xpose.msra.mxu0 0.0
        %727 = vmatprep.subr.mxu0 0.0
        %728 = vmatpush1.xpose.msra.mxu0 0.0
        %729 = vmatprep.subr.mxu0 0.0
        %730 = vmatpush1.xpose.msra.mxu0 0.0
        %731 = vmatprep.subr.mxu0 0.0
        %732 = vmatpush1.xpose.msra.mxu0 0.0
        %733 = vmatprep.subr.mxu0 0.0
        %734 = vmatpush1.xpose.msra.mxu0 0.0
        %735 = vmatprep.mubr.f32.mxu0 0.0
        %736 = vmatmul.mubr.f32.gmra.mrb[0].mxu0 %v667
        %v737 = vpop.f32.mrb[0].mxu0
        %v738 = vadd.f32 0.0, %v737
        %v739 = vpop.f32.mrb[0].mxu0
        %740 = vdwg.mxu0
        %741 = vrot.lane.b32.xlu0 %v659, 96
        %v742 = vpop.permute.xlu0 %741
        %v743 = vsel %vm666, %v659, 0
        %v745 = vsel %vm666, %v742, 0
        %747 = vmatprep.subr.mxu0 0.0
        %748 = vmatpush1.xpose.msra.mxu0 %v745
        %749 = vmatprep.subr.mxu0 0.0
        %750 = vmatpush1.xpose.msra.mxu0 0.0
        %751 = vmatprep.subr.mxu0 0.0
        %752 = vmatpush1.xpose.msra.mxu0 0.0
        %753 = vmatprep.subr.mxu0 0.0
        %754 = vmatpush1.xpose.msra.mxu0 0.0
        %755 = vmatprep.subr.mxu0 0.0
        %756 = vmatpush1.xpose.msra.mxu0 0.0
        %757 = vmatprep.subr.mxu0 0.0
        %758 = vmatpush1.xpose.msra.mxu0 0.0
        %759 = vmatprep.subr.mxu0 0.0
        %760 = vmatpush1.xpose.msra.mxu0 0.0
        %761 = vmatprep.subr.mxu0 0.0
        %762 = vmatpush1.xpose.msra.mxu0 0.0
        %763 = vmatprep.subr.mxu0 0.0
        %764 = vmatpush1.xpose.msra.mxu0 0.0
        %765 = vmatprep.subr.mxu0 0.0
        %766 = vmatpush1.xpose.msra.mxu0 0.0
        %767 = vmatprep.subr.mxu0 0.0
        %768 = vmatpush1.xpose.msra.mxu0 0.0
        %769 = vmatprep.subr.mxu0 0.0
        %770 = vmatpush1.xpose.msra.mxu0 0.0
        %771 = vmatprep.subr.mxu0 0.0
        %772 = vmatpush1.xpose.msra.mxu0 0.0
        %773 = vmatprep.subr.mxu0 0.0
        %774 = vmatpush1.xpose.msra.mxu0 0.0
        %775 = vmatprep.subr.mxu0 0.0
        %776 = vmatpush1.xpose.msra.mxu0 0.0
        %777 = vmatprep.subr.mxu0 0.0
        %778 = vmatpush1.xpose.msra.mxu0 0.0
        %779 = vmatprep.subr.mxu0 0.0
        %780 = vmatpush1.xpose.msra.mxu0 0.0
        %781 = vmatprep.subr.mxu0 0.0
        %782 = vmatpush1.xpose.msra.mxu0 0.0
        %783 = vmatprep.subr.mxu0 0.0
        %784 = vmatpush1.xpose.msra.mxu0 0.0
        %785 = vmatprep.subr.mxu0 0.0
        %786 = vmatpush1.xpose.msra.mxu0 0.0
        %787 = vmatprep.subr.mxu0 0.0
        %788 = vmatpush1.xpose.msra.mxu0 0.0
        %789 = vmatprep.subr.mxu0 0.0
        %790 = vmatpush1.xpose.msra.mxu0 0.0
        %791 = vmatprep.subr.mxu0 0.0
        %792 = vmatpush1.xpose.msra.mxu0 0.0
        %793 = vmatprep.subr.mxu0 0.0
        %794 = vmatpush1.xpose.msra.mxu0 0.0
        %795 = vmatprep.subr.mxu0 0.0
        %796 = vmatpush1.xpose.msra.mxu0 0.0
        %797 = vmatprep.subr.mxu0 0.0
        %798 = vmatpush1.xpose.msra.mxu0 0.0
        %799 = vmatprep.subr.mxu0 0.0
        %800 = vmatpush1.xpose.msra.mxu0 0.0
        %801 = vmatprep.subr.mxu0 0.0
        %802 = vmatpush1.xpose.msra.mxu0 0.0
        %803 = vmatprep.subr.mxu0 0.0
        %804 = vmatpush1.xpose.msra.mxu0 0.0
        %805 = vmatprep.subr.mxu0 0.0
        %806 = vmatpush1.xpose.msra.mxu0 0.0
        %807 = vmatprep.subr.mxu0 0.0
        %808 = vmatpush1.xpose.msra.mxu0 0.0
        %809 = vmatprep.subr.mxu0 0.0
        %810 = vmatpush1.xpose.msra.mxu0 0.0
        %811 = vmatprep.mubr.f32.mxu0 0.0
        %812 = vmatmul.mubr.f32.gmra.mrb[0].mxu0 %v743
        %v813 = vpop.f32.mrb[0].mxu0
        %v814 = vadd.f32 0.0, %v813
        %v815 = vpop.f32.mrb[0].mxu0
        %816 = vdwg.mxu0
        %817 = vrot.lane.b32.xlu0 %v661, 96
        %v818 = vpop.permute.xlu0 %817
        %v819 = vsel %vm666, %v661, 0
        %v821 = vsel %vm666, %v818, 0
        %823 = vmatprep.subr.mxu0 0.0
        %824 = vmatpush1.xpose.msra.mxu0 %v821
        %825 = vmatprep.subr.mxu0 0.0
        %826 = vmatpush1.xpose.msra.mxu0 0.0
        %827 = vmatprep.subr.mxu0 0.0
        %828 = vmatpush1.xpose.msra.mxu0 0.0
        %829 = vmatprep.subr.mxu0 0.0
        %830 = vmatpush1.xpose.msra.mxu0 0.0
        %831 = vmatprep.subr.mxu0 0.0
        %832 = vmatpush1.xpose.msra.mxu0 0.0
        %833 = vmatprep.subr.mxu0 0.0
        %834 = vmatpush1.xpose.msra.mxu0 0.0
        %835 = vmatprep.subr.mxu0 0.0
        %836 = vmatpush1.xpose.msra.mxu0 0.0
        %837 = vmatprep.subr.mxu0 0.0
        %838 = vmatpush1.xpose.msra.mxu0 0.0
        %839 = vmatprep.subr.mxu0 0.0
        %840 = vmatpush1.xpose.msra.mxu0 0.0
        %841 = vmatprep.subr.mxu0 0.0
        %842 = vmatpush1.xpose.msra.mxu0 0.0
        %843 = vmatprep.subr.mxu0 0.0
        %844 = vmatpush1.xpose.msra.mxu0 0.0
        %845 = vmatprep.subr.mxu0 0.0
        %846 = vmatpush1.xpose.msra.mxu0 0.0
        %847 = vmatprep.subr.mxu0 0.0
        %848 = vmatpush1.xpose.msra.mxu0 0.0
        %849 = vmatprep.subr.mxu0 0.0
        %850 = vmatpush1.xpose.msra.mxu0 0.0
        %851 = vmatprep.subr.mxu0 0.0
        %852 = vmatpush1.xpose.msra.mxu0 0.0
        %853 = vmatprep.subr.mxu0 0.0
        %854 = vmatpush1.xpose.msra.mxu0 0.0
        %855 = vmatprep.subr.mxu0 0.0
        %856 = vmatpush1.xpose.msra.mxu0 0.0
        %857 = vmatprep.subr.mxu0 0.0
        %858 = vmatpush1.xpose.msra.mxu0 0.0
        %859 = vmatprep.subr.mxu0 0.0
        %860 = vmatpush1.xpose.msra.mxu0 0.0
        %861 = vmatprep.subr.mxu0 0.0
        %862 = vmatpush1.xpose.msra.mxu0 0.0
        %863 = vmatprep.subr.mxu0 0.0
        %864 = vmatpush1.xpose.msra.mxu0 0.0
        %865 = vmatprep.subr.mxu0 0.0
        %866 = vmatpush1.xpose.msra.mxu0 0.0
        %867 = vmatprep.subr.mxu0 0.0
        %868 = vmatpush1.xpose.msra.mxu0 0.0
        %869 = vmatprep.subr.mxu0 0.0
        %870 = vmatpush1.xpose.msra.mxu0 0.0
        %871 = vmatprep.subr.mxu0 0.0
        %872 = vmatpush1.xpose.msra.mxu0 0.0
        %873 = vmatprep.subr.mxu0 0.0
        %874 = vmatpush1.xpose.msra.mxu0 0.0
        %875 = vmatprep.subr.mxu0 0.0
        %876 = vmatpush1.xpose.msra.mxu0 0.0
        %877 = vmatprep.subr.mxu0 0.0
        %878 = vmatpush1.xpose.msra.mxu0 0.0
        %879 = vmatprep.subr.mxu0 0.0
        %880 = vmatpush1.xpose.msra.mxu0 0.0
        %881 = vmatprep.subr.mxu0 0.0
        %882 = vmatpush1.xpose.msra.mxu0 0.0
        %883 = vmatprep.subr.mxu0 0.0
        %884 = vmatpush1.xpose.msra.mxu0 0.0
        %885 = vmatprep.subr.mxu0 0.0
        %886 = vmatpush1.xpose.msra.mxu0 0.0
        %887 = vmatprep.mubr.f32.mxu0 0.0
        %888 = vmatmul.mubr.f32.gmra.mrb[0].mxu0 %v819
        %v889 = vpop.f32.mrb[0].mxu0
        %v890 = vadd.f32 0.0, %v889
        %v891 = vpop.f32.mrb[0].mxu0
        %892 = vdwg.mxu0
        %893 = vrot.lane.b32.xlu0 %v663, 96
        %v894 = vpop.permute.xlu0 %893
        %v895 = vsel %vm666, %v663, 0
        %v897 = vsel %vm666, %v894, 0
        %899 = vmatprep.subr.mxu0 0.0
        %900 = vmatpush1.xpose.msra.mxu0 %v897
        %901 = vmatprep.subr.mxu0 0.0
        %902 = vmatpush1.xpose.msra.mxu0 0.0
        %903 = vmatprep.subr.mxu0 0.0
        %904 = vmatpush1.xpose.msra.mxu0 0.0
        %905 = vmatprep.subr.mxu0 0.0
        %906 = vmatpush1.xpose.msra.mxu0 0.0
        %907 = vmatprep.subr.mxu0 0.0
        %908 = vmatpush1.xpose.msra.mxu0 0.0
        %909 = vmatprep.subr.mxu0 0.0
        %910 = vmatpush1.xpose.msra.mxu0 0.0
        %911 = vmatprep.subr.mxu0 0.0
        %912 = vmatpush1.xpose.msra.mxu0 0.0
        %913 = vmatprep.subr.mxu0 0.0
        %914 = vmatpush1.xpose.msra.mxu0 0.0
        %915 = vmatprep.subr.mxu0 0.0
        %916 = vmatpush1.xpose.msra.mxu0 0.0
        %917 = vmatprep.subr.mxu0 0.0
        %918 = vmatpush1.xpose.msra.mxu0 0.0
        %919 = vmatprep.subr.mxu0 0.0
        %920 = vmatpush1.xpose.msra.mxu0 0.0
        %921 = vmatprep.subr.mxu0 0.0
        %922 = vmatpush1.xpose.msra.mxu0 0.0
        %923 = vmatprep.subr.mxu0 0.0
        %924 = vmatpush1.xpose.msra.mxu0 0.0
        %925 = vmatprep.subr.mxu0 0.0
        %926 = vmatpush1.xpose.msra.mxu0 0.0
        %927 = vmatprep.subr.mxu0 0.0
        %928 = vmatpush1.xpose.msra.mxu0 0.0
        %929 = vmatprep.subr.mxu0 0.0
        %930 = vmatpush1.xpose.msra.mxu0 0.0
        %931 = vmatprep.subr.mxu0 0.0
        %932 = vmatpush1.xpose.msra.mxu0 0.0
        %933 = vmatprep.subr.mxu0 0.0
        %934 = vmatpush1.xpose.msra.mxu0 0.0
        %935 = vmatprep.subr.mxu0 0.0
        %936 = vmatpush1.xpose.msra.mxu0 0.0
        %937 = vmatprep.subr.mxu0 0.0
        %938 = vmatpush1.xpose.msra.mxu0 0.0
        %939 = vmatprep.subr.mxu0 0.0
        %940 = vmatpush1.xpose.msra.mxu0 0.0
        %941 = vmatprep.subr.mxu0 0.0
        %942 = vmatpush1.xpose.msra.mxu0 0.0
        %943 = vmatprep.subr.mxu0 0.0
        %944 = vmatpush1.xpose.msra.mxu0 0.0
        %945 = vmatprep.subr.mxu0 0.0
        %946 = vmatpush1.xpose.msra.mxu0 0.0
        %947 = vmatprep.subr.mxu0 0.0
        %948 = vmatpush1.xpose.msra.mxu0 0.0
        %949 = vmatprep.subr.mxu0 0.0
        %950 = vmatpush1.xpose.msra.mxu0 0.0
        %951 = vmatprep.subr.mxu0 0.0
        %952 = vmatpush1.xpose.msra.mxu0 0.0
        %953 = vmatprep.subr.mxu0 0.0
        %954 = vmatpush1.xpose.msra.mxu0 0.0
        %955 = vmatprep.subr.mxu0 0.0
        %956 = vmatpush1.xpose.msra.mxu0 0.0
        %957 = vmatprep.subr.mxu0 0.0
        %958 = vmatpush1.xpose.msra.mxu0 0.0
        %959 = vmatprep.subr.mxu0 0.0
        %960 = vmatpush1.xpose.msra.mxu0 0.0
        %961 = vmatprep.subr.mxu0 0.0
        %962 = vmatpush1.xpose.msra.mxu0 0.0
        %963 = vmatprep.mubr.f32.mxu0 0.0
        %964 = vmatmul.mubr.f32.gmra.mrb[0].mxu0 %v895
        %v965 = vpop.f32.mrb[0].mxu0
        %v966 = vadd.f32 0.0, %v965
        %v967 = vpop.f32.mrb[0].mxu0
        %968 = vdwg.mxu0
        %v969 = vmul.f32 %v738, 0.35355338
        %v970 = vmul.f32 %v814, 0.35355338
        %v971 = vmul.f32 %v890, 0.35355338
        %v972 = vmul.f32 %v966, 0.35355338
        %v974 = vlaneseq
        %v975 = vshrl.u32 %v974, 7
        %v976 = vsub.s32 0, %v975
        %v977 = vrot.slane %v503, %v976
        %v979 = vadd.f32 %v969, %v977
        %v980 = vadd.f32 %v970, %v977
        %v981 = vadd.f32 %v971, %v977
        %v982 = vadd.f32 %v972, %v977
        %v983 = vsel %vm666, %v979, -inf
        %984 = vmax.xlane.f32.xlu0 %v983
        %v985 = vpop.xlane.xlu0 %984
        %v986 = vsel %vm666, %v980, -inf
        %987 = vmax.xlane.f32.xlu0 %v986
        %v988 = vpop.xlane.xlu0 %987
        %v989 = vsel %vm666, %v981, -inf
        %990 = vmax.xlane.f32.xlu0 %v989
        %v991 = vpop.xlane.xlu0 %990
        %v992 = vsel %vm666, %v982, -inf
        %993 = vmax.xlane.f32.xlu0 %v992
        %v994 = vpop.xlane.xlu0 %993
        %v995 = vsub.f32 %v979, %v985
        %v996 = vsub.f32 %v980, %v988
        %v997 = vsub.f32 %v981, %v991
        %v998 = vsub.f32 %v982, %v994
        %v999 = vmul.f32 %v995, 1.442695
        %v1000 = vpow.pop %v999
        %v1001 = vmul.f32 %v996, 1.442695
        %v1002 = vpow.pop %v1001
        %v1003 = vmul.f32 %v997, 1.442695
        %v1004 = vpow.pop %v1003
        %v1005 = vmul.f32 %v998, 1.442695
        %v1006 = vpow.pop %v1005
        %v1007 = vsel %vm666, %v1000, 0.0
        %1008 = vadd.xlane.f32.xlu0 %v1007
        %v1009 = vpop.xlane.xlu0 %1008
        %v1010 = vsel %vm666, %v1002, 0.0
        %1011 = vadd.xlane.f32.xlu0 %v1010
        %v1012 = vpop.xlane.xlu0 %1011
        %v1013 = vsel %vm666, %v1004, 0.0
        %1014 = vadd.xlane.f32.xlu0 %v1013
        %v1015 = vpop.xlane.xlu0 %1014
        %v1016 = vsel %vm666, %v1006, 0.0
        %1017 = vadd.xlane.f32.xlu0 %v1016
        %v1018 = vpop.xlane.xlu0 %1017
        %v1019 = vrcp.pop %v1009
        %v1020 = vrcp.pop %v1012
        %v1021 = vrcp.pop %v1015
        %v1022 = vrcp.pop %v1018
        %v1023 = vmul.f32 %v1000, %v1019
        %v1024 = vmul.f32 %v1002, %v1020
        %v1025 = vmul.f32 %v1004, %v1021
        %v1026 = vmul.f32 %v1006, %v1022
        %1027 = vrot.lane.b32.xlu0 %v649, 64
        %v1028 = vpop.permute.xlu0 %1027
        %v1031 = vsel %vm666, %v1023, 0
        %1033 = vmatprep.subr.mxu0 0.0
        %1034 = vmatpush1.msra.mxu0 %v1028
        %1035 = vmatprep.subr.mxu0 0.0
        %1036 = vmatpush1.msra.mxu0 0.0
        %1037 = vmatprep.subr.mxu0 0.0
        %1038 = vmatpush1.msra.mxu0 0.0
        %1039 = vmatprep.subr.mxu0 0.0
        %1040 = vmatpush1.msra.mxu0 0.0
        %1041 = vmatprep.subr.mxu0 0.0
        %1042 = vmatpush1.msra.mxu0 0.0
        %1043 = vmatprep.subr.mxu0 0.0
        %1044 = vmatpush1.msra.mxu0 0.0
        %1045 = vmatprep.subr.mxu0 0.0
        %1046 = vmatpush1.msra.mxu0 0.0
        %1047 = vmatprep.subr.mxu0 0.0
        %1048 = vmatpush1.msra.mxu0 0.0
        %1049 = vmatprep.subr.mxu0 0.0
        %1050 = vmatpush1.msra.mxu0 0.0
        %1051 = vmatprep.subr.mxu0 0.0
        %1052 = vmatpush1.msra.mxu0 0.0
        %1053 = vmatprep.subr.mxu0 0.0
        %1054 = vmatpush1.msra.mxu0 0.0
        %1055 = vmatprep.subr.mxu0 0.0
        %1056 = vmatpush1.msra.mxu0 0.0
        %1057 = vmatprep.subr.mxu0 0.0
        %1058 = vmatpush1.msra.mxu0 0.0
        %1059 = vmatprep.subr.mxu0 0.0
        %1060 = vmatpush1.msra.mxu0 0.0
        %1061 = vmatprep.subr.mxu0 0.0
        %1062 = vmatpush1.msra.mxu0 0.0
        %1063 = vmatprep.subr.mxu0 0.0
        %1064 = vmatpush1.msra.mxu0 0.0
        %1065 = vmatprep.subr.mxu0 0.0
        %1066 = vmatpush1.msra.mxu0 0.0
        %1067 = vmatprep.subr.mxu0 0.0
        %1068 = vmatpush1.msra.mxu0 0.0
        %1069 = vmatprep.subr.mxu0 0.0
        %1070 = vmatpush1.msra.mxu0 0.0
        %1071 = vmatprep.subr.mxu0 0.0
        %1072 = vmatpush1.msra.mxu0 0.0
        %1073 = vmatprep.subr.mxu0 0.0
        %1074 = vmatpush1.msra.mxu0 0.0
        %1075 = vmatprep.subr.mxu0 0.0
        %1076 = vmatpush1.msra.mxu0 0.0
        %1077 = vmatprep.subr.mxu0 0.0
        %1078 = vmatpush1.msra.mxu0 0.0
        %1079 = vmatprep.subr.mxu0 0.0
        %1080 = vmatpush1.msra.mxu0 0.0
        %1081 = vmatprep.subr.mxu0 0.0
        %1082 = vmatpush1.msra.mxu0 0.0
        %1083 = vmatprep.subr.mxu0 0.0
        %1084 = vmatpush1.msra.mxu0 0.0
        %1085 = vmatprep.subr.mxu0 0.0
        %1086 = vmatpush1.msra.mxu0 0.0
        %1087 = vmatprep.subr.mxu0 0.0
        %1088 = vmatpush1.msra.mxu0 0.0
        %1089 = vmatprep.subr.mxu0 0.0
        %1090 = vmatpush1.msra.mxu0 0.0
        %1091 = vmatprep.subr.mxu0 0.0
        %1092 = vmatpush1.msra.mxu0 0.0
        %1093 = vmatprep.subr.mxu0 0.0
        %1094 = vmatpush1.msra.mxu0 0.0
        %1095 = vmatprep.subr.mxu0 0.0
        %1096 = vmatpush1.msra.mxu0 0.0
        %1097 = vmatprep.mubr.f32.mxu0 0.0
        %1098 = vmatmul.mubr.f32.gmra.mrb[0].mxu0 %v1031
        %v1099 = vpop.f32.mrb[0].mxu0
        %v1100 = vadd.f32 0.0, %v1099
        %v1101 = vpop.f32.mrb[0].mxu0
        %1102 = vdwg.mxu0
        %1103 = vrot.lane.b32.xlu0 %v659, 64
        %v1104 = vpop.permute.xlu0 %1103
        %v1107 = vsel %vm666, %v1024, 0
        %1109 = vmatprep.subr.mxu0 0.0
        %1110 = vmatpush1.msra.mxu0 %v1104
        %1111 = vmatprep.subr.mxu0 0.0
        %1112 = vmatpush1.msra.mxu0 0.0
        %1113 = vmatprep.subr.mxu0 0.0
        %1114 = vmatpush1.msra.mxu0 0.0
        %1115 = vmatprep.subr.mxu0 0.0
        %1116 = vmatpush1.msra.mxu0 0.0
        %1117 = vmatprep.subr.mxu0 0.0
        %1118 = vmatpush1.msra.mxu0 0.0
        %1119 = vmatprep.subr.mxu0 0.0
        %1120 = vmatpush1.msra.mxu0 0.0
        %1121 = vmatprep.subr.mxu0 0.0
        %1122 = vmatpush1.msra.mxu0 0.0
        %1123 = vmatprep.subr.mxu0 0.0
        %1124 = vmatpush1.msra.mxu0 0.0
        %1125 = vmatprep.subr.mxu0 0.0
        %1126 = vmatpush1.msra.mxu0 0.0
        %1127 = vmatprep.subr.mxu0 0.0
        %1128 = vmatpush1.msra.mxu0 0.0
        %1129 = vmatprep.subr.mxu0 0.0
        %1130 = vmatpush1.msra.mxu0 0.0
        %1131 = vmatprep.subr.mxu0 0.0
        %1132 = vmatpush1.msra.mxu0 0.0
        %1133 = vmatprep.subr.mxu0 0.0
        %1134 = vmatpush1.msra.mxu0 0.0
        %1135 = vmatprep.subr.mxu0 0.0
        %1136 = vmatpush1.msra.mxu0 0.0
        %1137 = vmatprep.subr.mxu0 0.0
        %1138 = vmatpush1.msra.mxu0 0.0
        %1139 = vmatprep.subr.mxu0 0.0
        %1140 = vmatpush1.msra.mxu0 0.0
        %1141 = vmatprep.subr.mxu0 0.0
        %1142 = vmatpush1.msra.mxu0 0.0
        %1143 = vmatprep.subr.mxu0 0.0
        %1144 = vmatpush1.msra.mxu0 0.0
        %1145 = vmatprep.subr.mxu0 0.0
        %1146 = vmatpush1.msra.mxu0 0.0
        %1147 = vmatprep.subr.mxu0 0.0
        %1148 = vmatpush1.msra.mxu0 0.0
        %1149 = vmatprep.subr.mxu0 0.0
        %1150 = vmatpush1.msra.mxu0 0.0
        %1151 = vmatprep.subr.mxu0 0.0
        %1152 = vmatpush1.msra.mxu0 0.0
        %1153 = vmatprep.subr.mxu0 0.0
        %1154 = vmatpush1.msra.mxu0 0.0
        %1155 = vmatprep.subr.mxu0 0.0
        %1156 = vmatpush1.msra.mxu0 0.0
        %1157 = vmatprep.subr.mxu0 0.0
        %1158 = vmatpush1.msra.mxu0 0.0
        %1159 = vmatprep.subr.mxu0 0.0
        %1160 = vmatpush1.msra.mxu0 0.0
        %1161 = vmatprep.subr.mxu0 0.0
        %1162 = vmatpush1.msra.mxu0 0.0
        %1163 = vmatprep.subr.mxu0 0.0
        %1164 = vmatpush1.msra.mxu0 0.0
        %1165 = vmatprep.subr.mxu0 0.0
        %1166 = vmatpush1.msra.mxu0 0.0
        %1167 = vmatprep.subr.mxu0 0.0
        %1168 = vmatpush1.msra.mxu0 0.0
        %1169 = vmatprep.subr.mxu0 0.0
        %1170 = vmatpush1.msra.mxu0 0.0
        %1171 = vmatprep.subr.mxu0 0.0
        %1172 = vmatpush1.msra.mxu0 0.0
        %1173 = vmatprep.mubr.f32.mxu0 0.0
        %1174 = vmatmul.mubr.f32.gmra.mrb[0].mxu0 %v1107
        %v1175 = vpop.f32.mrb[0].mxu0
        %v1176 = vadd.f32 0.0, %v1175
        %v1177 = vpop.f32.mrb[0].mxu0
        %1178 = vdwg.mxu0
        %1179 = vrot.lane.b32.xlu0 %v661, 64
        %v1180 = vpop.permute.xlu0 %1179
        %v1183 = vsel %vm666, %v1025, 0
        %1185 = vmatprep.subr.mxu0 0.0
        %1186 = vmatpush1.msra.mxu0 %v1180
        %1187 = vmatprep.subr.mxu0 0.0
        %1188 = vmatpush1.msra.mxu0 0.0
        %1189 = vmatprep.subr.mxu0 0.0
        %1190 = vmatpush1.msra.mxu0 0.0
        %1191 = vmatprep.subr.mxu0 0.0
        %1192 = vmatpush1.msra.mxu0 0.0
        %1193 = vmatprep.subr.mxu0 0.0
        %1194 = vmatpush1.msra.mxu0 0.0
        %1195 = vmatprep.subr.mxu0 0.0
        %1196 = vmatpush1.msra.mxu0 0.0
        %1197 = vmatprep.subr.mxu0 0.0
        %1198 = vmatpush1.msra.mxu0 0.0
        %1199 = vmatprep.subr.mxu0 0.0
        %1200 = vmatpush1.msra.mxu0 0.0
        %1201 = vmatprep.subr.mxu0 0.0
        %1202 = vmatpush1.msra.mxu0 0.0
        %1203 = vmatprep.subr.mxu0 0.0
        %1204 = vmatpush1.msra.mxu0 0.0
        %1205 = vmatprep.subr.mxu0 0.0
        %1206 = vmatpush1.msra.mxu0 0.0
        %1207 = vmatprep.subr.mxu0 0.0
        %1208 = vmatpush1.msra.mxu0 0.0
        %1209 = vmatprep.subr.mxu0 0.0
        %1210 = vmatpush1.msra.mxu0 0.0
        %1211 = vmatprep.subr.mxu0 0.0
        %1212 = vmatpush1.msra.mxu0 0.0
        %1213 = vmatprep.subr.mxu0 0.0
        %1214 = vmatpush1.msra.mxu0 0.0
        %1215 = vmatprep.subr.mxu0 0.0
        %1216 = vmatpush1.msra.mxu0 0.0
        %1217 = vmatprep.subr.mxu0 0.0
        %1218 = vmatpush1.msra.mxu0 0.0
        %1219 = vmatprep.subr.mxu0 0.0
        %1220 = vmatpush1.msra.mxu0 0.0
        %1221 = vmatprep.subr.mxu0 0.0
        %1222 = vmatpush1.msra.mxu0 0.0
        %1223 = vmatprep.subr.mxu0 0.0
        %1224 = vmatpush1.msra.mxu0 0.0
        %1225 = vmatprep.subr.mxu0 0.0
        %1226 = vmatpush1.msra.mxu0 0.0
        %1227 = vmatprep.subr.mxu0 0.0
        %1228 = vmatpush1.msra.mxu0 0.0
        %1229 = vmatprep.subr.mxu0 0.0
        %1230 = vmatpush1.msra.mxu0 0.0
        %1231 = vmatprep.subr.mxu0 0.0
        %1232 = vmatpush1.msra.mxu0 0.0
        %1233 = vmatprep.subr.mxu0 0.0
        %1234 = vmatpush1.msra.mxu0 0.0
        %1235 = vmatprep.subr.mxu0 0.0
        %1236 = vmatpush1.msra.mxu0 0.0
        %1237 = vmatprep.subr.mxu0 0.0
        %1238 = vmatpush1.msra.mxu0 0.0
        %1239 = vmatprep.subr.mxu0 0.0
        %1240 = vmatpush1.msra.mxu0 0.0
        %1241 = vmatprep.subr.mxu0 0.0
        %1242 = vmatpush1.msra.mxu0 0.0
        %1243 = vmatprep.subr.mxu0 0.0
        %1244 = vmatpush1.msra.mxu0 0.0
        %1245 = vmatprep.subr.mxu0 0.0
        %1246 = vmatpush1.msra.mxu0 0.0
        %1247 = vmatprep.subr.mxu0 0.0
        %1248 = vmatpush1.msra.mxu0 0.0
        %1249 = vmatprep.mubr.f32.mxu0 0.0
        %1250 = vmatmul.mubr.f32.gmra.mrb[0].mxu0 %v1183
        %v1251 = vpop.f32.mrb[0].mxu0
        %v1252 = vadd.f32 0.0, %v1251
        %v1253 = vpop.f32.mrb[0].mxu0
        %1254 = vdwg.mxu0
        %1255 = vrot.lane.b32.xlu0 %v663, 64
        %v1256 = vpop.permute.xlu0 %1255
        %v1259 = vsel %vm666, %v1026, 0
        %1261 = vmatprep.subr.mxu0 0.0
        %1262 = vmatpush1.msra.mxu0 %v1256
        %1263 = vmatprep.subr.mxu0 0.0
        %1264 = vmatpush1.msra.mxu0 0.0
        %1265 = vmatprep.subr.mxu0 0.0
        %1266 = vmatpush1.msra.mxu0 0.0
        %1267 = vmatprep.subr.mxu0 0.0
        %1268 = vmatpush1.msra.mxu0 0.0
        %1269 = vmatprep.subr.mxu0 0.0
        %1270 = vmatpush1.msra.mxu0 0.0
        %1271 = vmatprep.subr.mxu0 0.0
        %1272 = vmatpush1.msra.mxu0 0.0
        %1273 = vmatprep.subr.mxu0 0.0
        %1274 = vmatpush1.msra.mxu0 0.0
        %1275 = vmatprep.subr.mxu0 0.0
        %1276 = vmatpush1.msra.mxu0 0.0
        %1277 = vmatprep.subr.mxu0 0.0
        %1278 = vmatpush1.msra.mxu0 0.0
        %1279 = vmatprep.subr.mxu0 0.0
        %1280 = vmatpush1.msra.mxu0 0.0
        %1281 = vmatprep.subr.mxu0 0.0
        %1282 = vmatpush1.msra.mxu0 0.0
        %1283 = vmatprep.subr.mxu0 0.0
        %1284 = vmatpush1.msra.mxu0 0.0
        %1285 = vmatprep.subr.mxu0 0.0
        %1286 = vmatpush1.msra.mxu0 0.0
        %1287 = vmatprep.subr.mxu0 0.0
        %1288 = vmatpush1.msra.mxu0 0.0
        %1289 = vmatprep.subr.mxu0 0.0
        %1290 = vmatpush1.msra.mxu0 0.0
        %1291 = vmatprep.subr.mxu0 0.0
        %1292 = vmatpush1.msra.mxu0 0.0
        %1293 = vmatprep.subr.mxu0 0.0
        %1294 = vmatpush1.msra.mxu0 0.0
        %1295 = vmatprep.subr.mxu0 0.0
        %1296 = vmatpush1.msra.mxu0 0.0
        %1297 = vmatprep.subr.mxu0 0.0
        %1298 = vmatpush1.msra.mxu0 0.0
        %1299 = vmatprep.subr.mxu0 0.0
        %1300 = vmatpush1.msra.mxu0 0.0
        %1301 = vmatprep.subr.mxu0 0.0
        %1302 = vmatpush1.msra.mxu0 0.0
        %1303 = vmatprep.subr.mxu0 0.0
        %1304 = vmatpush1.msra.mxu0 0.0
        %1305 = vmatprep.subr.mxu0 0.0
        %1306 = vmatpush1.msra.mxu0 0.0
        %1307 = vmatprep.subr.mxu0 0.0
        %1308 = vmatpush1.msra.mxu0 0.0
        %1309 = vmatprep.subr.mxu0 0.0
        %1310 = vmatpush1.msra.mxu0 0.0
        %1311 = vmatprep.subr.mxu0 0.0
        %1312 = vmatpush1.msra.mxu0 0.0
        %1313 = vmatprep.subr.mxu0 0.0
        %1314 = vmatpush1.msra.mxu0 0.0
        %1315 = vmatprep.subr.mxu0 0.0
        %1316 = vmatpush1.msra.mxu0 0.0
        %1317 = vmatprep.subr.mxu0 0.0
        %1318 = vmatpush1.msra.mxu0 0.0
        %1319 = vmatprep.subr.mxu0 0.0
        %1320 = vmatpush1.msra.mxu0 0.0
        %1321 = vmatprep.subr.mxu0 0.0
        %1322 = vmatpush1.msra.mxu0 0.0
        %1323 = vmatprep.subr.mxu0 0.0
        %1324 = vmatpush1.msra.mxu0 0.0
        %1325 = vmatprep.mubr.f32.mxu0 0.0
        %1326 = vmatmul.mubr.f32.gmra.mrb[0].mxu0 %v1259
        %v1327 = vpop.f32.mrb[0].mxu0
        %v1328 = vadd.f32 0.0, %v1327
        %v1329 = vpop.f32.mrb[0].mxu0
        %1330 = vdwg.mxu0
        %v1331 = vld [vmem:[%s6] sm:$0xff]
        %v1332 = vld [vmem:[%s6 + $0x8] sm:$0xff]
        %v1333 = vld [vmem:[%s6 + $0x10] sm:$0xff]
        %v1334 = vld [vmem:[%s6 + $0x18] sm:$0xff]
        %v1336 = vsel %vm666, %v1100, 0
        %1338 = vmatprep.subr.mxu0 0.0
        %1339 = vmatpush1.msra.mxu0 %v1331
        %1340 = vmatprep.subr.mxu0 0.0
        %1341 = vmatpush1.msra.mxu0 0.0
        %1342 = vmatprep.subr.mxu0 0.0
        %1343 = vmatpush1.msra.mxu0 0.0
        %1344 = vmatprep.subr.mxu0 0.0
        %1345 = vmatpush1.msra.mxu0 0.0
        %1346 = vmatprep.subr.mxu0 0.0
        %1347 = vmatpush1.msra.mxu0 0.0
        %1348 = vmatprep.subr.mxu0 0.0
        %1349 = vmatpush1.msra.mxu0 0.0
        %1350 = vmatprep.subr.mxu0 0.0
        %1351 = vmatpush1.msra.mxu0 0.0
        %1352 = vmatprep.subr.mxu0 0.0
        %1353 = vmatpush1.msra.mxu0 0.0
        %1354 = vmatprep.subr.mxu0 0.0
        %1355 = vmatpush1.msra.mxu0 0.0
        %1356 = vmatprep.subr.mxu0 0.0
        %1357 = vmatpush1.msra.mxu0 0.0
        %1358 = vmatprep.subr.mxu0 0.0
        %1359 = vmatpush1.msra.mxu0 0.0
        %1360 = vmatprep.subr.mxu0 0.0
        %1361 = vmatpush1.msra.mxu0 0.0
        %1362 = vmatprep.subr.mxu0 0.0
        %1363 = vmatpush1.msra.mxu0 0.0
        %1364 = vmatprep.subr.mxu0 0.0
        %1365 = vmatpush1.msra.mxu0 0.0
        %1366 = vmatprep.subr.mxu0 0.0
        %1367 = vmatpush1.msra.mxu0 0.0
        %1368 = vmatprep.subr.mxu0 0.0
        %1369 = vmatpush1.msra.mxu0 0.0
        %1370 = vmatprep.subr.mxu0 0.0
        %1371 = vmatpush1.msra.mxu0 0.0
        %1372 = vmatprep.subr.mxu0 0.0
        %1373 = vmatpush1.msra.mxu0 0.0
        %1374 = vmatprep.subr.mxu0 0.0
        %1375 = vmatpush1.msra.mxu0 0.0
        %1376 = vmatprep.subr.mxu0 0.0
        %1377 = vmatpush1.msra.mxu0 0.0
        %1378 = vmatprep.subr.mxu0 0.0
        %1379 = vmatpush1.msra.mxu0 0.0
        %1380 = vmatprep.subr.mxu0 0.0
        %1381 = vmatpush1.msra.mxu0 0.0
        %1382 = vmatprep.subr.mxu0 0.0
        %1383 = vmatpush1.msra.mxu0 0.0
        %1384 = vmatprep.subr.mxu0 0.0
        %1385 = vmatpush1.msra.mxu0 0.0
        %1386 = vmatprep.subr.mxu0 0.0
        %1387 = vmatpush1.msra.mxu0 0.0
        %1388 = vmatprep.subr.mxu0 0.0
        %1389 = vmatpush1.msra.mxu0 0.0
        %1390 = vmatprep.subr.mxu0 0.0
        %1391 = vmatpush1.msra.mxu0 0.0
        %1392 = vmatprep.subr.mxu0 0.0
        %1393 = vmatpush1.msra.mxu0 0.0
        %1394 = vmatprep.subr.mxu0 0.0
        %1395 = vmatpush1.msra.mxu0 0.0
        %1396 = vmatprep.subr.mxu0 0.0
        %1397 = vmatpush1.msra.mxu0 0.0
        %1398 = vmatprep.subr.mxu0 0.0
        %1399 = vmatpush1.msra.mxu0 0.0
        %1400 = vmatprep.subr.mxu0 0.0
        %1401 = vmatpush1.msra.mxu0 0.0
        %1402 = vmatprep.mubr.f32.mxu0 0.0
        %1403 = vmatmul.mubr.f32.gmra.mrb[0].mxu0 %v1336
        %v1404 = vpop.f32.mrb[0].mxu0
        %v1405 = vadd.f32 0.0, %v1404
        %v1406 = vpop.f32.mrb[0].mxu0
        %1407 = vdwg.mxu0
        %v1409 = vsel %vm666, %v1176, 0
        %1411 = vmatprep.subr.mxu0 0.0
        %1412 = vmatpush1.msra.mxu0 %v1332
        %1413 = vmatprep.subr.mxu0 0.0
        %1414 = vmatpush1.msra.mxu0 0.0
        %1415 = vmatprep.subr.mxu0 0.0
        %1416 = vmatpush1.msra.mxu0 0.0
        %1417 = vmatprep.subr.mxu0 0.0
        %1418 = vmatpush1.msra.mxu0 0.0
        %1419 = vmatprep.subr.mxu0 0.0
        %1420 = vmatpush1.msra.mxu0 0.0
        %1421 = vmatprep.subr.mxu0 0.0
        %1422 = vmatpush1.msra.mxu0 0.0
        %1423 = vmatprep.subr.mxu0 0.0
        %1424 = vmatpush1.msra.mxu0 0.0
        %1425 = vmatprep.subr.mxu0 0.0
        %1426 = vmatpush1.msra.mxu0 0.0
        %1427 = vmatprep.subr.mxu0 0.0
        %1428 = vmatpush1.msra.mxu0 0.0
        %1429 = vmatprep.subr.mxu0 0.0
        %1430 = vmatpush1.msra.mxu0 0.0
        %1431 = vmatprep.subr.mxu0 0.0
        %1432 = vmatpush1.msra.mxu0 0.0
        %1433 = vmatprep.subr.mxu0 0.0
        %1434 = vmatpush1.msra.mxu0 0.0
        %1435 = vmatprep.subr.mxu0 0.0
        %1436 = vmatpush1.msra.mxu0 0.0
        %1437 = vmatprep.subr.mxu0 0.0
        %1438 = vmatpush1.msra.mxu0 0.0
        %1439 = vmatprep.subr.mxu0 0.0
        %1440 = vmatpush1.msra.mxu0 0.0
        %1441 = vmatprep.subr.mxu0 0.0
        %1442 = vmatpush1.msra.mxu0 0.0
        %1443 = vmatprep.subr.mxu0 0.0
        %1444 = vmatpush1.msra.mxu0 0.0
        %1445 = vmatprep.subr.mxu0 0.0
        %1446 = vmatpush1.msra.mxu0 0.0
        %1447 = vmatprep.subr.mxu0 0.0
        %1448 = vmatpush1.msra.mxu0 0.0
        %1449 = vmatprep.subr.mxu0 0.0
        %1450 = vmatpush1.msra.mxu0 0.0
        %1451 = vmatprep.subr.mxu0 0.0
        %1452 = vmatpush1.msra.mxu0 0.0
        %1453 = vmatprep.subr.mxu0 0.0
        %1454 = vmatpush1.msra.mxu0 0.0
        %1455 = vmatprep.subr.mxu0 0.0
        %1456 = vmatpush1.msra.mxu0 0.0
        %1457 = vmatprep.subr.mxu0 0.0
        %1458 = vmatpush1.msra.mxu0 0.0
        %1459 = vmatprep.subr.mxu0 0.0
        %1460 = vmatpush1.msra.mxu0 0.0
        %1461 = vmatprep.subr.mxu0 0.0
        %1462 = vmatpush1.msra.mxu0 0.0
        %1463 = vmatprep.subr.mxu0 0.0
        %1464 = vmatpush1.msra.mxu0 0.0
        %1465 = vmatprep.subr.mxu0 0.0
        %1466 = vmatpush1.msra.mxu0 0.0
        %1467 = vmatprep.subr.mxu0 0.0
        %1468 = vmatpush1.msra.mxu0 0.0
        %1469 = vmatprep.subr.mxu0 0.0
        %1470 = vmatpush1.msra.mxu0 0.0
        %1471 = vmatprep.subr.mxu0 0.0
        %1472 = vmatpush1.msra.mxu0 0.0
        %1473 = vmatprep.subr.mxu0 0.0
        %1474 = vmatpush1.msra.mxu0 0.0
        %1475 = vmatprep.mubr.f32.mxu0 0.0
        %1476 = vmatmul.mubr.f32.gmra.mrb[0].mxu0 %v1409
        %v1477 = vpop.f32.mrb[0].mxu0
        %v1478 = vadd.f32 0.0, %v1477
        %v1479 = vpop.f32.mrb[0].mxu0
        %1480 = vdwg.mxu0
        %v1482 = vsel %vm666, %v1252, 0
        %1484 = vmatprep.subr.mxu0 0.0
        %1485 = vmatpush1.msra.mxu0 %v1333
        %1486 = vmatprep.subr.mxu0 0.0
        %1487 = vmatpush1.msra.mxu0 0.0
        %1488 = vmatprep.subr.mxu0 0.0
        %1489 = vmatpush1.msra.mxu0 0.0
        %1490 = vmatprep.subr.mxu0 0.0
        %1491 = vmatpush1.msra.mxu0 0.0
        %1492 = vmatprep.subr.mxu0 0.0
        %1493 = vmatpush1.msra.mxu0 0.0
        %1494 = vmatprep.subr.mxu0 0.0
        %1495 = vmatpush1.msra.mxu0 0.0
        %1496 = vmatprep.subr.mxu0 0.0
        %1497 = vmatpush1.msra.mxu0 0.0
        %1498 = vmatprep.subr.mxu0 0.0
        %1499 = vmatpush1.msra.mxu0 0.0
        %1500 = vmatprep.subr.mxu0 0.0
        %1501 = vmatpush1.msra.mxu0 0.0
        %1502 = vmatprep.subr.mxu0 0.0
        %1503 = vmatpush1.msra.mxu0 0.0
        %1504 = vmatprep.subr.mxu0 0.0
        %1505 = vmatpush1.msra.mxu0 0.0
        %1506 = vmatprep.subr.mxu0 0.0
        %1507 = vmatpush1.msra.mxu0 0.0
        %1508 = vmatprep.subr.mxu0 0.0
        %1509 = vmatpush1.msra.mxu0 0.0
        %1510 = vmatprep.subr.mxu0 0.0
        %1511 = vmatpush1.msra.mxu0 0.0
        %1512 = vmatprep.subr.mxu0 0.0
        %1513 = vmatpush1.msra.mxu0 0.0
        %1514 = vmatprep.subr.mxu0 0.0
        %1515 = vmatpush1.msra.mxu0 0.0
        %1516 = vmatprep.subr.mxu0 0.0
        %1517 = vmatpush1.msra.mxu0 0.0
        %1518 = vmatprep.subr.mxu0 0.0
        %1519 = vmatpush1.msra.mxu0 0.0
        %1520 = vmatprep.subr.mxu0 0.0
        %1521 = vmatpush1.msra.mxu0 0.0
        %1522 = vmatprep.subr.mxu0 0.0
        %1523 = vmatpush1.msra.mxu0 0.0
        %1524 = vmatprep.subr.mxu0 0.0
        %1525 = vmatpush1.msra.mxu0 0.0
        %1526 = vmatprep.subr.mxu0 0.0
        %1527 = vmatpush1.msra.mxu0 0.0
        %1528 = vmatprep.subr.mxu0 0.0
        %1529 = vmatpush1.msra.mxu0 0.0
        %1530 = vmatprep.subr.mxu0 0.0
        %1531 = vmatpush1.msra.mxu0 0.0
        %1532 = vmatprep.subr.mxu0 0.0
        %1533 = vmatpush1.msra.mxu0 0.0
        %1534 = vmatprep.subr.mxu0 0.0
        %1535 = vmatpush1.msra.mxu0 0.0
        %1536 = vmatprep.subr.mxu0 0.0
        %1537 = vmatpush1.msra.mxu0 0.0
        %1538 = vmatprep.subr.mxu0 0.0
        %1539 = vmatpush1.msra.mxu0 0.0
        %1540 = vmatprep.subr.mxu0 0.0
        %1541 = vmatpush1.msra.mxu0 0.0
        %1542 = vmatprep.subr.mxu0 0.0
        %1543 = vmatpush1.msra.mxu0 0.0
        %1544 = vmatprep.subr.mxu0 0.0
        %1545 = vmatpush1.msra.mxu0 0.0
        %1546 = vmatprep.subr.mxu0 0.0
        %1547 = vmatpush1.msra.mxu0 0.0
        %1548 = vmatprep.mubr.f32.mxu0 0.0
        %1549 = vmatmul.mubr.f32.gmra.mrb[0].mxu0 %v1482
        %v1550 = vpop.f32.mrb[0].mxu0
        %v1551 = vadd.f32 0.0, %v1550
        %v1552 = vpop.f32.mrb[0].mxu0
        %1553 = vdwg.mxu0
        %v1555 = vsel %vm666, %v1328, 0
        %1557 = vmatprep.subr.mxu0 0.0
        %1558 = vmatpush1.msra.mxu0 %v1334
        %1559 = vmatprep.subr.mxu0 0.0
        %1560 = vmatpush1.msra.mxu0 0.0
        %1561 = vmatprep.subr.mxu0 0.0
        %1562 = vmatpush1.msra.mxu0 0.0
        %1563 = vmatprep.subr.mxu0 0.0
        %1564 = vmatpush1.msra.mxu0 0.0
        %1565 = vmatprep.subr.mxu0 0.0
        %1566 = vmatpush1.msra.mxu0 0.0
        %1567 = vmatprep.subr.mxu0 0.0
        %1568 = vmatpush1.msra.mxu0 0.0
        %1569 = vmatprep.subr.mxu0 0.0
        %1570 = vmatpush1.msra.mxu0 0.0
        %1571 = vmatprep.subr.mxu0 0.0
        %1572 = vmatpush1.msra.mxu0 0.0
        %1573 = vmatprep.subr.mxu0 0.0
        %1574 = vmatpush1.msra.mxu0 0.0
        %1575 = vmatprep.subr.mxu0 0.0
        %1576 = vmatpush1.msra.mxu0 0.0
        %1577 = vmatprep.subr.mxu0 0.0
        %1578 = vmatpush1.msra.mxu0 0.0
        %1579 = vmatprep.subr.mxu0 0.0
        %1580 = vmatpush1.msra.mxu0 0.0
        %1581 = vmatprep.subr.mxu0 0.0
        %1582 = vmatpush1.msra.mxu0 0.0
        %1583 = vmatprep.subr.mxu0 0.0
        %1584 = vmatpush1.msra.mxu0 0.0
        %1585 = vmatprep.subr.mxu0 0.0
        %1586 = vmatpush1.msra.mxu0 0.0
        %1587 = vmatprep.subr.mxu0 0.0
        %1588 = vmatpush1.msra.mxu0 0.0
        %1589 = vmatprep.subr.mxu0 0.0
        %1590 = vmatpush1.msra.mxu0 0.0
        %1591 = vmatprep.subr.mxu0 0.0
        %1592 = vmatpush1.msra.mxu0 0.0
        %1593 = vmatprep.subr.mxu0 0.0
        %1594 = vmatpush1.msra.mxu0 0.0
        %1595 = vmatprep.subr.mxu0 0.0
        %1596 = vmatpush1.msra.mxu0 0.0
        %1597 = vmatprep.subr.mxu0 0.0
        %1598 = vmatpush1.msra.mxu0 0.0
        %1599 = vmatprep.subr.mxu0 0.0
        %1600 = vmatpush1.msra.mxu0 0.0
        %1601 = vmatprep.subr.mxu0 0.0
        %1602 = vmatpush1.msra.mxu0 0.0
        %1603 = vmatprep.subr.mxu0 0.0
        %1604 = vmatpush1.msra.mxu0 0.0
        %1605 = vmatprep.subr.mxu0 0.0
        %1606 = vmatpush1.msra.mxu0 0.0
        %1607 = vmatprep.subr.mxu0 0.0
        %1608 = vmatpush1.msra.mxu0 0.0
        %1609 = vmatprep.subr.mxu0 0.0
        %1610 = vmatpush1.msra.mxu0 0.0
        %1611 = vmatprep.subr.mxu0 0.0
        %1612 = vmatpush1.msra.mxu0 0.0
        %1613 = vmatprep.subr.mxu0 0.0
        %1614 = vmatpush1.msra.mxu0 0.0
        %1615 = vmatprep.subr.mxu0 0.0
        %1616 = vmatpush1.msra.mxu0 0.0
        %1617 = vmatprep.subr.mxu0 0.0
        %1618 = vmatpush1.msra.mxu0 0.0
        %1619 = vmatprep.subr.mxu0 0.0
        %1620 = vmatpush1.msra.mxu0 0.0
        %1621 = vmatprep.mubr.f32.mxu0 0.0
        %1622 = vmatmul.mubr.f32.gmra.mrb[0].mxu0 %v1555
        %v1623 = vpop.f32.mrb[0].mxu0
        %v1624 = vadd.f32 0.0, %v1623
        %v1625 = vpop.f32.mrb[0].mxu0
        %1626 = vdwg.mxu0
        %v1627 = vsel %vm507, %v1405, 0.0
        %v1628 = vsel %vm507, %v1478, 0.0
        %v1629 = vadd.f32 %v1627, %v1628
        %v1630 = vsel %vm507, %v1551, 0.0
        %v1631 = vadd.f32 %v1629, %v1630
        %v1632 = vsel %vm507, %v1624, 0.0
        %v1633 = vadd.f32 %v1631, %v1632
        %1635 = vrot.lane.b32.xlu0 %v654, 120
        %v1636 = vpop.permute.xlu0 %1635
        %1637 = vrot.lane.b32.xlu0 %v654, 112
        %v1638 = vpop.permute.xlu0 %1637
        %1639 = vrot.lane.b32.xlu0 %v654, 104
        %v1640 = vpop.permute.xlu0 %1639
        %1641 = vrot.lane.b32.xlu0 %v654, 96
        %v1642 = vpop.permute.xlu0 %1641
        %v1643 = vsel %vm666, %v654, 0
        %v1645 = vsel %vm666, %v1642, 0
        %1647 = vmatprep.subr.mxu0 0.0
        %1648 = vmatpush1.xpose.msra.mxu0 %v1645
        %1649 = vmatprep.subr.mxu0 0.0
        %1650 = vmatpush1.xpose.msra.mxu0 0.0
        %1651 = vmatprep.subr.mxu0 0.0
        %1652 = vmatpush1.xpose.msra.mxu0 0.0
        %1653 = vmatprep.subr.mxu0 0.0
        %1654 = vmatpush1.xpose.msra.mxu0 0.0
        %1655 = vmatprep.subr.mxu0 0.0
        %1656 = vmatpush1.xpose.msra.mxu0 0.0
        %1657 = vmatprep.subr.mxu0 0.0
        %1658 = vmatpush1.xpose.msra.mxu0 0.0
        %1659 = vmatprep.subr.mxu0 0.0
        %1660 = vmatpush1.xpose.msra.mxu0 0.0
        %1661 = vmatprep.subr.mxu0 0.0
        %1662 = vmatpush1.xpose.msra.mxu0 0.0
        %1663 = vmatprep.subr.mxu0 0.0
        %1664 = vmatpush1.xpose.msra.mxu0 0.0
        %1665 = vmatprep.subr.mxu0 0.0
        %1666 = vmatpush1.xpose.msra.mxu0 0.0
        %1667 = vmatprep.subr.mxu0 0.0
        %1668 = vmatpush1.xpose.msra.mxu0 0.0
        %1669 = vmatprep.subr.mxu0 0.0
        %1670 = vmatpush1.xpose.msra.mxu0 0.0
        %1671 = vmatprep.subr.mxu0 0.0
        %1672 = vmatpush1.xpose.msra.mxu0 0.0
        %1673 = vmatprep.subr.mxu0 0.0
        %1674 = vmatpush1.xpose.msra.mxu0 0.0
        %1675 = vmatprep.subr.mxu0 0.0
        %1676 = vmatpush1.xpose.msra.mxu0 0.0
        %1677 = vmatprep.subr.mxu0 0.0
        %1678 = vmatpush1.xpose.msra.mxu0 0.0
        %1679 = vmatprep.subr.mxu0 0.0
        %1680 = vmatpush1.xpose.msra.mxu0 0.0
        %1681 = vmatprep.subr.mxu0 0.0
        %1682 = vmatpush1.xpose.msra.mxu0 0.0
        %1683 = vmatprep.subr.mxu0 0.0
        %1684 = vmatpush1.xpose.msra.mxu0 0.0
        %1685 = vmatprep.subr.mxu0 0.0
        %1686 = vmatpush1.xpose.msra.mxu0 0.0
        %1687 = vmatprep.subr.mxu0 0.0
        %1688 = vmatpush1.xpose.msra.mxu0 0.0
        %1689 = vmatprep.subr.mxu0 0.0
        %1690 = vmatpush1.xpose.msra.mxu0 0.0
        %1691 = vmatprep.subr.mxu0 0.0
        %1692 = vmatpush1.xpose.msra.mxu0 0.0
        %1693 = vmatprep.subr.mxu0 0.0
        %1694 = vmatpush1.xpose.msra.mxu0 0.0
        %1695 = vmatprep.subr.mxu0 0.0
        %1696 = vmatpush1.xpose.msra.mxu0 0.0
        %1697 = vmatprep.subr.mxu0 0.0
        %1698 = vmatpush1.xpose.msra.mxu0 0.0
        %1699 = vmatprep.subr.mxu0 0.0
        %1700 = vmatpush1.xpose.msra.mxu0 0.0
        %1701 = vmatprep.subr.mxu0 0.0
        %1702 = vmatpush1.xpose.msra.mxu0 0.0
        %1703 = vmatprep.subr.mxu0 0.0
        %1704 = vmatpush1.xpose.msra.mxu0 0.0
        %1705 = vmatprep.subr.mxu0 0.0
        %1706 = vmatpush1.xpose.msra.mxu0 0.0
        %1707 = vmatprep.subr.mxu0 0.0
        %1708 = vmatpush1.xpose.msra.mxu0 0.0
        %1709 = vmatprep.subr.mxu0 0.0
        %1710 = vmatpush1.xpose.msra.mxu0 0.0
        %1711 = vmatprep.mubr.f32.mxu0 0.0
        %1712 = vmatmul.mubr.f32.gmra.mrb[0].mxu0 %v1643
        %v1713 = vpop.f32.mrb[0].mxu0
        %v1714 = vadd.f32 0.0, %v1713
        %v1715 = vpop.f32.mrb[0].mxu0
        %1716 = vdwg.mxu0
        %1717 = vrot.lane.b32.xlu0 %v1636, 96
        %v1718 = vpop.permute.xlu0 %1717
        %v1719 = vsel %vm666, %v1636, 0
        %v1721 = vsel %vm666, %v1718, 0
        %1723 = vmatprep.subr.mxu0 0.0
        %1724 = vmatpush1.xpose.msra.mxu0 %v1721
        %1725 = vmatprep.subr.mxu0 0.0
        %1726 = vmatpush1.xpose.msra.mxu0 0.0
        %1727 = vmatprep.subr.mxu0 0.0
        %1728 = vmatpush1.xpose.msra.mxu0 0.0
        %1729 = vmatprep.subr.mxu0 0.0
        %1730 = vmatpush1.xpose.msra.mxu0 0.0
        %1731 = vmatprep.subr.mxu0 0.0
        %1732 = vmatpush1.xpose.msra.mxu0 0.0
        %1733 = vmatprep.subr.mxu0 0.0
        %1734 = vmatpush1.xpose.msra.mxu0 0.0
        %1735 = vmatprep.subr.mxu0 0.0
        %1736 = vmatpush1.xpose.msra.mxu0 0.0
        %1737 = vmatprep.subr.mxu0 0.0
        %1738 = vmatpush1.xpose.msra.mxu0 0.0
        %1739 = vmatprep.subr.mxu0 0.0
        %1740 = vmatpush1.xpose.msra.mxu0 0.0
        %1741 = vmatprep.subr.mxu0 0.0
        %1742 = vmatpush1.xpose.msra.mxu0 0.0
        %1743 = vmatprep.subr.mxu0 0.0
        %1744 = vmatpush1.xpose.msra.mxu0 0.0
        %1745 = vmatprep.subr.mxu0 0.0
        %1746 = vmatpush1.xpose.msra.mxu0 0.0
        %1747 = vmatprep.subr.mxu0 0.0
        %1748 = vmatpush1.xpose.msra.mxu0 0.0
        %1749 = vmatprep.subr.mxu0 0.0
        %1750 = vmatpush1.xpose.msra.mxu0 0.0
        %1751 = vmatprep.subr.mxu0 0.0
        %1752 = vmatpush1.xpose.msra.mxu0 0.0
        %1753 = vmatprep.subr.mxu0 0.0
        %1754 = vmatpush1.xpose.msra.mxu0 0.0
        %1755 = vmatprep.subr.mxu0 0.0
        %1756 = vmatpush1.xpose.msra.mxu0 0.0
        %1757 = vmatprep.subr.mxu0 0.0
        %1758 = vmatpush1.xpose.msra.mxu0 0.0
        %1759 = vmatprep.subr.mxu0 0.0
        %1760 = vmatpush1.xpose.msra.mxu0 0.0
        %1761 = vmatprep.subr.mxu0 0.0
        %1762 = vmatpush1.xpose.msra.mxu0 0.0
        %1763 = vmatprep.subr.mxu0 0.0
        %1764 = vmatpush1.xpose.msra.mxu0 0.0
        %1765 = vmatprep.subr.mxu0 0.0
        %1766 = vmatpush1.xpose.msra.mxu0 0.0
        %1767 = vmatprep.subr.mxu0 0.0
        %1768 = vmatpush1.xpose.msra.mxu0 0.0
        %1769 = vmatprep.subr.mxu0 0.0
        %1770 = vmatpush1.xpose.msra.mxu0 0.0
        %1771 = vmatprep.subr.mxu0 0.0
        %1772 = vmatpush1.xpose.msra.mxu0 0.0
        %1773 = vmatprep.subr.mxu0 0.0
        %1774 = vmatpush1.xpose.msra.mxu0 0.0
        %1775 = vmatprep.subr.mxu0 0.0
        %1776 = vmatpush1.xpose.msra.mxu0 0.0
        %1777 = vmatprep.subr.mxu0 0.0
        %1778 = vmatpush1.xpose.msra.mxu0 0.0
        %1779 = vmatprep.subr.mxu0 0.0
        %1780 = vmatpush1.xpose.msra.mxu0 0.0
        %1781 = vmatprep.subr.mxu0 0.0
        %1782 = vmatpush1.xpose.msra.mxu0 0.0
        %1783 = vmatprep.subr.mxu0 0.0
        %1784 = vmatpush1.xpose.msra.mxu0 0.0
        %1785 = vmatprep.subr.mxu0 0.0
        %1786 = vmatpush1.xpose.msra.mxu0 0.0
        %1787 = vmatprep.mubr.f32.mxu0 0.0
        %1788 = vmatmul.mubr.f32.gmra.mrb[0].mxu0 %v1719
        %v1789 = vpop.f32.mrb[0].mxu0
        %v1790 = vadd.f32 0.0, %v1789
        %v1791 = vpop.f32.mrb[0].mxu0
        %1792 = vdwg.mxu0
        %1793 = vrot.lane.b32.xlu0 %v1638, 96
        %v1794 = vpop.permute.xlu0 %1793
        %v1795 = vsel %vm666, %v1638, 0
        %v1797 = vsel %vm666, %v1794, 0
        %1799 = vmatprep.subr.mxu0 0.0
        %1800 = vmatpush1.xpose.msra.mxu0 %v1797
        %1801 = vmatprep.subr.mxu0 0.0
        %1802 = vmatpush1.xpose.msra.mxu0 0.0
        %1803 = vmatprep.subr.mxu0 0.0
        %1804 = vmatpush1.xpose.msra.mxu0 0.0
        %1805 = vmatprep.subr.mxu0 0.0
        %1806 = vmatpush1.xpose.msra.mxu0 0.0
        %1807 = vmatprep.subr.mxu0 0.0
        %1808 = vmatpush1.xpose.msra.mxu0 0.0
        %1809 = vmatprep.subr.mxu0 0.0
        %1810 = vmatpush1.xpose.msra.mxu0 0.0
        %1811 = vmatprep.subr.mxu0 0.0
        %1812 = vmatpush1.xpose.msra.mxu0 0.0
        %1813 = vmatprep.subr.mxu0 0.0
        %1814 = vmatpush1.xpose.msra.mxu0 0.0
        %1815 = vmatprep.subr.mxu0 0.0
        %1816 = vmatpush1.xpose.msra.mxu0 0.0
        %1817 = vmatprep.subr.mxu0 0.0
        %1818 = vmatpush1.xpose.msra.mxu0 0.0
        %1819 = vmatprep.subr.mxu0 0.0
        %1820 = vmatpush1.xpose.msra.mxu0 0.0
        %1821 = vmatprep.subr.mxu0 0.0
        %1822 = vmatpush1.xpose.msra.mxu0 0.0
        %1823 = vmatprep.subr.mxu0 0.0
        %1824 = vmatpush1.xpose.msra.mxu0 0.0
        %1825 = vmatprep.subr.mxu0 0.0
        %1826 = vmatpush1.xpose.msra.mxu0 0.0
        %1827 = vmatprep.subr.mxu0 0.0
        %1828 = vmatpush1.xpose.msra.mxu0 0.0
        %1829 = vmatprep.subr.mxu0 0.0
        %1830 = vmatpush1.xpose.msra.mxu0 0.0
        %1831 = vmatprep.subr.mxu0 0.0
        %1832 = vmatpush1.xpose.msra.mxu0 0.0
        %1833 = vmatprep.subr.mxu0 0.0
        %1834 = vmatpush1.xpose.msra.mxu0 0.0
        %1835 = vmatprep.subr.mxu0 0.0
        %1836 = vmatpush1.xpose.msra.mxu0 0.0
        %1837 = vmatprep.subr.mxu0 0.0
        %1838 = vmatpush1.xpose.msra.mxu0 0.0
        %1839 = vmatprep.subr.mxu0 0.0
        %1840 = vmatpush1.xpose.msra.mxu0 0.0
        %1841 = vmatprep.subr.mxu0 0.0
        %1842 = vmatpush1.xpose.msra.mxu0 0.0
        %1843 = vmatprep.subr.mxu0 0.0
        %1844 = vmatpush1.xpose.msra.mxu0 0.0
        %1845 = vmatprep.subr.mxu0 0.0
        %1846 = vmatpush1.xpose.msra.mxu0 0.0
        %1847 = vmatprep.subr.mxu0 0.0
        %1848 = vmatpush1.xpose.msra.mxu0 0.0
        %1849 = vmatprep.subr.mxu0 0.0
        %1850 = vmatpush1.xpose.msra.mxu0 0.0
        %1851 = vmatprep.subr.mxu0 0.0
        %1852 = vmatpush1.xpose.msra.mxu0 0.0
        %1853 = vmatprep.subr.mxu0 0.0
        %1854 = vmatpush1.xpose.msra.mxu0 0.0
        %1855 = vmatprep.subr.mxu0 0.0
        %1856 = vmatpush1.xpose.msra.mxu0 0.0
        %1857 = vmatprep.subr.mxu0 0.0
        %1858 = vmatpush1.xpose.msra.mxu0 0.0
        %1859 = vmatprep.subr.mxu0 0.0
        %1860 = vmatpush1.xpose.msra.mxu0 0.0
        %1861 = vmatprep.subr.mxu0 0.0
        %1862 = vmatpush1.xpose.msra.mxu0 0.0
        %1863 = vmatprep.mubr.f32.mxu0 0.0
        %1864 = vmatmul.mubr.f32.gmra.mrb[0].mxu0 %v1795
        %v1865 = vpop.f32.mrb[0].mxu0
        %v1866 = vadd.f32 0.0, %v1865
        %v1867 = vpop.f32.mrb[0].mxu0
        %1868 = vdwg.mxu0
        %1869 = vrot.lane.b32.xlu0 %v1640, 96
        %v1870 = vpop.permute.xlu0 %1869
        %v1871 = vsel %vm666, %v1640, 0
        %v1873 = vsel %vm666, %v1870, 0
        %1875 = vmatprep.subr.mxu0 0.0
        %1876 = vmatpush1.xpose.msra.mxu0 %v1873
        %1877 = vmatprep.subr.mxu0 0.0
        %1878 = vmatpush1.xpose.msra.mxu0 0.0
        %1879 = vmatprep.subr.mxu0 0.0
        %1880 = vmatpush1.xpose.msra.mxu0 0.0
        %1881 = vmatprep.subr.mxu0 0.0
        %1882 = vmatpush1.xpose.msra.mxu0 0.0
        %1883 = vmatprep.subr.mxu0 0.0
        %1884 = vmatpush1.xpose.msra.mxu0 0.0
        %1885 = vmatprep.subr.mxu0 0.0
        %1886 = vmatpush1.xpose.msra.mxu0 0.0
        %1887 = vmatprep.subr.mxu0 0.0
        %1888 = vmatpush1.xpose.msra.mxu0 0.0
        %1889 = vmatprep.subr.mxu0 0.0
        %1890 = vmatpush1.xpose.msra.mxu0 0.0
        %1891 = vmatprep.subr.mxu0 0.0
        %1892 = vmatpush1.xpose.msra.mxu0 0.0
        %1893 = vmatprep.subr.mxu0 0.0
        %1894 = vmatpush1.xpose.msra.mxu0 0.0
        %1895 = vmatprep.subr.mxu0 0.0
        %1896 = vmatpush1.xpose.msra.mxu0 0.0
        %1897 = vmatprep.subr.mxu0 0.0
        %1898 = vmatpush1.xpose.msra.mxu0 0.0
        %1899 = vmatprep.subr.mxu0 0.0
        %1900 = vmatpush1.xpose.msra.mxu0 0.0
        %1901 = vmatprep.subr.mxu0 0.0
        %1902 = vmatpush1.xpose.msra.mxu0 0.0
        %1903 = vmatprep.subr.mxu0 0.0
        %1904 = vmatpush1.xpose.msra.mxu0 0.0
        %1905 = vmatprep.subr.mxu0 0.0
        %1906 = vmatpush1.xpose.msra.mxu0 0.0
        %1907 = vmatprep.subr.mxu0 0.0
        %1908 = vmatpush1.xpose.msra.mxu0 0.0
        %1909 = vmatprep.subr.mxu0 0.0
        %1910 = vmatpush1.xpose.msra.mxu0 0.0
        %1911 = vmatprep.subr.mxu0 0.0
        %1912 = vmatpush1.xpose.msra.mxu0 0.0
        %1913 = vmatprep.subr.mxu0 0.0
        %1914 = vmatpush1.xpose.msra.mxu0 0.0
        %1915 = vmatprep.subr.mxu0 0.0
        %1916 = vmatpush1.xpose.msra.mxu0 0.0
        %1917 = vmatprep.subr.mxu0 0.0
        %1918 = vmatpush1.xpose.msra.mxu0 0.0
        %1919 = vmatprep.subr.mxu0 0.0
        %1920 = vmatpush1.xpose.msra.mxu0 0.0
        %1921 = vmatprep.subr.mxu0 0.0
        %1922 = vmatpush1.xpose.msra.mxu0 0.0
        %1923 = vmatprep.subr.mxu0 0.0
        %1924 = vmatpush1.xpose.msra.mxu0 0.0
        %1925 = vmatprep.subr.mxu0 0.0
        %1926 = vmatpush1.xpose.msra.mxu0 0.0
        %1927 = vmatprep.subr.mxu0 0.0
        %1928 = vmatpush1.xpose.msra.mxu0 0.0
        %1929 = vmatprep.subr.mxu0 0.0
        %1930 = vmatpush1.xpose.msra.mxu0 0.0
        %1931 = vmatprep.subr.mxu0 0.0
        %1932 = vmatpush1.xpose.msra.mxu0 0.0
        %1933 = vmatprep.subr.mxu0 0.0
        %1934 = vmatpush1.xpose.msra.mxu0 0.0
        %1935 = vmatprep.subr.mxu0 0.0
        %1936 = vmatpush1.xpose.msra.mxu0 0.0
        %1937 = vmatprep.subr.mxu0 0.0
        %1938 = vmatpush1.xpose.msra.mxu0 0.0
        %1939 = vmatprep.mubr.f32.mxu0 0.0
        %1940 = vmatmul.mubr.f32.gmra.mrb[0].mxu0 %v1871
        %v1941 = vpop.f32.mrb[0].mxu0
        %v1942 = vadd.f32 0.0, %v1941
        %v1943 = vpop.f32.mrb[0].mxu0
        %1944 = vdwg.mxu0
        %v1945 = vmul.f32 %v1714, 0.35355338
        %v1946 = vmul.f32 %v1790, 0.35355338
        %v1947 = vmul.f32 %v1866, 0.35355338
        %v1948 = vmul.f32 %v1942, 0.35355338
        %v1950 = vlaneseq
        %v1951 = vshrl.u32 %v1950, 7
        %v1952 = vsub.s32 0, %v1951
        %v1953 = vrot.slane %v504, %v1952
        %v1955 = vadd.f32 %v1945, %v1953
        %v1956 = vadd.f32 %v1946, %v1953
        %v1957 = vadd.f32 %v1947, %v1953
        %v1958 = vadd.f32 %v1948, %v1953
        %v1959 = vsel %vm666, %v1955, -inf
        %1960 = vmax.xlane.f32.xlu0 %v1959
        %v1961 = vpop.xlane.xlu0 %1960
        %v1962 = vsel %vm666, %v1956, -inf
        %1963 = vmax.xlane.f32.xlu0 %v1962
        %v1964 = vpop.xlane.xlu0 %1963
        %v1965 = vsel %vm666, %v1957, -inf
        %1966 = vmax.xlane.f32.xlu0 %v1965
        %v1967 = vpop.xlane.xlu0 %1966
        %v1968 = vsel %vm666, %v1958, -inf
        %1969 = vmax.xlane.f32.xlu0 %v1968
        %v1970 = vpop.xlane.xlu0 %1969
        %v1971 = vsub.f32 %v1955, %v1961
        %v1972 = vsub.f32 %v1956, %v1964
        %v1973 = vsub.f32 %v1957, %v1967
        %v1974 = vsub.f32 %v1958, %v1970
        %v1975 = vmul.f32 %v1971, 1.442695
        %v1976 = vpow.pop %v1975
        %v1977 = vmul.f32 %v1972, 1.442695
        %v1978 = vpow.pop %v1977
        %v1979 = vmul.f32 %v1973, 1.442695
        %v1980 = vpow.pop %v1979
        %v1981 = vmul.f32 %v1974, 1.442695
        %v1982 = vpow.pop %v1981
        %v1983 = vsel %vm666, %v1976, 0.0
        %1984 = vadd.xlane.f32.xlu0 %v1983
        %v1985 = vpop.xlane.xlu0 %1984
        %v1986 = vsel %vm666, %v1978, 0.0
        %1987 = vadd.xlane.f32.xlu0 %v1986
        %v1988 = vpop.xlane.xlu0 %1987
        %v1989 = vsel %vm666, %v1980, 0.0
        %1990 = vadd.xlane.f32.xlu0 %v1989
        %v1991 = vpop.xlane.xlu0 %1990
        %v1992 = vsel %vm666, %v1982, 0.0
        %1993 = vadd.xlane.f32.xlu0 %v1992
        %v1994 = vpop.xlane.xlu0 %1993
        %v1995 = vrcp.pop %v1985
        %v1996 = vrcp.pop %v1988
        %v1997 = vrcp.pop %v1991
        %v1998 = vrcp.pop %v1994
        %v1999 = vmul.f32 %v1976, %v1995
        %v2000 = vmul.f32 %v1978, %v1996
        %v2001 = vmul.f32 %v1980, %v1997
        %v2002 = vmul.f32 %v1982, %v1998
        %2003 = vrot.lane.b32.xlu0 %v654, 64
        %v2004 = vpop.permute.xlu0 %2003
        %v2007 = vsel %vm666, %v1999, 0
        %2009 = vmatprep.subr.mxu0 0.0
        %2010 = vmatpush1.msra.mxu0 %v2004
        %2011 = vmatprep.subr.mxu0 0.0
        %2012 = vmatpush1.msra.mxu0 0.0
        %2013 = vmatprep.subr.mxu0 0.0
        %2014 = vmatpush1.msra.mxu0 0.0
        %2015 = vmatprep.subr.mxu0 0.0
        %2016 = vmatpush1.msra.mxu0 0.0
        %2017 = vmatprep.subr.mxu0 0.0
        %2018 = vmatpush1.msra.mxu0 0.0
        %2019 = vmatprep.subr.mxu0 0.0
        %2020 = vmatpush1.msra.mxu0 0.0
        %2021 = vmatprep.subr.mxu0 0.0
        %2022 = vmatpush1.msra.mxu0 0.0
        %2023 = vmatprep.subr.mxu0 0.0
        %2024 = vmatpush1.msra.mxu0 0.0
        %2025 = vmatprep.subr.mxu0 0.0
        %2026 = vmatpush1.msra.mxu0 0.0
        %2027 = vmatprep.subr.mxu0 0.0
        %2028 = vmatpush1.msra.mxu0 0.0
        %2029 = vmatprep.subr.mxu0 0.0
        %2030 = vmatpush1.msra.mxu0 0.0
        %2031 = vmatprep.subr.mxu0 0.0
        %2032 = vmatpush1.msra.mxu0 0.0
        %2033 = vmatprep.subr.mxu0 0.0
        %2034 = vmatpush1.msra.mxu0 0.0
        %2035 = vmatprep.subr.mxu0 0.0
        %2036 = vmatpush1.msra.mxu0 0.0
        %2037 = vmatprep.subr.mxu0 0.0
        %2038 = vmatpush1.msra.mxu0 0.0
        %2039 = vmatprep.subr.mxu0 0.0
        %2040 = vmatpush1.msra.mxu0 0.0
        %2041 = vmatprep.subr.mxu0 0.0
        %2042 = vmatpush1.msra.mxu0 0.0
        %2043 = vmatprep.subr.mxu0 0.0
        %2044 = vmatpush1.msra.mxu0 0.0
        %2045 = vmatprep.subr.mxu0 0.0
        %2046 = vmatpush1.msra.mxu0 0.0
        %2047 = vmatprep.subr.mxu0 0.0
        %2048 = vmatpush1.msra.mxu0 0.0
        %2049 = vmatprep.subr.mxu0 0.0
        %2050 = vmatpush1.msra.mxu0 0.0
        %2051 = vmatprep.subr.mxu0 0.0
        %2052 = vmatpush1.msra.mxu0 0.0
        %2053 = vmatprep.subr.mxu0 0.0
        %2054 = vmatpush1.msra.mxu0 0.0
        %2055 = vmatprep.subr.mxu0 0.0
        %2056 = vmatpush1.msra.mxu0 0.0
        %2057 = vmatprep.subr.mxu0 0.0
        %2058 = vmatpush1.msra.mxu0 0.0
        %2059 = vmatprep.subr.mxu0 0.0
        %2060 = vmatpush1.msra.mxu0 0.0
        %2061 = vmatprep.subr.mxu0 0.0
        %2062 = vmatpush1.msra.mxu0 0.0
        %2063 = vmatprep.subr.mxu0 0.0
        %2064 = vmatpush1.msra.mxu0 0.0
        %2065 = vmatprep.subr.mxu0 0.0
        %2066 = vmatpush1.msra.mxu0 0.0
        %2067 = vmatprep.subr.mxu0 0.0
        %2068 = vmatpush1.msra.mxu0 0.0
        %2069 = vmatprep.subr.mxu0 0.0
        %2070 = vmatpush1.msra.mxu0 0.0
        %2071 = vmatprep.subr.mxu0 0.0
        %2072 = vmatpush1.msra.mxu0 0.0
        %2073 = vmatprep.mubr.f32.mxu0 0.0
        %2074 = vmatmul.mubr.f32.gmra.mrb[0].mxu0 %v2007
        %v2075 = vpop.f32.mrb[0].mxu0
        %v2076 = vadd.f32 0.0, %v2075
        %v2077 = vpop.f32.mrb[0].mxu0
        %2078 = vdwg.mxu0
        %2079 = vrot.lane.b32.xlu0 %v1636, 64
        %v2080 = vpop.permute.xlu0 %2079
        %v2083 = vsel %vm666, %v2000, 0
        %2085 = vmatprep.subr.mxu0 0.0
        %2086 = vmatpush1.msra.mxu0 %v2080
        %2087 = vmatprep.subr.mxu0 0.0
        %2088 = vmatpush1.msra.mxu0 0.0
        %2089 = vmatprep.subr.mxu0 0.0
        %2090 = vmatpush1.msra.mxu0 0.0
        %2091 = vmatprep.subr.mxu0 0.0
        %2092 = vmatpush1.msra.mxu0 0.0
        %2093 = vmatprep.subr.mxu0 0.0
        %2094 = vmatpush1.msra.mxu0 0.0
        %2095 = vmatprep.subr.mxu0 0.0
        %2096 = vmatpush1.msra.mxu0 0.0
        %2097 = vmatprep.subr.mxu0 0.0
        %2098 = vmatpush1.msra.mxu0 0.0
        %2099 = vmatprep.subr.mxu0 0.0
        %2100 = vmatpush1.msra.mxu0 0.0
        %2101 = vmatprep.subr.mxu0 0.0
        %2102 = vmatpush1.msra.mxu0 0.0
        %2103 = vmatprep.subr.mxu0 0.0
        %2104 = vmatpush1.msra.mxu0 0.0
        %2105 = vmatprep.subr.mxu0 0.0
        %2106 = vmatpush1.msra.mxu0 0.0
        %2107 = vmatprep.subr.mxu0 0.0
        %2108 = vmatpush1.msra.mxu0 0.0
        %2109 = vmatprep.subr.mxu0 0.0
        %2110 = vmatpush1.msra.mxu0 0.0
        %2111 = vmatprep.subr.mxu0 0.0
        %2112 = vmatpush1.msra.mxu0 0.0
        %2113 = vmatprep.subr.mxu0 0.0
        %2114 = vmatpush1.msra.mxu0 0.0
        %2115 = vmatprep.subr.mxu0 0.0
        %2116 = vmatpush1.msra.mxu0 0.0
        %2117 = vmatprep.subr.mxu0 0.0
        %2118 = vmatpush1.msra.mxu0 0.0
        %2119 = vmatprep.subr.mxu0 0.0
        %2120 = vmatpush1.msra.mxu0 0.0
        %2121 = vmatprep.subr.mxu0 0.0
        %2122 = vmatpush1.msra.mxu0 0.0
        %2123 = vmatprep.subr.mxu0 0.0
        %2124 = vmatpush1.msra.mxu0 0.0
        %2125 = vmatprep.subr.mxu0 0.0
        %2126 = vmatpush1.msra.mxu0 0.0
        %2127 = vmatprep.subr.mxu0 0.0
        %2128 = vmatpush1.msra.mxu0 0.0
        %2129 = vmatprep.subr.mxu0 0.0
        %2130 = vmatpush1.msra.mxu0 0.0
        %2131 = vmatprep.subr.mxu0 0.0
        %2132 = vmatpush1.msra.mxu0 0.0
        %2133 = vmatprep.subr.mxu0 0.0
        %2134 = vmatpush1.msra.mxu0 0.0
        %2135 = vmatprep.subr.mxu0 0.0
        %2136 = vmatpush1.msra.mxu0 0.0
        %2137 = vmatprep.subr.mxu0 0.0
        %2138 = vmatpush1.msra.mxu0 0.0
        %2139 = vmatprep.subr.mxu0 0.0
        %2140 = vmatpush1.msra.mxu0 0.0
        %2141 = vmatprep.subr.mxu0 0.0
        %2142 = vmatpush1.msra.mxu0 0.0
        %2143 = vmatprep.subr.mxu0 0.0
        %2144 = vmatpush1.msra.mxu0 0.0
        %2145 = vmatprep.subr.mxu0 0.0
        %2146 = vmatpush1.msra.mxu0 0.0
        %2147 = vmatprep.subr.mxu0 0.0
        %2148 = vmatpush1.msra.mxu0 0.0
        %2149 = vmatprep.mubr.f32.mxu0 0.0
        %2150 = vmatmul.mubr.f32.gmra.mrb[0].mxu0 %v2083
        %v2151 = vpop.f32.mrb[0].mxu0
        %v2152 = vadd.f32 0.0, %v2151
        %v2153 = vpop.f32.mrb[0].mxu0
        %2154 = vdwg.mxu0
        %2155 = vrot.lane.b32.xlu0 %v1638, 64
        %v2156 = vpop.permute.xlu0 %2155
        %v2159 = vsel %vm666, %v2001, 0
        %2161 = vmatprep.subr.mxu0 0.0
        %2162 = vmatpush1.msra.mxu0 %v2156
        %2163 = vmatprep.subr.mxu0 0.0
        %2164 = vmatpush1.msra.mxu0 0.0
        %2165 = vmatprep.subr.mxu0 0.0
        %2166 = vmatpush1.msra.mxu0 0.0
        %2167 = vmatprep.subr.mxu0 0.0
        %2168 = vmatpush1.msra.mxu0 0.0
        %2169 = vmatprep.subr.mxu0 0.0
        %2170 = vmatpush1.msra.mxu0 0.0
        %2171 = vmatprep.subr.mxu0 0.0
        %2172 = vmatpush1.msra.mxu0 0.0
        %2173 = vmatprep.subr.mxu0 0.0
        %2174 = vmatpush1.msra.mxu0 0.0
        %2175 = vmatprep.subr.mxu0 0.0
        %2176 = vmatpush1.msra.mxu0 0.0
        %2177 = vmatprep.subr.mxu0 0.0
        %2178 = vmatpush1.msra.mxu0 0.0
        %2179 = vmatprep.subr.mxu0 0.0
        %2180 = vmatpush1.msra.mxu0 0.0
        %2181 = vmatprep.subr.mxu0 0.0
        %2182 = vmatpush1.msra.mxu0 0.0
        %2183 = vmatprep.subr.mxu0 0.0
        %2184 = vmatpush1.msra.mxu0 0.0
        %2185 = vmatprep.subr.mxu0 0.0
        %2186 = vmatpush1.msra.mxu0 0.0
        %2187 = vmatprep.subr.mxu0 0.0
        %2188 = vmatpush1.msra.mxu0 0.0
        %2189 = vmatprep.subr.mxu0 0.0
        %2190 = vmatpush1.msra.mxu0 0.0
        %2191 = vmatprep.subr.mxu0 0.0
        %2192 = vmatpush1.msra.mxu0 0.0
        %2193 = vmatprep.subr.mxu0 0.0
        %2194 = vmatpush1.msra.mxu0 0.0
        %2195 = vmatprep.subr.mxu0 0.0
        %2196 = vmatpush1.msra.mxu0 0.0
        %2197 = vmatprep.subr.mxu0 0.0
        %2198 = vmatpush1.msra.mxu0 0.0
        %2199 = vmatprep.subr.mxu0 0.0
        %2200 = vmatpush1.msra.mxu0 0.0
        %2201 = vmatprep.subr.mxu0 0.0
        %2202 = vmatpush1.msra.mxu0 0.0
        %2203 = vmatprep.subr.mxu0 0.0
        %2204 = vmatpush1.msra.mxu0 0.0
        %2205 = vmatprep.subr.mxu0 0.0
        %2206 = vmatpush1.msra.mxu0 0.0
        %2207 = vmatprep.subr.mxu0 0.0
        %2208 = vmatpush1.msra.mxu0 0.0
        %2209 = vmatprep.subr.mxu0 0.0
        %2210 = vmatpush1.msra.mxu0 0.0
        %2211 = vmatprep.subr.mxu0 0.0
        %2212 = vmatpush1.msra.mxu0 0.0
        %2213 = vmatprep.subr.mxu0 0.0
        %2214 = vmatpush1.msra.mxu0 0.0
        %2215 = vmatprep.subr.mxu0 0.0
        %2216 = vmatpush1.msra.mxu0 0.0
        %2217 = vmatprep.subr.mxu0 0.0
        %2218 = vmatpush1.msra.mxu0 0.0
        %2219 = vmatprep.subr.mxu0 0.0
        %2220 = vmatpush1.msra.mxu0 0.0
        %2221 = vmatprep.subr.mxu0 0.0
        %2222 = vmatpush1.msra.mxu0 0.0
        %2223 = vmatprep.subr.mxu0 0.0
        %2224 = vmatpush1.msra.mxu0 0.0
        %2225 = vmatprep.mubr.f32.mxu0 0.0
        %2226 = vmatmul.mubr.f32.gmra.mrb[0].mxu0 %v2159
        %v2227 = vpop.f32.mrb[0].mxu0
        %v2228 = vadd.f32 0.0, %v2227
        %v2229 = vpop.f32.mrb[0].mxu0
        %2230 = vdwg.mxu0
        %2231 = vrot.lane.b32.xlu0 %v1640, 64
        %v2232 = vpop.permute.xlu0 %2231
        %v2235 = vsel %vm666, %v2002, 0
        %2237 = vmatprep.subr.mxu0 0.0
        %2238 = vmatpush1.msra.mxu0 %v2232
        %2239 = vmatprep.subr.mxu0 0.0
        %2240 = vmatpush1.msra.mxu0 0.0
        %2241 = vmatprep.subr.mxu0 0.0
        %2242 = vmatpush1.msra.mxu0 0.0
        %2243 = vmatprep.subr.mxu0 0.0
        %2244 = vmatpush1.msra.mxu0 0.0
        %2245 = vmatprep.subr.mxu0 0.0
        %2246 = vmatpush1.msra.mxu0 0.0
        %2247 = vmatprep.subr.mxu0 0.0
        %2248 = vmatpush1.msra.mxu0 0.0
        %2249 = vmatprep.subr.mxu0 0.0
        %2250 = vmatpush1.msra.mxu0 0.0
        %2251 = vmatprep.subr.mxu0 0.0
        %2252 = vmatpush1.msra.mxu0 0.0
        %2253 = vmatprep.subr.mxu0 0.0
        %2254 = vmatpush1.msra.mxu0 0.0
        %2255 = vmatprep.subr.mxu0 0.0
        %2256 = vmatpush1.msra.mxu0 0.0
        %2257 = vmatprep.subr.mxu0 0.0
        %2258 = vmatpush1.msra.mxu0 0.0
        %2259 = vmatprep.subr.mxu0 0.0
        %2260 = vmatpush1.msra.mxu0 0.0
        %2261 = vmatprep.subr.mxu0 0.0
        %2262 = vmatpush1.msra.mxu0 0.0
        %2263 = vmatprep.subr.mxu0 0.0
        %2264 = vmatpush1.msra.mxu0 0.0
        %2265 = vmatprep.subr.mxu0 0.0
        %2266 = vmatpush1.msra.mxu0 0.0
        %2267 = vmatprep.subr.mxu0 0.0
        %2268 = vmatpush1.msra.mxu0 0.0
        %2269 = vmatprep.subr.mxu0 0.0
        %2270 = vmatpush1.msra.mxu0 0.0
        %2271 = vmatprep.subr.mxu0 0.0
        %2272 = vmatpush1.msra.mxu0 0.0
        %2273 = vmatprep.subr.mxu0 0.0
        %2274 = vmatpush1.msra.mxu0 0.0
        %2275 = vmatprep.subr.mxu0 0.0
        %2276 = vmatpush1.msra.mxu0 0.0
        %2277 = vmatprep.subr.mxu0 0.0
        %2278 = vmatpush1.msra.mxu0 0.0
        %2279 = vmatprep.subr.mxu0 0.0
        %2280 = vmatpush1.msra.mxu0 0.0
        %2281 = vmatprep.subr.mxu0 0.0
        %2282 = vmatpush1.msra.mxu0 0.0
        %2283 = vmatprep.subr.mxu0 0.0
        %2284 = vmatpush1.msra.mxu0 0.0
        %2285 = vmatprep.subr.mxu0 0.0
        %2286 = vmatpush1.msra.mxu0 0.0
        %2287 = vmatprep.subr.mxu0 0.0
        %2288 = vmatpush1.msra.mxu0 0.0
        %2289 = vmatprep.subr.mxu0 0.0
        %2290 = vmatpush1.msra.mxu0 0.0
        %2291 = vmatprep.subr.mxu0 0.0
        %2292 = vmatpush1.msra.mxu0 0.0
        %2293 = vmatprep.subr.mxu0 0.0
        %2294 = vmatpush1.msra.mxu0 0.0
        %2295 = vmatprep.subr.mxu0 0.0
        %2296 = vmatpush1.msra.mxu0 0.0
        %2297 = vmatprep.subr.mxu0 0.0
        %2298 = vmatpush1.msra.mxu0 0.0
        %2299 = vmatprep.subr.mxu0 0.0
        %2300 = vmatpush1.msra.mxu0 0.0
        %2301 = vmatprep.mubr.f32.mxu0 0.0
        %2302 = vmatmul.mubr.f32.gmra.mrb[0].mxu0 %v2235
        %v2303 = vpop.f32.mrb[0].mxu0
        %v2304 = vadd.f32 0.0, %v2303
        %v2305 = vpop.f32.mrb[0].mxu0
        %2306 = vdwg.mxu0
        %v2307 = vld [vmem:[%s6] sm:$0xff]
        %v2308 = vld [vmem:[%s6 + $0x8] sm:$0xff]
        %v2309 = vld [vmem:[%s6 + $0x10] sm:$0xff]
        %v2310 = vld [vmem:[%s6 + $0x18] sm:$0xff]
        %v2312 = vsel %vm666, %v2076, 0
        %2314 = vmatprep.subr.mxu0 0.0
        %2315 = vmatpush1.msra.mxu0 %v2307
        %2316 = vmatprep.subr.mxu0 0.0
        %2317 = vmatpush1.msra.mxu0 0.0
        %2318 = vmatprep.subr.mxu0 0.0
        %2319 = vmatpush1.msra.mxu0 0.0
        %2320 = vmatprep.subr.mxu0 0.0
        %2321 = vmatpush1.msra.mxu0 0.0
        %2322 = vmatprep.subr.mxu0 0.0
        %2323 = vmatpush1.msra.mxu0 0.0
        %2324 = vmatprep.subr.mxu0 0.0
        %2325 = vmatpush1.msra.mxu0 0.0
        %2326 = vmatprep.subr.mxu0 0.0
        %2327 = vmatpush1.msra.mxu0 0.0
        %2328 = vmatprep.subr.mxu0 0.0
        %2329 = vmatpush1.msra.mxu0 0.0
        %2330 = vmatprep.subr.mxu0 0.0
        %2331 = vmatpush1.msra.mxu0 0.0
        %2332 = vmatprep.subr.mxu0 0.0
        %2333 = vmatpush1.msra.mxu0 0.0
        %2334 = vmatprep.subr.mxu0 0.0
        %2335 = vmatpush1.msra.mxu0 0.0
        %2336 = vmatprep.subr.mxu0 0.0
        %2337 = vmatpush1.msra.mxu0 0.0
        %2338 = vmatprep.subr.mxu0 0.0
        %2339 = vmatpush1.msra.mxu0 0.0
        %2340 = vmatprep.subr.mxu0 0.0
        %2341 = vmatpush1.msra.mxu0 0.0
        %2342 = vmatprep.subr.mxu0 0.0
        %2343 = vmatpush1.msra.mxu0 0.0
        %2344 = vmatprep.subr.mxu0 0.0
        %2345 = vmatpush1.msra.mxu0 0.0
        %2346 = vmatprep.subr.mxu0 0.0
        %2347 = vmatpush1.msra.mxu0 0.0
        %2348 = vmatprep.subr.mxu0 0.0
        %2349 = vmatpush1.msra.mxu0 0.0
        %2350 = vmatprep.subr.mxu0 0.0
        %2351 = vmatpush1.msra.mxu0 0.0
        %2352 = vmatprep.subr.mxu0 0.0
        %2353 = vmatpush1.msra.mxu0 0.0
        %2354 = vmatprep.subr.mxu0 0.0
        %2355 = vmatpush1.msra.mxu0 0.0
        %2356 = vmatprep.subr.mxu0 0.0
        %2357 = vmatpush1.msra.mxu0 0.0
        %2358 = vmatprep.subr.mxu0 0.0
        %2359 = vmatpush1.msra.mxu0 0.0
        %2360 = vmatprep.subr.mxu0 0.0
        %2361 = vmatpush1.msra.mxu0 0.0
        %2362 = vmatprep.subr.mxu0 0.0
        %2363 = vmatpush1.msra.mxu0 0.0
        %2364 = vmatprep.subr.mxu0 0.0
        %2365 = vmatpush1.msra.mxu0 0.0
        %2366 = vmatprep.subr.mxu0 0.0
        %2367 = vmatpush1.msra.mxu0 0.0
        %2368 = vmatprep.subr.mxu0 0.0
        %2369 = vmatpush1.msra.mxu0 0.0
        %2370 = vmatprep.subr.mxu0 0.0
        %2371 = vmatpush1.msra.mxu0 0.0
        %2372 = vmatprep.subr.mxu0 0.0
        %2373 = vmatpush1.msra.mxu0 0.0
        %2374 = vmatprep.subr.mxu0 0.0
        %2375 = vmatpush1.msra.mxu0 0.0
        %2376 = vmatprep.subr.mxu0 0.0
        %2377 = vmatpush1.msra.mxu0 0.0
        %2378 = vmatprep.mubr.f32.mxu0 0.0
        %2379 = vmatmul.mubr.f32.gmra.mrb[0].mxu0 %v2312
        %v2380 = vpop.f32.mrb[0].mxu0
        %v2381 = vadd.f32 0.0, %v2380
        %v2382 = vpop.f32.mrb[0].mxu0
        %2383 = vdwg.mxu0
        %v2385 = vsel %vm666, %v2152, 0
        %2387 = vmatprep.subr.mxu0 0.0
        %2388 = vmatpush1.msra.mxu0 %v2308
        %2389 = vmatprep.subr.mxu0 0.0
        %2390 = vmatpush1.msra.mxu0 0.0
        %2391 = vmatprep.subr.mxu0 0.0
        %2392 = vmatpush1.msra.mxu0 0.0
        %2393 = vmatprep.subr.mxu0 0.0
        %2394 = vmatpush1.msra.mxu0 0.0
        %2395 = vmatprep.subr.mxu0 0.0
        %2396 = vmatpush1.msra.mxu0 0.0
        %2397 = vmatprep.subr.mxu0 0.0
        %2398 = vmatpush1.msra.mxu0 0.0
        %2399 = vmatprep.subr.mxu0 0.0
        %2400 = vmatpush1.msra.mxu0 0.0
        %2401 = vmatprep.subr.mxu0 0.0
        %2402 = vmatpush1.msra.mxu0 0.0
        %2403 = vmatprep.subr.mxu0 0.0
        %2404 = vmatpush1.msra.mxu0 0.0
        %2405 = vmatprep.subr.mxu0 0.0
        %2406 = vmatpush1.msra.mxu0 0.0
        %2407 = vmatprep.subr.mxu0 0.0
        %2408 = vmatpush1.msra.mxu0 0.0
        %2409 = vmatprep.subr.mxu0 0.0
        %2410 = vmatpush1.msra.mxu0 0.0
        %2411 = vmatprep.subr.mxu0 0.0
        %2412 = vmatpush1.msra.mxu0 0.0
        %2413 = vmatprep.subr.mxu0 0.0
        %2414 = vmatpush1.msra.mxu0 0.0
        %2415 = vmatprep.subr.mxu0 0.0
        %2416 = vmatpush1.msra.mxu0 0.0
        %2417 = vmatprep.subr.mxu0 0.0
        %2418 = vmatpush1.msra.mxu0 0.0
        %2419 = vmatprep.subr.mxu0 0.0
        %2420 = vmatpush1.msra.mxu0 0.0
        %2421 = vmatprep.subr.mxu0 0.0
        %2422 = vmatpush1.msra.mxu0 0.0
        %2423 = vmatprep.subr.mxu0 0.0
        %2424 = vmatpush1.msra.mxu0 0.0
        %2425 = vmatprep.subr.mxu0 0.0
        %2426 = vmatpush1.msra.mxu0 0.0
        %2427 = vmatprep.subr.mxu0 0.0
        %2428 = vmatpush1.msra.mxu0 0.0
        %2429 = vmatprep.subr.mxu0 0.0
        %2430 = vmatpush1.msra.mxu0 0.0
        %2431 = vmatprep.subr.mxu0 0.0
        %2432 = vmatpush1.msra.mxu0 0.0
        %2433 = vmatprep.subr.mxu0 0.0
        %2434 = vmatpush1.msra.mxu0 0.0
        %2435 = vmatprep.subr.mxu0 0.0
        %2436 = vmatpush1.msra.mxu0 0.0
        %2437 = vmatprep.subr.mxu0 0.0
        %2438 = vmatpush1.msra.mxu0 0.0
        %2439 = vmatprep.subr.mxu0 0.0
        %2440 = vmatpush1.msra.mxu0 0.0
        %2441 = vmatprep.subr.mxu0 0.0
        %2442 = vmatpush1.msra.mxu0 0.0
        %2443 = vmatprep.subr.mxu0 0.0
        %2444 = vmatpush1.msra.mxu0 0.0
        %2445 = vmatprep.subr.mxu0 0.0
        %2446 = vmatpush1.msra.mxu0 0.0
        %2447 = vmatprep.subr.mxu0 0.0
        %2448 = vmatpush1.msra.mxu0 0.0
        %2449 = vmatprep.subr.mxu0 0.0
        %2450 = vmatpush1.msra.mxu0 0.0
        %2451 = vmatprep.mubr.f32.mxu0 0.0
        %2452 = vmatmul.mubr.f32.gmra.mrb[0].mxu0 %v2385
        %v2453 = vpop.f32.mrb[0].mxu0
        %v2454 = vadd.f32 0.0, %v2453
        %v2455 = vpop.f32.mrb[0].mxu0
        %2456 = vdwg.mxu0
        %v2458 = vsel %vm666, %v2228, 0
        %2460 = vmatprep.subr.mxu0 0.0
        %2461 = vmatpush1.msra.mxu0 %v2309
        %2462 = vmatprep.subr.mxu0 0.0
        %2463 = vmatpush1.msra.mxu0 0.0
        %2464 = vmatprep.subr.mxu0 0.0
        %2465 = vmatpush1.msra.mxu0 0.0
        %2466 = vmatprep.subr.mxu0 0.0
        %2467 = vmatpush1.msra.mxu0 0.0
        %2468 = vmatprep.subr.mxu0 0.0
        %2469 = vmatpush1.msra.mxu0 0.0
        %2470 = vmatprep.subr.mxu0 0.0
        %2471 = vmatpush1.msra.mxu0 0.0
        %2472 = vmatprep.subr.mxu0 0.0
        %2473 = vmatpush1.msra.mxu0 0.0
        %2474 = vmatprep.subr.mxu0 0.0
        %2475 = vmatpush1.msra.mxu0 0.0
        %2476 = vmatprep.subr.mxu0 0.0
        %2477 = vmatpush1.msra.mxu0 0.0
        %2478 = vmatprep.subr.mxu0 0.0
        %2479 = vmatpush1.msra.mxu0 0.0
        %2480 = vmatprep.subr.mxu0 0.0
        %2481 = vmatpush1.msra.mxu0 0.0
        %2482 = vmatprep.subr.mxu0 0.0
        %2483 = vmatpush1.msra.mxu0 0.0
        %2484 = vmatprep.subr.mxu0 0.0
        %2485 = vmatpush1.msra.mxu0 0.0
        %2486 = vmatprep.subr.mxu0 0.0
        %2487 = vmatpush1.msra.mxu0 0.0
        %2488 = vmatprep.subr.mxu0 0.0
        %2489 = vmatpush1.msra.mxu0 0.0
        %2490 = vmatprep.subr.mxu0 0.0
        %2491 = vmatpush1.msra.mxu0 0.0
        %2492 = vmatprep.subr.mxu0 0.0
        %2493 = vmatpush1.msra.mxu0 0.0
        %2494 = vmatprep.subr.mxu0 0.0
        %2495 = vmatpush1.msra.mxu0 0.0
        %2496 = vmatprep.subr.mxu0 0.0
        %2497 = vmatpush1.msra.mxu0 0.0
        %2498 = vmatprep.subr.mxu0 0.0
        %2499 = vmatpush1.msra.mxu0 0.0
        %2500 = vmatprep.subr.mxu0 0.0
        %2501 = vmatpush1.msra.mxu0 0.0
        %2502 = vmatprep.subr.mxu0 0.0
        %2503 = vmatpush1.msra.mxu0 0.0
        %2504 = vmatprep.subr.mxu0 0.0
        %2505 = vmatpush1.msra.mxu0 0.0
        %2506 = vmatprep.subr.mxu0 0.0
        %2507 = vmatpush1.msra.mxu0 0.0
        %2508 = vmatprep.subr.mxu0 0.0
        %2509 = vmatpush1.msra.mxu0 0.0
        %2510 = vmatprep.subr.mxu0 0.0
        %2511 = vmatpush1.msra.mxu0 0.0
        %2512 = vmatprep.subr.mxu0 0.0
        %2513 = vmatpush1.msra.mxu0 0.0
        %2514 = vmatprep.subr.mxu0 0.0
        %2515 = vmatpush1.msra.mxu0 0.0
        %2516 = vmatprep.subr.mxu0 0.0
        %2517 = vmatpush1.msra.mxu0 0.0
        %2518 = vmatprep.subr.mxu0 0.0
        %2519 = vmatpush1.msra.mxu0 0.0
        %2520 = vmatprep.subr.mxu0 0.0
        %2521 = vmatpush1.msra.mxu0 0.0
        %2522 = vmatprep.subr.mxu0 0.0
        %2523 = vmatpush1.msra.mxu0 0.0
        %2524 = vmatprep.mubr.f32.mxu0 0.0
        %2525 = vmatmul.mubr.f32.gmra.mrb[0].mxu0 %v2458
        %v2526 = vpop.f32.mrb[0].mxu0
        %v2527 = vadd.f32 0.0, %v2526
        %v2528 = vpop.f32.mrb[0].mxu0
        %2529 = vdwg.mxu0
        %v2531 = vsel %vm666, %v2304, 0
        %2533 = vmatprep.subr.mxu0 0.0
        %2534 = vmatpush1.msra.mxu0 %v2310
        %2535 = vmatprep.subr.mxu0 0.0
        %2536 = vmatpush1.msra.mxu0 0.0
        %2537 = vmatprep.subr.mxu0 0.0
        %2538 = vmatpush1.msra.mxu0 0.0
        %2539 = vmatprep.subr.mxu0 0.0
        %2540 = vmatpush1.msra.mxu0 0.0
        %2541 = vmatprep.subr.mxu0 0.0
        %2542 = vmatpush1.msra.mxu0 0.0
        %2543 = vmatprep.subr.mxu0 0.0
        %2544 = vmatpush1.msra.mxu0 0.0
        %2545 = vmatprep.subr.mxu0 0.0
        %2546 = vmatpush1.msra.mxu0 0.0
        %2547 = vmatprep.subr.mxu0 0.0
        %2548 = vmatpush1.msra.mxu0 0.0
        %2549 = vmatprep.subr.mxu0 0.0
        %2550 = vmatpush1.msra.mxu0 0.0
        %2551 = vmatprep.subr.mxu0 0.0
        %2552 = vmatpush1.msra.mxu0 0.0
        %2553 = vmatprep.subr.mxu0 0.0
        %2554 = vmatpush1.msra.mxu0 0.0
        %2555 = vmatprep.subr.mxu0 0.0
        %2556 = vmatpush1.msra.mxu0 0.0
        %2557 = vmatprep.subr.mxu0 0.0
        %2558 = vmatpush1.msra.mxu0 0.0
        %2559 = vmatprep.subr.mxu0 0.0
        %2560 = vmatpush1.msra.mxu0 0.0
        %2561 = vmatprep.subr.mxu0 0.0
        %2562 = vmatpush1.msra.mxu0 0.0
        %2563 = vmatprep.subr.mxu0 0.0
        %2564 = vmatpush1.msra.mxu0 0.0
        %2565 = vmatprep.subr.mxu0 0.0
        %2566 = vmatpush1.msra.mxu0 0.0
        %2567 = vmatprep.subr.mxu0 0.0
        %2568 = vmatpush1.msra.mxu0 0.0
        %2569 = vmatprep.subr.mxu0 0.0
        %2570 = vmatpush1.msra.mxu0 0.0
        %2571 = vmatprep.subr.mxu0 0.0
        %2572 = vmatpush1.msra.mxu0 0.0
        %2573 = vmatprep.subr.mxu0 0.0
        %2574 = vmatpush1.msra.mxu0 0.0
        %2575 = vmatprep.subr.mxu0 0.0
        %2576 = vmatpush1.msra.mxu0 0.0
        %2577 = vmatprep.subr.mxu0 0.0
        %2578 = vmatpush1.msra.mxu0 0.0
        %2579 = vmatprep.subr.mxu0 0.0
        %2580 = vmatpush1.msra.mxu0 0.0
        %2581 = vmatprep.subr.mxu0 0.0
        %2582 = vmatpush1.msra.mxu0 0.0
        %2583 = vmatprep.subr.mxu0 0.0
        %2584 = vmatpush1.msra.mxu0 0.0
        %2585 = vmatprep.subr.mxu0 0.0
        %2586 = vmatpush1.msra.mxu0 0.0
        %2587 = vmatprep.subr.mxu0 0.0
        %2588 = vmatpush1.msra.mxu0 0.0
        %2589 = vmatprep.subr.mxu0 0.0
        %2590 = vmatpush1.msra.mxu0 0.0
        %2591 = vmatprep.subr.mxu0 0.0
        %2592 = vmatpush1.msra.mxu0 0.0
        %2593 = vmatprep.subr.mxu0 0.0
        %2594 = vmatpush1.msra.mxu0 0.0
        %2595 = vmatprep.subr.mxu0 0.0
        %2596 = vmatpush1.msra.mxu0 0.0
        %2597 = vmatprep.mubr.f32.mxu0 0.0
        %2598 = vmatmul.mubr.f32.gmra.mrb[0].mxu0 %v2531
        %v2599 = vpop.f32.mrb[0].mxu0
        %v2600 = vadd.f32 0.0, %v2599
        %v2601 = vpop.f32.mrb[0].mxu0
        %2602 = vdwg.mxu0
        %v2603 = vsel %vm507, %v2381, 0.0
        %v2604 = vsel %vm507, %v2454, 0.0
        %v2605 = vadd.f32 %v2603, %v2604
        %v2606 = vsel %vm507, %v2527, 0.0
        %v2607 = vadd.f32 %v2605, %v2606
        %v2608 = vsel %vm507, %v2600, 0.0
        %v2609 = vadd.f32 %v2607, %v2608
        %v2610 = vld [vmem:[%s7] sm:$0x1]
        %v2612 = vlaneseq
        %v2613 = vshrl.u32 %v2612, 7
        %v2614 = vsub.s32 0, %v2613
        %v2615 = vrot.slane %v2610, %v2614
        %v2617 = vadd.f32 %v1633, %v2615
        %v2618 = vadd.f32 %v2609, %v2615
        %v2619 = vadd.f32 %v497, %v2617
        %v2620 = vadd.f32 %v498, %v2618
        %v2621 = vld [vmem:[%s8] sm:$0x1]
        %v2622 = vld [vmem:[%s9] sm:$0x1]
        %v2623 = vsel %vm507, %v2619, 0.0
        %2624 = vadd.xlane.f32.xlu0 %v2623
        %v2625 = vpop.xlane.xlu0 %2624
        %v2626 = vsel %vm507, %v2620, 0.0
        %2627 = vadd.xlane.f32.xlu0 %v2626
        %v2628 = vpop.xlane.xlu0 %2627
        %v2629 = vmul.f32 %v2625, %v514
        %v2630 = vmul.f32 %v2628, %v514
        %v2631 = vsub.f32 %v2619, %v2629
        %v2632 = vsub.f32 %v2620, %v2630
        %v2633 = vmul.f32 %v2631, %v2631
        %v2634 = vmul.f32 %v2632, %v2632
        %v2635 = vsel %vm507, %v2633, 0.0
        %2636 = vadd.xlane.f32.xlu0 %v2635
        %v2637 = vpop.xlane.xlu0 %2636
        %v2638 = vsel %vm507, %v2634, 0.0
        %2639 = vadd.xlane.f32.xlu0 %v2638
        %v2640 = vpop.xlane.xlu0 %2639
        %v2641 = vmul.f32 %v2637, 0.032258064
        %v2642 = vmul.f32 %v2640, 0.032258064
        %v2643 = vrsqrt.pop %v2641
        %v2644 = vmul.f32 %v2641, %v2643
        %vm2645 = vcmp.eq.f32.partialorder %v2641, inf
        %v2646 = vsel %vm2645, %v2641, %v2644
        %vm2647 = vcmp.eq.f32.partialorder %v2641, 0.0
        %v2648 = vand.u32 %v2641, 2147483648
        %v2649 = vsel %vm2647, %v2648, %v2646
        %v2650 = vrsqrt.pop %v2642
        %v2651 = vmul.f32 %v2642, %v2650
        %vm2652 = vcmp.eq.f32.partialorder %v2642, inf
        %v2653 = vsel %vm2652, %v2642, %v2651
        %vm2654 = vcmp.eq.f32.partialorder %v2642, 0.0
        %v2655 = vand.u32 %v2642, 2147483648
        %v2656 = vsel %vm2654, %v2655, %v2653
        %v2657 = vadd.f32 %v2649, 1e-06
        %v2658 = vadd.f32 %v2656, 1e-06
        %v2659 = vrcp.pop %v2657
        %v2660 = vrcp.pop %v2658
        %v2662 = vlaneseq
        %v2663 = vshrl.u32 %v2662, 7
        %v2664 = vsub.s32 0, %v2663
        %v2665 = vrot.slane %v2621, %v2664
        %v2667 = vmul.f32 %v2665, %v2631
        %v2668 = vmul.f32 %v2665, %v2632
        %v2669 = vmul.f32 %v2667, %v2659
        %v2670 = vmul.f32 %v2668, %v2660
        %v2672 = vlaneseq
        %v2673 = vshrl.u32 %v2672, 7
        %v2674 = vsub.s32 0, %v2673
        %v2675 = vrot.slane %v2622, %v2674
        %v2677 = vadd.f32 %v2669, %v2675
        %v2678 = vadd.f32 %v2670, %v2675
        %v2679 = vld [vmem:[%s10] sm:$0xff]
        %v2680 = vld [vmem:[%s10 + $0x8] sm:$0xff]
        %v2681 = vld [vmem:[%s10 + $0x10] sm:$0xff]
        %v2682 = vld [vmem:[%s10 + $0x18] sm:$0xff]
        %v2683 = vld [vmem:[%s11] sm:$0x1]
        %v2685 = vlaneseq
        %v2686 = vshrl.u32 %v2685, 7
        %v2687 = vsub.s32 0, %v2686
        %v2688 = vrot.slane %v2683, %v2687
        %v2691 = vsel %vm507, %v2677, 0
        %v2694 = vsel %vm507, %v2678, 0
        %2696 = vmatprep.subr.mxu0 0.0
        %2697 = vmatpush1.msra.mxu0 %v2679
        %2698 = vmatprep.subr.mxu0 0.0
        %2699 = vmatpush1.msra.mxu0 %v2680
        %2700 = vmatprep.subr.mxu0 0.0
        %2701 = vmatpush1.msra.mxu0 %v2681
        %2702 = vmatprep.subr.mxu0 0.0
        %2703 = vmatpush1.msra.mxu0 %v2682
        %2704 = vmatprep.subr.mxu0 0.0
        %2705 = vmatpush1.msra.mxu0 0.0
        %2706 = vmatprep.subr.mxu0 0.0
        %2707 = vmatpush1.msra.mxu0 0.0
        %2708 = vmatprep.subr.mxu0 0.0
        %2709 = vmatpush1.msra.mxu0 0.0
        %2710 = vmatprep.subr.mxu0 0.0
        %2711 = vmatpush1.msra.mxu0 0.0
        %2712 = vmatprep.subr.mxu0 0.0
        %2713 = vmatpush1.msra.mxu0 0.0
        %2714 = vmatprep.subr.mxu0 0.0
        %2715 = vmatpush1.msra.mxu0 0.0
        %2716 = vmatprep.subr.mxu0 0.0
        %2717 = vmatpush1.msra.mxu0 0.0
        %2718 = vmatprep.subr.mxu0 0.0
        %2719 = vmatpush1.msra.mxu0 0.0
        %2720 = vmatprep.subr.mxu0 0.0
        %2721 = vmatpush1.msra.mxu0 0.0
        %2722 = vmatprep.subr.mxu0 0.0
        %2723 = vmatpush1.msra.mxu0 0.0
        %2724 = vmatprep.subr.mxu0 0.0
        %2725 = vmatpush1.msra.mxu0 0.0
        %2726 = vmatprep.subr.mxu0 0.0
        %2727 = vmatpush1.msra.mxu0 0.0
        %2728 = vmatprep.subr.mxu0 0.0
        %2729 = vmatpush1.msra.mxu0 0.0
        %2730 = vmatprep.subr.mxu0 0.0
        %2731 = vmatpush1.msra.mxu0 0.0
        %2732 = vmatprep.subr.mxu0 0.0
        %2733 = vmatpush1.msra.mxu0 0.0
        %2734 = vmatprep.subr.mxu0 0.0
        %2735 = vmatpush1.msra.mxu0 0.0
        %2736 = vmatprep.subr.mxu0 0.0
        %2737 = vmatpush1.msra.mxu0 0.0
        %2738 = vmatprep.subr.mxu0 0.0
        %2739 = vmatpush1.msra.mxu0 0.0
        %2740 = vmatprep.subr.mxu0 0.0
        %2741 = vmatpush1.msra.mxu0 0.0
        %2742 = vmatprep.subr.mxu0 0.0
        %2743 = vmatpush1.msra.mxu0 0.0
        %2744 = vmatprep.subr.mxu0 0.0
        %2745 = vmatpush1.msra.mxu0 0.0
        %2746 = vmatprep.subr.mxu0 0.0
        %2747 = vmatpush1.msra.mxu0 0.0
        %2748 = vmatprep.subr.mxu0 0.0
        %2749 = vmatpush1.msra.mxu0 0.0
        %2750 = vmatprep.subr.mxu0 0.0
        %2751 = vmatpush1.msra.mxu0 0.0
        %2752 = vmatprep.subr.mxu0 0.0
        %2753 = vmatpush1.msra.mxu0 0.0
        %2754 = vmatprep.subr.mxu0 0.0
        %2755 = vmatpush1.msra.mxu0 0.0
        %2756 = vmatprep.subr.mxu0 0.0
        %2757 = vmatpush1.msra.mxu0 0.0
        %2758 = vmatprep.subr.mxu0 0.0
        %2759 = vmatpush1.msra.mxu0 0.0
        %2760 = vmatprep.mubr.f32.mxu0 0.0
        %2761 = vmatmul.mubr.f32.gmra.mrb[0].mxu0 %v2691
        %v2762 = vpop.f32.mrb[0].mxu0
        %v2763 = vadd.f32 %v2688, %v2762
        %v2764 = vpop.f32.mrb[0].mxu0
        %2765 = vmatprep.mubr.f32.mxu0 0.0
        %2766 = vmatmul.mubr.f32.gmra.mrb[0].mxu0 %v2694
        %v2767 = vpop.f32.mrb[0].mxu0
        %v2768 = vadd.f32 %v2688, %v2767
        %v2769 = vpop.f32.mrb[0].mxu0
        %2770 = vdwg.mxu0
        %v2771 = vmax.f32 %v2763, 0.0
        %v2772 = vmax.f32 %v2768, 0.0
        %v2773 = vld [vmem:[%s12] sm:$0xff]
        %v2774 = vld [vmem:[%s12 + $0x8] sm:$0xff]
        %v2775 = vld [vmem:[%s12 + $0x10] sm:$0xff]
        %v2776 = vld [vmem:[%s12 + $0x18] sm:$0xff]
        %v2777 = vld [vmem:[%s12 + $0x20] sm:$0xff]
        %v2778 = vld [vmem:[%s12 + $0x28] sm:$0xff]
        %v2779 = vld [vmem:[%s12 + $0x30] sm:$0xff]
        %v2780 = vld [vmem:[%s12 + $0x38] sm:$0xff]
        %v2781 = vld [vmem:[%s12 + $0x40] sm:$0xff]
        %v2782 = vld [vmem:[%s12 + $0x48] sm:$0xff]
        %v2783 = vld [vmem:[%s12 + $0x50] sm:$0xff]
        %v2784 = vld [vmem:[%s12 + $0x58] sm:$0xff]
        %v2785 = vld [vmem:[%s12 + $0x60] sm:$0xff]
        %v2786 = vld [vmem:[%s12 + $0x68] sm:$0xff]
        %v2787 = vld [vmem:[%s12 + $0x70] sm:$0xff]
        %v2788 = vld [vmem:[%s12 + $0x78] sm:$0xff]
        %v2789 = vld [vmem:[%s13] sm:$0x1]
        %v2791 = vlaneseq
        %v2792 = vshrl.u32 %v2791, 7
        %v2793 = vsub.s32 0, %v2792
        %v2794 = vrot.slane %v2789, %v2793
        %2796 = vmatprep.subr.mxu0 0.0
        %2797 = vmatpush1.msra.mxu0 %v2773
        %2798 = vmatprep.subr.mxu0 0.0
        %2799 = vmatpush1.msra.mxu0 %v2774
        %2800 = vmatprep.subr.mxu0 0.0
        %2801 = vmatpush1.msra.mxu0 %v2775
        %2802 = vmatprep.subr.mxu0 0.0
        %2803 = vmatpush1.msra.mxu0 %v2776
        %2804 = vmatprep.subr.mxu0 0.0
        %2805 = vmatpush1.msra.mxu0 %v2777
        %2806 = vmatprep.subr.mxu0 0.0
        %2807 = vmatpush1.msra.mxu0 %v2778
        %2808 = vmatprep.subr.mxu0 0.0
        %2809 = vmatpush1.msra.mxu0 %v2779
        %2810 = vmatprep.subr.mxu0 0.0
        %2811 = vmatpush1.msra.mxu0 %v2780
        %2812 = vmatprep.subr.mxu0 0.0
        %2813 = vmatpush1.msra.mxu0 %v2781
        %2814 = vmatprep.subr.mxu0 0.0
        %2815 = vmatpush1.msra.mxu0 %v2782
        %2816 = vmatprep.subr.mxu0 0.0
        %2817 = vmatpush1.msra.mxu0 %v2783
        %2818 = vmatprep.subr.mxu0 0.0
        %2819 = vmatpush1.msra.mxu0 %v2784
        %2820 = vmatprep.subr.mxu0 0.0
        %2821 = vmatpush1.msra.mxu0 %v2785
        %2822 = vmatprep.subr.mxu0 0.0
        %2823 = vmatpush1.msra.mxu0 %v2786
        %2824 = vmatprep.subr.mxu0 0.0
        %2825 = vmatpush1.msra.mxu0 %v2787
        %2826 = vmatprep.subr.mxu0 0.0
        %2827 = vmatpush1.msra.mxu0 %v2788
        %2828 = vmatprep.subr.mxu0 0.0
        %2829 = vmatpush1.msra.mxu0 0.0
        %2830 = vmatprep.subr.mxu0 0.0
        %2831 = vmatpush1.msra.mxu0 0.0
        %2832 = vmatprep.subr.mxu0 0.0
        %2833 = vmatpush1.msra.mxu0 0.0
        %2834 = vmatprep.subr.mxu0 0.0
        %2835 = vmatpush1.msra.mxu0 0.0
        %2836 = vmatprep.subr.mxu0 0.0
        %2837 = vmatpush1.msra.mxu0 0.0
        %2838 = vmatprep.subr.mxu0 0.0
        %2839 = vmatpush1.msra.mxu0 0.0
        %2840 = vmatprep.subr.mxu0 0.0
        %2841 = vmatpush1.msra.mxu0 0.0
        %2842 = vmatprep.subr.mxu0 0.0
        %2843 = vmatpush1.msra.mxu0 0.0
        %2844 = vmatprep.subr.mxu0 0.0
        %2845 = vmatpush1.msra.mxu0 0.0
        %2846 = vmatprep.subr.mxu0 0.0
        %2847 = vmatpush1.msra.mxu0 0.0
        %2848 = vmatprep.subr.mxu0 0.0
        %2849 = vmatpush1.msra.mxu0 0.0
        %2850 = vmatprep.subr.mxu0 0.0
        %2851 = vmatpush1.msra.mxu0 0.0
        %2852 = vmatprep.subr.mxu0 0.0
        %2853 = vmatpush1.msra.mxu0 0.0
        %2854 = vmatprep.subr.mxu0 0.0
        %2855 = vmatpush1.msra.mxu0 0.0
        %2856 = vmatprep.subr.mxu0 0.0
        %2857 = vmatpush1.msra.mxu0 0.0
        %2858 = vmatprep.subr.mxu0 0.0
        %2859 = vmatpush1.msra.mxu0 0.0
        %2860 = vmatprep.mubr.f32.mxu0 0.0
        %2861 = vmatmul.mubr.f32.gmra.mrb[0].mxu0 %v2771
        %v2862 = vpop.f32.mrb[0].mxu0
        %v2863 = vadd.f32 %v2794, %v2862
        %v2864 = vpop.f32.mrb[0].mxu0
        %2865 = vmatprep.mubr.f32.mxu0 0.0
        %2866 = vmatmul.mubr.f32.gmra.mrb[0].mxu0 %v2772
        %v2867 = vpop.f32.mrb[0].mxu0
        %v2868 = vadd.f32 %v2794, %v2867
        %v2869 = vpop.f32.mrb[0].mxu0
        %2870 = vdwg.mxu0
        %v2871 = vadd.f32 %v2619, %v2863
        %v2872 = vadd.f32 %v2620, %v2868
        %2873 = vst.msk [vmem:[#allocation2] sm:$0xff] %vm507, %v2871
        %2874 = vst.msk [vmem:[#allocation2 + $0x8] sm:$0xff] %vm507, %v2872
        %p2875 = scmp.eq.s32.totalorder %s28, 1
        // Predicated region
        $region89: #{tpu_custom_call.1} parent=83 // pred_check
          %p2876 = pneg %p2875
        $region90: #{tpu_custom_call.1} parent=83 // pred_check_branch
          %2878 = sbr.rel (%p2876) target = $region92
        $region91: #{tpu_custom_call.1} parent=83 // pred_region
          %v2879 = vld [vmem:[%s14] sm:$0x1]
          %v2880 = vld [vmem:[%s15] sm:$0x1]
          %v2881 = vsel %vm507, %v2871, 0.0
          %2882 = vadd.xlane.f32.xlu0 %v2881
          %v2883 = vpop.xlane.xlu0 %2882
          %v2884 = vsel %vm507, %v2872, 0.0
          %2885 = vadd.xlane.f32.xlu0 %v2884
          %v2886 = vpop.xlane.xlu0 %2885
          %v2887 = vmul.f32 %v2883, %v514
          %v2888 = vmul.f32 %v2886, %v514
          %v2889 = vsub.f32 %v2871, %v2887
          %v2890 = vsub.f32 %v2872, %v2888
          %v2891 = vmul.f32 %v2889, %v2889
          %v2892 = vmul.f32 %v2890, %v2890
          %v2893 = vsel %vm507, %v2891, 0.0
          %2894 = vadd.xlane.f32.xlu0 %v2893
          %v2895 = vpop.xlane.xlu0 %2894
          %v2896 = vsel %vm507, %v2892, 0.0
          %2897 = vadd.xlane.f32.xlu0 %v2896
          %v2898 = vpop.xlane.xlu0 %2897
          %v2899 = vmul.f32 %v2895, 0.032258064
          %v2900 = vmul.f32 %v2898, 0.032258064
          %v2901 = vrsqrt.pop %v2899
          %v2902 = vmul.f32 %v2899, %v2901
          %vm2903 = vcmp.eq.f32.partialorder %v2899, inf
          %v2904 = vsel %vm2903, %v2899, %v2902
          %vm2905 = vcmp.eq.f32.partialorder %v2899, 0.0
          %v2906 = vand.u32 %v2899, 2147483648
          %v2907 = vsel %vm2905, %v2906, %v2904
          %v2908 = vrsqrt.pop %v2900
          %v2909 = vmul.f32 %v2900, %v2908
          %vm2910 = vcmp.eq.f32.partialorder %v2900, inf
          %v2911 = vsel %vm2910, %v2900, %v2909
          %vm2912 = vcmp.eq.f32.partialorder %v2900, 0.0
          %v2913 = vand.u32 %v2900, 2147483648
          %v2914 = vsel %vm2912, %v2913, %v2911
          %v2915 = vadd.f32 %v2907, 1e-06
          %v2916 = vadd.f32 %v2914, 1e-06
          %v2917 = vrcp.pop %v2915
          %v2918 = vrcp.pop %v2916
          %v2920 = vlaneseq
          %v2921 = vshrl.u32 %v2920, 7
          %v2922 = vsub.s32 0, %v2921
          %v2923 = vrot.slane %v2879, %v2922
          %v2925 = vmul.f32 %v2923, %v2889
          %v2926 = vmul.f32 %v2923, %v2890
          %v2927 = vmul.f32 %v2925, %v2917
          %v2928 = vmul.f32 %v2926, %v2918
          %v2930 = vlaneseq
          %v2931 = vshrl.u32 %v2930, 7
          %v2932 = vsub.s32 0, %v2931
          %v2933 = vrot.slane %v2880, %v2932
          %v2935 = vadd.f32 %v2927, %v2933
          %v2936 = vadd.f32 %v2928, %v2933
          %2937 = vst.msk [vmem:[#allocation3] sm:$0xff] %vm507, %v2935
          %2938 = vst.msk [vmem:[#allocation3 + $0x8] sm:$0xff] %vm507, %v2936
        $region92: #{tpu_custom_call.1} parent=83 // pred_fallthru
          _
        // Predicated region
        $region93: #{tpu_custom_call.1} parent=83 // pred_check
          %p2939 = pneg %p377
        $region94: #{tpu_custom_call.1} parent=83 // pred_check_branch
          %2941 = sbr.rel (%p2939) target = $region96
        $region95: #{tpu_custom_call.1} parent=83 // pred_region
          %s2943 = ssub.s32 256, 256
          %2944 = vsyncadd [#allocation4], %s2943
          %s2945 = sshll.u32 [#allocation3], 4
          %s2946 = int_to_ptr.vmem [resolvable:$true] %s2945
          %2951 = dma.vmem_to_hbm [thread:$0]  %s2946, 256, %s16, [#allocation4], 128, 128, 8
        $region96: #{tpu_custom_call.1} parent=83 // pred_fallthru
          _
        // Predicated region
        $region97: #{tpu_custom_call.1} parent=83 // pred_check
          %p2952 = pneg %p377
        $region98: #{tpu_custom_call.1} parent=83 // pred_check_branch
          %2954 = sbr.rel (%p2952) target = $region100
        $region99: #{tpu_custom_call.1} parent=83 // pred_region
          %2955 = dma.done [#allocation4], 256
        $region100: #{tpu_custom_call.1} parent=83 // pred_fallthru
          _
      $region84: #{tpu_custom_call.1} parent=5 // pred_fallthru
        _
      %p2956 = scmp.le.s32.totalorder 2, %s23
      // Predicated region
      $region101: #{tpu_custom_call.1} parent=5 // pred_check
        %p2957 = pneg %p2956
      $region102: #{tpu_custom_call.1} parent=5 // pred_check_branch
        %2959 = sbr.rel (%p2957) target = $region104
      $region103: #{tpu_custom_call.1} parent=5 // pred_region
        %s2960 = ssub.s32 %s23, 2
      $region104: #{tpu_custom_call.1} parent=5 // pred_fallthru
        _
    $region6: #{tpu_custom_call.1} parent=1 // loop_footer
      %s27 = sadd.s32 1, %s23
    $region7: #{tpu_custom_call.1} parent=1 // loop_footer_branch
      %22 = sbr.rel target = $region3
    $region8: #{tpu_custom_call.1} parent=1 // loop_exit
      _
    %2961 = vsyncpa [#allocation4], 1
    %s2962 = scalar_lea.sflag [#allocation4], 1
    %2963 = vsyncpa %s2962, 1

</llo_original>
